<compile_context>
chip_gen: v6e
topology: v6e:2x2x1
jax: 0.10.0
libtpu: 0.0.40
codegen_flags: <defaults>
</compile_context>

<pallas_src>
import math

import jax
import jax.numpy as jnp
from jax.experimental import pallas as pl
from jax.experimental.pallas import tpu as pltpu

# ---------------- configuration (small, module-consistent shapes) -------------
INPUT_DIM = 64
D_MODEL = 128
NHEAD = 4
HEAD_DIM = D_MODEL // NHEAD
DIM_FF = 2048          # nn.TransformerDecoderLayer default dim_feedforward
MAX_TOKENS = 128
B = 8                  # original batch size
T = 9                  # tgt length (T-1 = 8 after the [:, :-1] shift)
S_SRC = 8              # src sequence length
LN_EPS = 1e-5
NUM_HEAD_OUT = MAX_TOKENS + 3 + 16 + 12   # 159
HEAD_PAD = 256                            # lane-dense padded output width

N_BLOCKS = 2                              # grid split of the attention-batch axis
FF_CHUNKS = 4                             # FFN reduction streamed over the grid
FF_CHUNK = DIM_FF // FF_CHUNKS            # 512

# bf16 weight-slab column offsets (all multiples of 128 -> lane-tile aligned)
_C_INW = 0
_C_SAIN = D_MODEL                 # 128
_C_CAIN = 4 * D_MODEL             # 512
_C_SAOUT = 7 * D_MODEL            # 896
_C_CAOUT = 8 * D_MODEL            # 1024
_C_WH = 9 * D_MODEL               # 1152
WSLAB_COLS = _C_WH + HEAD_PAD     # 1408

# f32 parameter-slab row indices
_R_INB, _R_SABO, _R_CABO, _R_B2 = 0, 1, 2, 3
_R_G1, _R_BE1, _R_G2, _R_BE2, _R_G3, _R_BE3 = 4, 5, 6, 7, 8, 9
_R_SAINB, _R_CAINB, _R_BH = 10, 11, 12
FVEC_ROWS, FVEC_COLS = 16, 3 * D_MODEL    # (16, 384)


# ---------------- fused kernel: src-proj + decoder layer + output heads -------
def fused_decoder_kernel(src_ref, x_ref, pe_ref, masks_ref, wslab_ref,
                         w1_ref, w2_ref, b1_ref, fvec_ref,
                         out_ref, x2_ref, acc_ref):
    ff_step = pl.program_id(1)
    Nb, L, D = x_ref.shape
    R = Nb * L
    dh = HEAD_DIM
    scale = 1.0 / math.sqrt(dh)
    bf16 = jnp.bfloat16

    fv = fvec_ref[...]                                # (16, 384) f32 param slab

    def prow(r, width=D_MODEL):
        return fv[r:r + 1, :width]

    def layer_norm(v, g, b):
        # single-pass statistics: E[x] and E[x^2] are independent reductions
        mu = jnp.mean(v, axis=-1, keepdims=True)
        ms = jnp.mean(v * v, axis=-1, keepdims=True)
        var = ms - mu * mu
        return (v - mu) * jax.lax.rsqrt(var + LN_EPS) * g + b

    # ---------- phase 1 (ff_step == 0): memory path + both attentions ---------
    @pl.when(ff_step == 0)
    def _attention_phase():
        in_w = wslab_ref[:, _C_INW:_C_INW + D_MODEL]              # (D, D)  bf16
        sa_in_w = wslab_ref[:, _C_SAIN:_C_SAIN + 3 * D_MODEL]     # (D, 3D) bf16
        ca_in_w = wslab_ref[:, _C_CAIN:_C_CAIN + 3 * D_MODEL]     # (D, 3D) bf16
        sa_out_w = wslab_ref[:, _C_SAOUT:_C_SAOUT + D_MODEL]      # (D, D)  bf16
        ca_out_w = wslab_ref[:, _C_CAOUT:_C_CAOUT + D_MODEL]      # (D, D)  bf16

        in_b, sa_bo, ca_bo = prow(_R_INB), prow(_R_SABO), prow(_R_CABO)
        g1, be1, g2, be2 = prow(_R_G1), prow(_R_BE1), prow(_R_G2), prow(_R_BE2)
        sa_in_b = fv[_R_SAINB:_R_SAINB + 1, :]                    # (1, 3D)
        ca_in_b = fv[_R_CAINB:_R_CAINB + 1, :]                    # (1, 3D)
        self_mask = masks_ref[0]                                  # (R, R)
        cross_mask = masks_ref[1]                                 # (R, R)

        # memory path: input_proj(src) + positional encoding (over the S axis)
        src2d = src_ref[...].reshape(R, D_MODEL)      # features zero-padded to D
        mem = (jnp.dot(src2d.astype(bf16), in_w,
                       preferred_element_type=jnp.float32) + in_b)
        mem = (mem.reshape(Nb, L, D_MODEL) + pe_ref[...]).reshape(R, D_MODEL)

        x2d = x_ref[...].reshape(R, D_MODEL)

        def split_heads(t2d):
            # (R, D) -> (H, R, dh): one-time move of heads from lanes to batch
            return jnp.stack(
                [t2d[:, h * dh:(h + 1) * dh] for h in range(NHEAD)], axis=0)

        def mha(q2d, kv2d, w_in, b_in, wo, bo, msk):
            # projections: bf16 MXU, f32 accumulation
            if kv2d is None:          # self-attention: one fused QKV matmul
                qkv = (jnp.dot(q2d.astype(bf16), w_in,
                               preferred_element_type=jnp.float32) + b_in)
                q = qkv[:, :D_MODEL]
                k = qkv[:, D_MODEL:2 * D_MODEL]
                v = qkv[:, 2 * D_MODEL:]
            else:                     # cross-attention: Q matmul + fused KV matmul
                q = (jnp.dot(q2d.astype(bf16), w_in[:, :D_MODEL],
                             preferred_element_type=jnp.float32)
                     + b_in[:, :D_MODEL])
                kv = (jnp.dot(kv2d.astype(bf16), w_in[:, D_MODEL:],
                              preferred_element_type=jnp.float32)
                      + b_in[:, D_MODEL:])
                k, v = kv[:, :D_MODEL], kv[:, D_MODEL:]
            qh, kh, vh = split_heads(q), split_heads(k), split_heads(v)
            # ONE batched score contraction + ONE softmax + ONE AV contraction;
            # per-(n) block structure and causality come from the additive mask.
            s = jnp.einsum('hqd,hkd->hqk', qh, kh,
                           preferred_element_type=jnp.float32) * scale
            s = s + msk[None, :, :]
            s = s - jnp.max(s, axis=-1, keepdims=True)
            p = jnp.exp(s)
            p = p / jnp.sum(p, axis=-1, keepdims=True)       # exact softmax
            o = jnp.einsum('hqk,hkd->hqd', p, vh,
                           preferred_element_type=jnp.float32)
            # head merge + output projection without a lane concatenate:
            #   concat_h(o_h) @ Wo == sum_h o_h @ Wo[h*dh:(h+1)*dh, :]
            out = jnp.dot(o[0].astype(bf16), wo[:dh, :],
                          preferred_element_type=jnp.float32)
            for h in range(1, NHEAD):
                out = out + jnp.dot(o[h].astype(bf16),
                                    wo[h * dh:(h + 1) * dh, :],
                                    preferred_element_type=jnp.float32)
            return out + bo

        # --- self attention (causal) + post-norm ---
        sa = mha(x2d, None, sa_in_w, sa_in_b, sa_out_w, sa_bo, self_mask)
        x1 = layer_norm(x2d + sa, g1, be1)
        # --- cross attention + post-norm ---
        ca = mha(x1, mem, ca_in_w, ca_in_b, ca_out_w, ca_bo, cross_mask)
        x2_ref[...] = layer_norm(x1 + ca, g2, be2)
        acc_ref[...] = jnp.zeros_like(acc_ref)

    # ---------- every step: one streamed FFN chunk (ReLU) ---------------------
    x2b = x2_ref[...].astype(bf16)
    h1 = jnp.maximum(
        jnp.dot(x2b, w1_ref[...], preferred_element_type=jnp.float32)
        + b1_ref[...], 0.0)
    acc_ref[...] += jnp.dot(h1.astype(bf16), w2_ref[...],
                            preferred_element_type=jnp.float32)

    # ---------- last step: residual + LN3 + fused lane-dense output heads -----
    @pl.when(ff_step == pl.num_programs(1) - 1)
    def _finalize():
        wh = wslab_ref[:, _C_WH:_C_WH + HEAD_PAD]                 # (D, 256) bf16
        b2, g3, be3 = prow(_R_B2), prow(_R_G3), prow(_R_BE3)
        bh = fv[_R_BH:_R_BH + 1, :HEAD_PAD]
        x2 = x2_ref[...]
        x3 = layer_norm(x2 + acc_ref[...] + b2, g3, be3)
        logits = (jnp.dot(x3.astype(bf16), wh,
                          preferred_element_type=jnp.float32) + bh)
        out_ref[...] = logits.reshape(x_ref.shape[0], x_ref.shape[1], HEAD_PAD)


# ---------------- parameters & positional encoding ----------------------------
def positional_encoding(max_len, d_model):
    pos = jnp.arange(max_len, dtype=jnp.float32)[:, None]
    div = jnp.exp(jnp.arange(0, d_model, 2, dtype=jnp.float32)
                  * (-math.log(10000.0) / d_model))
    pe = jnp.zeros((max_len, d_model), jnp.float32)
    pe = pe.at[:, 0::2].set(jnp.sin(pos * div))
    pe = pe.at[:, 1::2].set(jnp.cos(pos * div))
    return pe


def init_params(key):
    ks = jax.random.split(key, 16)

    def lin(k, fan_in, fan_out):
        k1, k2 = jax.random.split(k)
        bound = 1.0 / math.sqrt(fan_in)
        w = jax.random.uniform(k1, (fan_out, fan_in), jnp.float32, -bound, bound)
        b = jax.random.uniform(k2, (fan_out,), jnp.float32, -bound, bound)
        return w, b

    p = {}
    p['in_proj_w'], p['in_proj_b'] = lin(ks[0], INPUT_DIM, D_MODEL)
    p['sa_in_w'], p['sa_in_b'] = lin(ks[1], D_MODEL, 3 * D_MODEL)
    p['sa_out_w'], p['sa_out_b'] = lin(ks[2], D_MODEL, D_MODEL)
    p['ca_in_w'], p['ca_in_b'] = lin(ks[3], D_MODEL, 3 * D_MODEL)
    p['ca_out_w'], p['ca_out_b'] = lin(ks[4], D_MODEL, D_MODEL)
    p['w1'], p['b1'] = lin(ks[5], D_MODEL, DIM_FF)
    p['w2'], p['b2'] = lin(ks[6], DIM_FF, D_MODEL)
    for i in (1, 2, 3):
        p[f'g{i}'] = jnp.ones((D_MODEL,), jnp.float32)
        p[f'be{i}'] = jnp.zeros((D_MODEL,), jnp.float32)
    p['wt'], p['bt'] = lin(ks[7], D_MODEL, MAX_TOKENS)
    p['wty'], p['bty'] = lin(ks[8], D_MODEL, 3)
    p['wgx'], p['bgx'] = lin(ks[9], D_MODEL, 16)
    p['wgy'], p['bgy'] = lin(ks[10], D_MODEL, 12)
    p['time_emb'] = jax.random.normal(ks[11], (MAX_TOKENS, D_MODEL // 4), jnp.float32)
    p['type_emb'] = jax.random.normal(ks[12], (3, D_MODEL // 4), jnp.float32)
    p['gx_emb'] = jax.random.normal(ks[13], (16, D_MODEL // 4), jnp.float32)
    p['gy_emb'] = jax.random.normal(ks[14], (12, D_MODEL // 4), jnp.float32)
    return p


def prepare_params(p):
    """One-time prep: transpose / pack / pad / cast weights for the kernel."""
    bf16 = jnp.bfloat16
    f32 = jnp.float32

    # bf16 weight slab (all (128, cols) pieces, lane-aligned column offsets)
    in_w_pad = jnp.zeros((D_MODEL, D_MODEL), f32).at[:INPUT_DIM, :].set(p['in_proj_w'].T)
    wh = jnp.concatenate([p['wt'], p['wty'], p['wgx'], p['wgy']], axis=0).T  # (D, 159)
    wh_pad = jnp.pad(wh, ((0, 0), (0, HEAD_PAD - NUM_HEAD_OUT)))             # (D, 256)
    wslab = jnp.concatenate(
        [in_w_pad, p['sa_in_w'].T, p['ca_in_w'].T,
         p['sa_out_w'].T, p['ca_out_w'].T, wh_pad], axis=1).astype(bf16)     # (D, 1408)

    # f32 parameter slab (16, 384)
    bh = jnp.concatenate([p['bt'], p['bty'], p['bgx'], p['bgy']])            # (159,)

    def row(v):
        return jnp.pad(v, (0, FVEC_COLS - v.shape[0])).reshape(1, FVEC_COLS)

    fvec = jnp.concatenate(
        [row(p['in_proj_b']), row(p['sa_out_b']), row(p['ca_out_b']), row(p['b2']),
         row(p['g1']), row(p['be1']), row(p['g2']), row(p['be2']),
         row(p['g3']), row(p['be3']),
         row(p['sa_in_b']), row(p['ca_in_b']), row(bh),
         jnp.zeros((FVEC_ROWS - 13, FVEC_COLS), f32)], axis=0)               # (16, 384)

    return {
        'wslab': wslab,
        'fvec': fvec,
        'w1': p['w1'].T.astype(bf16),        # (D, FF)
        'w2': p['w2'].T.astype(bf16),        # (FF, D)
        'b1': p['b1'].reshape(1, -1),        # (1, FF) f32
        'time_emb': p['time_emb'],
        'type_emb': p['type_emb'],
        'gx_emb': p['gx_emb'],
        'gy_emb': p['gy_emb'],
    }


# ---------------- full forward pass --------------------------------------------
def transformer_decoder_forward(src, tgt, prep, pe):
    B_, I_, S_ = src.shape
    Tm1 = tgt.shape[1] - 1
    # Faithful batch_first=False semantics: only well-defined when these match.
    assert B_ == Tm1 == S_, "requires B == T-1 == S_SRC (PyTorch batch_first=False)"
    assert Tm1 % N_BLOCKS == 0 and DIM_FF % FF_CHUNKS == 0
    n_blk = Tm1 // N_BLOCKS
    r_blk = n_blk * B_

    # src path: (B, I, S) -> (S, B, I); zero-pad features to D_MODEL lanes.
    src_sbi = jnp.transpose(src, (2, 0, 1)).astype(jnp.float32)
    src_pad = jnp.pad(src_sbi, ((0, 0), (0, 0), (0, D_MODEL - I_)))
    pe_src = pe[:S_].reshape(S_, 1, D_MODEL)

    # tgt path: embed_target (gather + concat) + pe (done in XLA; tiny tables)
    t = tgt[:, :-1, :]
    ti = jnp.clip(t[:, :, 0], 0, MAX_TOKENS - 1)
    tyi = jnp.clip(t[:, :, 1], 0, 2)
    gxi = jnp.clip(t[:, :, 2], 0, 15)
    gyi = jnp.clip(t[:, :, 3], 0, 11)
    emb = jnp.concatenate([prep['time_emb'][ti], prep['type_emb'][tyi],
                           prep['gx_emb'][gxi], prep['gy_emb'][gyi]], axis=-1)
    tgt_emb = emb + pe[None, :Tm1, :]                      # (B, T-1, D)
    x_nld = jnp.transpose(tgt_emb, (1, 0, 2))              # (N=T-1, L=B, D)

    # Additive masks over the flattened (n_local, l) rows of one grid block:
    #   self-attn: causal over l within the same n; cross-attn: same n only.
    ridx = jnp.arange(r_blk)
    n_id = ridx // B_
    l_id = ridx % B_
    same_n = n_id[:, None] == n_id[None, :]
    causal = l_id[None, :] <= l_id[:, None]
    self_mask = jnp.where(same_n & causal, 0.0, -1e30)
    cross_mask = jnp.where(same_n, 0.0, -1e30)
    masks = jnp.stack([self_mask, cross_mask], axis=0).astype(jnp.float32)  # (2,R,R)

    args = (src_pad, x_nld, pe_src, masks, prep['wslab'],
            prep['w1'], prep['w2'], prep['b1'], prep['fvec'])

    out = pl.pallas_call(
        fused_decoder_kernel,
        out_shape=jax.ShapeDtypeStruct((Tm1, B_, HEAD_PAD), jnp.float32),
        grid_spec=pltpu.PrefetchScalarGridSpec(
            num_scalar_prefetch=0,
            grid=(N_BLOCKS, FF_CHUNKS),
            in_specs=[
                pl.BlockSpec((n_blk, B_, D_MODEL), lambda i, k: (i, 0, 0)),   # src
                pl.BlockSpec((n_blk, B_, D_MODEL), lambda i, k: (i, 0, 0)),   # x
                pl.BlockSpec((n_blk, 1, D_MODEL), lambda i, k: (i, 0, 0)),    # pe_src
                pl.BlockSpec((2, r_blk, r_blk), lambda i, k: (0, 0, 0)),      # masks
                pl.BlockSpec((D_MODEL, WSLAB_COLS), lambda i, k: (0, 0)),     # wslab
                pl.BlockSpec((D_MODEL, FF_CHUNK), lambda i, k: (0, k)),       # w1
                pl.BlockSpec((FF_CHUNK, D_MODEL), lambda i, k: (k, 0)),       # w2
                pl.BlockSpec((1, FF_CHUNK), lambda i, k: (0, k)),             # b1
                pl.BlockSpec((FVEC_ROWS, FVEC_COLS), lambda i, k: (0, 0)),    # fvec
            ],
            out_specs=pl.BlockSpec((n_blk, B_, HEAD_PAD), lambda i, k: (i, 0, 0)),
            scratch_shapes=[pltpu.VMEM((r_blk, D_MODEL), jnp.float32),   # x2
                            pltpu.VMEM((r_blk, D_MODEL), jnp.float32)],  # ff acc
        ),
        compiler_params=pltpu.CompilerParams(
            dimension_semantics=("parallel", "arbitrary"),
            vmem_limit_bytes=16 * 1024 * 1024),
    )(*args)

    out = jnp.transpose(out, (1, 0, 2))[..., :NUM_HEAD_OUT]  # (B, T-1, 159)
    time_logits = out[..., :MAX_TOKENS]
    type_logits = out[..., MAX_TOKENS:MAX_TOKENS + 3]
    grid_x_logits = out[..., MAX_TOKENS + 3:MAX_TOKENS + 19]
    grid_y_logits = out[..., MAX_TOKENS + 19:]
    return time_logits, type_logits, grid_x_logits, grid_y_logits


if __name__ == "__main__":
    key = jax.random.PRNGKey(0)
    pkey, skey, tkey = jax.random.split(key, 3)
    params = init_params(pkey)
    prep = prepare_params(params)          # one-time weight prep (outside jit)
    pe = positional_encoding(64, D_MODEL)

    src = jax.random.normal(skey, (B, INPUT_DIM, S_SRC), jnp.float32)
    tgt = jax.random.randint(tkey, (B, T, 4), 0, MAX_TOKENS, dtype=jnp.int32)

    fwd = jax.jit(transformer_decoder_forward)
    outs = jax.block_until_ready(fwd(src, tgt, prep, pe))

    assert outs[0].shape == (B, T - 1, MAX_TOKENS)
    assert outs[1].shape == (B, T - 1, 3)
    assert outs[2].shape == (B, T - 1, 16)
    assert outs[3].shape == (B, T - 1, 12)
    assert all(bool(jnp.all(jnp.isfinite(o))) for o in outs)
    print("KERNEL_OK")
</pallas_src>

<mosaic_0001>
module attributes {stable_mosaic.version = 11 : i64} {
  func.func @fused_decoder_kernel(%arg0: i32, %arg1: i32, %arg2: memref<4x8x128xf32, #tpu.memory_space<vmem>>, %arg3: memref<4x8x128xf32, #tpu.memory_space<vmem>>, %arg4: memref<4x1x128xf32, #tpu.memory_space<vmem>>, %arg5: memref<2x32x32xf32, #tpu.memory_space<vmem>>, %arg6: memref<128x1408xbf16, #tpu.memory_space<vmem>>, %arg7: memref<128x512xbf16, #tpu.memory_space<vmem>>, %arg8: memref<512x128xbf16, #tpu.memory_space<vmem>>, %arg9: memref<1x512xf32, #tpu.memory_space<vmem>>, %arg10: memref<16x384xf32, #tpu.memory_space<vmem>>, %arg11: memref<4x8x256xf32, #tpu.memory_space<vmem>>, %arg12: memref<32x128xf32, #tpu.memory_space<vmem>>, %arg13: memref<32x128xf32, #tpu.memory_space<vmem>>) attributes {dimension_semantics = [#tpu.dimension_semantics<parallel>, #tpu.dimension_semantics<arbitrary>], iteration_bounds = array<i64: 2, 4>, scalar_prefetch = 0 : i64, scratch_operands = 2 : i64, tpu.core_type = #tpu.core_type<tc>, window_params = [{transform_indices = @transform_0, window_bounds = array<i64: 4, 8, 128>}, {transform_indices = @transform_1, window_bounds = array<i64: 4, 8, 128>}, {transform_indices = @transform_2, window_bounds = array<i64: 4, 1, 128>}, {pipeline_mode = #tpu.pipeline_mode<synchronous>, transform_indices = @transform_3, window_bounds = array<i64: 2, 32, 32>}, {pipeline_mode = #tpu.pipeline_mode<synchronous>, transform_indices = @transform_4, window_bounds = array<i64: 128, 1408>}, {transform_indices = @transform_5, window_bounds = array<i64: 128, 512>}, {transform_indices = @transform_6, window_bounds = array<i64: 512, 128>}, {transform_indices = @transform_7, window_bounds = array<i64: 1, 512>}, {pipeline_mode = #tpu.pipeline_mode<synchronous>, transform_indices = @transform_8, window_bounds = array<i64: 16, 384>}, {transform_indices = @transform_9, window_bounds = array<i64: 4, 8, 256>}]} {
    %c0 = arith.constant 0 : index
    %c0_0 = arith.constant 0 : index
    %0 = vector.load %arg10[%c0, %c0_0] : memref<16x384xf32, #tpu.memory_space<vmem>>, vector<16x384xf32>
    %c0_i32 = arith.constant 0 : i32
    %1 = arith.cmpi eq, %arg1, %c0_i32 : i32
    %2 = arith.extui %1 : i1 to i32
    %c0_i32_1 = arith.constant 0 : i32
    %3 = arith.cmpi ne, %2, %c0_i32_1 : i32
    scf.if %3 {
      %c0_17 = arith.constant 0 : index
      %c0_18 = arith.constant 0 : index
      %22 = vector.load %arg6[%c0_17, %c0_18] : memref<128x1408xbf16, #tpu.memory_space<vmem>>, vector<128x128xbf16>
      %c0_19 = arith.constant 0 : index
      %c128 = arith.constant 128 : index
      %23 = vector.load %arg6[%c0_19, %c128] : memref<128x1408xbf16, #tpu.memory_space<vmem>>, vector<128x384xbf16>
      %c0_20 = arith.constant 0 : index
      %c512 = arith.constant 512 : index
      %24 = vector.load %arg6[%c0_20, %c512] : memref<128x1408xbf16, #tpu.memory_space<vmem>>, vector<128x384xbf16>
      %c0_21 = arith.constant 0 : index
      %c896 = arith.constant 896 : index
      %25 = vector.load %arg6[%c0_21, %c896] : memref<128x1408xbf16, #tpu.memory_space<vmem>>, vector<128x128xbf16>
      %c0_22 = arith.constant 0 : index
      %c1024 = arith.constant 1024 : index
      %26 = vector.load %arg6[%c0_22, %c1024] : memref<128x1408xbf16, #tpu.memory_space<vmem>>, vector<128x128xbf16>
      %27 = vector.extract_strided_slice %0 {offsets = [0, 0], sizes = [1, 128], strides = [1, 1]} : vector<16x384xf32> to vector<1x128xf32>
      %28 = vector.extract_strided_slice %0 {offsets = [1, 0], sizes = [1, 128], strides = [1, 1]} : vector<16x384xf32> to vector<1x128xf32>
      %29 = vector.extract_strided_slice %0 {offsets = [2, 0], sizes = [1, 128], strides = [1, 1]} : vector<16x384xf32> to vector<1x128xf32>
      %30 = vector.extract_strided_slice %0 {offsets = [4, 0], sizes = [1, 128], strides = [1, 1]} : vector<16x384xf32> to vector<1x128xf32>
      %31 = vector.extract_strided_slice %0 {offsets = [5, 0], sizes = [1, 128], strides = [1, 1]} : vector<16x384xf32> to vector<1x128xf32>
      %32 = vector.extract_strided_slice %0 {offsets = [6, 0], sizes = [1, 128], strides = [1, 1]} : vector<16x384xf32> to vector<1x128xf32>
      %33 = vector.extract_strided_slice %0 {offsets = [7, 0], sizes = [1, 128], strides = [1, 1]} : vector<16x384xf32> to vector<1x128xf32>
      %34 = vector.extract_strided_slice %0 {offsets = [10, 0], sizes = [1, 384], strides = [1, 1]} : vector<16x384xf32> to vector<1x384xf32>
      %35 = vector.extract_strided_slice %0 {offsets = [11, 0], sizes = [1, 384], strides = [1, 1]} : vector<16x384xf32> to vector<1x384xf32>
      %c0_23 = arith.constant 0 : index
      %c0_24 = arith.constant 0 : index
      %c0_25 = arith.constant 0 : index
      %36 = vector.load %arg5[%c0_23, %c0_24, %c0_25] : memref<2x32x32xf32, #tpu.memory_space<vmem>>, vector<1x32x32xf32>
      %37 = vector.shape_cast %36 : vector<1x32x32xf32> to vector<32x32xf32>
      %c1 = arith.constant 1 : index
      %c0_26 = arith.constant 0 : index
      %c0_27 = arith.constant 0 : index
      %38 = vector.load %arg5[%c1, %c0_26, %c0_27] : memref<2x32x32xf32, #tpu.memory_space<vmem>>, vector<1x32x32xf32>
      %39 = vector.shape_cast %38 : vector<1x32x32xf32> to vector<32x32xf32>
      %c0_28 = arith.constant 0 : index
      %c0_29 = arith.constant 0 : index
      %c0_30 = arith.constant 0 : index
      %40 = vector.load %arg2[%c0_28, %c0_29, %c0_30] : memref<4x8x128xf32, #tpu.memory_space<vmem>>, vector<4x8x128xf32>
      %41 = vector.shape_cast %40 : vector<4x8x128xf32> to vector<32x128xf32>
      %42 = arith.truncf %41 : vector<32x128xf32> to vector<32x128xbf16>
      %cst_31 = arith.constant dense<0.000000e+00> : vector<32x128xf32>
      %43 = tpu.matmul %42, %22, %cst_31 {dimension_numbers = #tpu.dot_dimension_numbers<[1], [0], [0], [1], [0, 0, 1, 1], [], []>} : vector<32x128xbf16>, vector<128x128xbf16>, vector<32x128xf32> -> vector<32x128xf32>
      %44 = vector.broadcast %27 : vector<1x128xf32> to vector<32x128xf32>
      %45 = arith.addf %43, %44 : vector<32x128xf32>
      %46 = vector.shape_cast %45 : vector<32x128xf32> to vector<4x8x128xf32>
      %c0_32 = arith.constant 0 : index
      %c0_33 = arith.constant 0 : index
      %c0_34 = arith.constant 0 : index
      %47 = vector.load %arg4[%c0_32, %c0_33, %c0_34] : memref<4x1x128xf32, #tpu.memory_space<vmem>>, vector<4x1x128xf32>
      %48 = vector.broadcast %47 : vector<4x1x128xf32> to vector<4x8x128xf32>
      %49 = arith.addf %46, %48 : vector<4x8x128xf32>
      %50 = vector.shape_cast %49 : vector<4x8x128xf32> to vector<32x128xf32>
      %c0_35 = arith.constant 0 : index
      %c0_36 = arith.constant 0 : index
      %c0_37 = arith.constant 0 : index
      %51 = vector.load %arg3[%c0_35, %c0_36, %c0_37] : memref<4x8x128xf32, #tpu.memory_space<vmem>>, vector<4x8x128xf32>
      %52 = vector.shape_cast %51 : vector<4x8x128xf32> to vector<32x128xf32>
      %53 = arith.truncf %52 : vector<32x128xf32> to vector<32x128xbf16>
      %cst_38 = arith.constant dense<0.000000e+00> : vector<32x384xf32>
      %54 = tpu.matmul %53, %23, %cst_38 {dimension_numbers = #tpu.dot_dimension_numbers<[1], [0], [0], [1], [0, 0, 1, 1], [], []>} : vector<32x128xbf16>, vector<128x384xbf16>, vector<32x384xf32> -> vector<32x384xf32>
      %55 = vector.broadcast %34 : vector<1x384xf32> to vector<32x384xf32>
      %56 = arith.addf %54, %55 : vector<32x384xf32>
      %57 = vector.extract_strided_slice %56 {offsets = [0, 0], sizes = [32, 128], strides = [1, 1]} : vector<32x384xf32> to vector<32x128xf32>
      %58 = vector.extract_strided_slice %56 {offsets = [0, 128], sizes = [32, 128], strides = [1, 1]} : vector<32x384xf32> to vector<32x128xf32>
      %59 = vector.extract_strided_slice %56 {offsets = [0, 256], sizes = [32, 128], strides = [1, 1]} : vector<32x384xf32> to vector<32x128xf32>
      %60 = vector.extract_strided_slice %57 {offsets = [0, 0], sizes = [32, 32], strides = [1, 1]} : vector<32x128xf32> to vector<32x32xf32>
      %61 = vector.extract_strided_slice %57 {offsets = [0, 32], sizes = [32, 32], strides = [1, 1]} : vector<32x128xf32> to vector<32x32xf32>
      %62 = vector.extract_strided_slice %57 {offsets = [0, 64], sizes = [32, 32], strides = [1, 1]} : vector<32x128xf32> to vector<32x32xf32>
      %63 = vector.extract_strided_slice %57 {offsets = [0, 96], sizes = [32, 32], strides = [1, 1]} : vector<32x128xf32> to vector<32x32xf32>
      %64 = vector.shape_cast %60 : vector<32x32xf32> to vector<1x32x32xf32>
      %65 = vector.shape_cast %61 : vector<32x32xf32> to vector<1x32x32xf32>
      %66 = vector.shape_cast %62 : vector<32x32xf32> to vector<1x32x32xf32>
      %67 = vector.shape_cast %63 : vector<32x32xf32> to vector<1x32x32xf32>
      %68 = tpu.concatenate %64, %65, %66, %67 in 0 : vector<1x32x32xf32>, vector<1x32x32xf32>, vector<1x32x32xf32>, vector<1x32x32xf32> -> vector<4x32x32xf32>
      %69 = vector.extract_strided_slice %58 {offsets = [0, 0], sizes = [32, 32], strides = [1, 1]} : vector<32x128xf32> to vector<32x32xf32>
      %70 = vector.extract_strided_slice %58 {offsets = [0, 32], sizes = [32, 32], strides = [1, 1]} : vector<32x128xf32> to vector<32x32xf32>
      %71 = vector.extract_strided_slice %58 {offsets = [0, 64], sizes = [32, 32], strides = [1, 1]} : vector<32x128xf32> to vector<32x32xf32>
      %72 = vector.extract_strided_slice %58 {offsets = [0, 96], sizes = [32, 32], strides = [1, 1]} : vector<32x128xf32> to vector<32x32xf32>
      %73 = vector.shape_cast %69 : vector<32x32xf32> to vector<1x32x32xf32>
      %74 = vector.shape_cast %70 : vector<32x32xf32> to vector<1x32x32xf32>
      %75 = vector.shape_cast %71 : vector<32x32xf32> to vector<1x32x32xf32>
      %76 = vector.shape_cast %72 : vector<32x32xf32> to vector<1x32x32xf32>
      %77 = tpu.concatenate %73, %74, %75, %76 in 0 : vector<1x32x32xf32>, vector<1x32x32xf32>, vector<1x32x32xf32>, vector<1x32x32xf32> -> vector<4x32x32xf32>
      %78 = vector.extract_strided_slice %59 {offsets = [0, 0], sizes = [32, 32], strides = [1, 1]} : vector<32x128xf32> to vector<32x32xf32>
      %79 = vector.extract_strided_slice %59 {offsets = [0, 32], sizes = [32, 32], strides = [1, 1]} : vector<32x128xf32> to vector<32x32xf32>
      %80 = vector.extract_strided_slice %59 {offsets = [0, 64], sizes = [32, 32], strides = [1, 1]} : vector<32x128xf32> to vector<32x32xf32>
      %81 = vector.extract_strided_slice %59 {offsets = [0, 96], sizes = [32, 32], strides = [1, 1]} : vector<32x128xf32> to vector<32x32xf32>
      %82 = vector.shape_cast %78 : vector<32x32xf32> to vector<1x32x32xf32>
      %83 = vector.shape_cast %79 : vector<32x32xf32> to vector<1x32x32xf32>
      %84 = vector.shape_cast %80 : vector<32x32xf32> to vector<1x32x32xf32>
      %85 = vector.shape_cast %81 : vector<32x32xf32> to vector<1x32x32xf32>
      %86 = tpu.concatenate %82, %83, %84, %85 in 0 : vector<1x32x32xf32>, vector<1x32x32xf32>, vector<1x32x32xf32>, vector<1x32x32xf32> -> vector<4x32x32xf32>
      "tpu.trace_start"() <{level = 10 : i32, message = "hqd,hkd->hqk"}> : () -> ()
      %cst_39 = arith.constant dense<0.000000e+00> : vector<4x32x32xf32>
      %87 = tpu.matmul %68, %77, %cst_39 {dimension_numbers = #tpu.dot_dimension_numbers<[2], [2], [1], [1], [0, 0, 0, 1, 1, 1], [0], [0]>} : vector<4x32x32xf32>, vector<4x32x32xf32>, vector<4x32x32xf32> -> vector<4x32x32xf32>
      "tpu.trace_stop"() : () -> ()
      %cst_40 = arith.constant 0.176776692 : f32
      %88 = vector.broadcast %cst_40 : f32 to vector<4x32x32xf32>
      %89 = arith.mulf %87, %88 : vector<4x32x32xf32>
      %90 = vector.shape_cast %37 : vector<32x32xf32> to vector<1x32x32xf32>
      %91 = vector.broadcast %90 : vector<1x32x32xf32> to vector<4x32x32xf32>
      %92 = arith.addf %89, %91 : vector<4x32x32xf32>
      %cst_41 = arith.constant dense<0xFF800000> : vector<4x32xf32>
      %93 = vector.multi_reduction <maximumf>, %92, %cst_41 [2] : vector<4x32x32xf32> to vector<4x32xf32>
      %94 = vector.shape_cast %93 : vector<4x32xf32> to vector<4x32x1xf32>
      %95 = vector.broadcast %94 : vector<4x32x1xf32> to vector<4x32x32xf32>
      %96 = arith.subf %92, %95 : vector<4x32x32xf32>
      %97 = math.exp %96 : vector<4x32x32xf32>
      %cst_42 = arith.constant dense<0.000000e+00> : vector<4x32xf32>
      %98 = vector.multi_reduction <add>, %97, %cst_42 [2] : vector<4x32x32xf32> to vector<4x32xf32>
      %99 = vector.shape_cast %98 : vector<4x32xf32> to vector<4x32x1xf32>
      %100 = vector.broadcast %99 : vector<4x32x1xf32> to vector<4x32x32xf32>
      %101 = arith.divf %97, %100 : vector<4x32x32xf32>
      "tpu.trace_start"() <{level = 10 : i32, message = "hqk,hkd->hqd"}> : () -> ()
      %cst_43 = arith.constant dense<0.000000e+00> : vector<4x32x32xf32>
      %102 = tpu.matmul %101, %86, %cst_43 {dimension_numbers = #tpu.dot_dimension_numbers<[2], [1], [1], [2], [0, 0, 0, 1, 1, 2], [0], [0]>} : vector<4x32x32xf32>, vector<4x32x32xf32>, vector<4x32x32xf32> -> vector<4x32x32xf32>
      "tpu.trace_stop"() : () -> ()
      %103 = vector.extract_strided_slice %102 {offsets = [0, 0, 0], sizes = [1, 32, 32], strides = [1, 1, 1]} : vector<4x32x32xf32> to vector<1x32x32xf32>
      %104 = vector.shape_cast %103 : vector<1x32x32xf32> to vector<32x32xf32>
      %105 = arith.truncf %104 : vector<32x32xf32> to vector<32x32xbf16>
      %106 = vector.extract_strided_slice %25 {offsets = [0, 0], sizes = [32, 128], strides = [1, 1]} : vector<128x128xbf16> to vector<32x128xbf16>
      %cst_44 = arith.constant dense<0.000000e+00> : vector<32x128xf32>
      %107 = tpu.matmul %105, %106, %cst_44 {dimension_numbers = #tpu.dot_dimension_numbers<[1], [0], [0], [1], [0, 0, 1, 1], [], []>} : vector<32x32xbf16>, vector<32x128xbf16>, vector<32x128xf32> -> vector<32x128xf32>
      %108 = vector.extract_strided_slice %102 {offsets = [1, 0, 0], sizes = [1, 32, 32], strides = [1, 1, 1]} : vector<4x32x32xf32> to vector<1x32x32xf32>
      %109 = vector.shape_cast %108 : vector<1x32x32xf32> to vector<32x32xf32>
      %110 = arith.truncf %109 : vector<32x32xf32> to vector<32x32xbf16>
      %111 = vector.extract_strided_slice %25 {offsets = [32, 0], sizes = [32, 128], strides = [1, 1]} : vector<128x128xbf16> to vector<32x128xbf16>
      %cst_45 = arith.constant dense<0.000000e+00> : vector<32x128xf32>
      %112 = tpu.matmul %110, %111, %cst_45 {dimension_numbers = #tpu.dot_dimension_numbers<[1], [0], [0], [1], [0, 0, 1, 1], [], []>} : vector<32x32xbf16>, vector<32x128xbf16>, vector<32x128xf32> -> vector<32x128xf32>
      %113 = arith.addf %107, %112 : vector<32x128xf32>
      %114 = vector.extract_strided_slice %102 {offsets = [2, 0, 0], sizes = [1, 32, 32], strides = [1, 1, 1]} : vector<4x32x32xf32> to vector<1x32x32xf32>
      %115 = vector.shape_cast %114 : vector<1x32x32xf32> to vector<32x32xf32>
      %116 = arith.truncf %115 : vector<32x32xf32> to vector<32x32xbf16>
      %117 = vector.extract_strided_slice %25 {offsets = [64, 0], sizes = [32, 128], strides = [1, 1]} : vector<128x128xbf16> to vector<32x128xbf16>
      %cst_46 = arith.constant dense<0.000000e+00> : vector<32x128xf32>
      %118 = tpu.matmul %116, %117, %cst_46 {dimension_numbers = #tpu.dot_dimension_numbers<[1], [0], [0], [1], [0, 0, 1, 1], [], []>} : vector<32x32xbf16>, vector<32x128xbf16>, vector<32x128xf32> -> vector<32x128xf32>
      %119 = arith.addf %113, %118 : vector<32x128xf32>
      %120 = vector.extract_strided_slice %102 {offsets = [3, 0, 0], sizes = [1, 32, 32], strides = [1, 1, 1]} : vector<4x32x32xf32> to vector<1x32x32xf32>
      %121 = vector.shape_cast %120 : vector<1x32x32xf32> to vector<32x32xf32>
      %122 = arith.truncf %121 : vector<32x32xf32> to vector<32x32xbf16>
      %123 = vector.extract_strided_slice %25 {offsets = [96, 0], sizes = [32, 128], strides = [1, 1]} : vector<128x128xbf16> to vector<32x128xbf16>
      %cst_47 = arith.constant dense<0.000000e+00> : vector<32x128xf32>
      %124 = tpu.matmul %122, %123, %cst_47 {dimension_numbers = #tpu.dot_dimension_numbers<[1], [0], [0], [1], [0, 0, 1, 1], [], []>} : vector<32x32xbf16>, vector<32x128xbf16>, vector<32x128xf32> -> vector<32x128xf32>
      %125 = arith.addf %119, %124 : vector<32x128xf32>
      %126 = vector.broadcast %28 : vector<1x128xf32> to vector<32x128xf32>
      %127 = arith.addf %125, %126 : vector<32x128xf32>
      %128 = arith.addf %52, %127 : vector<32x128xf32>
      %cst_48 = arith.constant dense<0.000000e+00> : vector<32xf32>
      %129 = vector.multi_reduction <add>, %128, %cst_48 [1] : vector<32x128xf32> to vector<32xf32>
      %130 = vector.shape_cast %129 : vector<32xf32> to vector<32x1xf32>
      %cst_49 = arith.constant 1.280000e+02 : f32
      %131 = vector.broadcast %cst_49 : f32 to vector<32x1xf32>
      %132 = arith.divf %130, %131 : vector<32x1xf32>
      %133 = arith.mulf %128, %128 : vector<32x128xf32>
      %cst_50 = arith.constant dense<0.000000e+00> : vector<32xf32>
      %134 = vector.multi_reduction <add>, %133, %cst_50 [1] : vector<32x128xf32> to vector<32xf32>
      %135 = vector.shape_cast %134 : vector<32xf32> to vector<32x1xf32>
      %cst_51 = arith.constant 1.280000e+02 : f32
      %136 = vector.broadcast %cst_51 : f32 to vector<32x1xf32>
      %137 = arith.divf %135, %136 : vector<32x1xf32>
      %138 = arith.mulf %132, %132 : vector<32x1xf32>
      %139 = arith.subf %137, %138 : vector<32x1xf32>
      %140 = vector.broadcast %132 : vector<32x1xf32> to vector<32x128xf32>
      %141 = arith.subf %128, %140 : vector<32x128xf32>
      %cst_52 = arith.constant 9.99999974E-6 : f32
      %142 = vector.broadcast %cst_52 : f32 to vector<32x1xf32>
      %143 = arith.addf %139, %142 : vector<32x1xf32>
      %144 = math.rsqrt %143 : vector<32x1xf32>
      %145 = vector.broadcast %144 : vector<32x1xf32> to vector<32x128xf32>
      %146 = arith.mulf %141, %145 : vector<32x128xf32>
      %147 = vector.broadcast %30 : vector<1x128xf32> to vector<32x128xf32>
      %148 = arith.mulf %146, %147 : vector<32x128xf32>
      %149 = vector.broadcast %31 : vector<1x128xf32> to vector<32x128xf32>
      %150 = arith.addf %148, %149 : vector<32x128xf32>
      %151 = arith.truncf %150 : vector<32x128xf32> to vector<32x128xbf16>
      %152 = vector.extract_strided_slice %24 {offsets = [0, 0], sizes = [128, 128], strides = [1, 1]} : vector<128x384xbf16> to vector<128x128xbf16>
      %cst_53 = arith.constant dense<0.000000e+00> : vector<32x128xf32>
      %153 = tpu.matmul %151, %152, %cst_53 {dimension_numbers = #tpu.dot_dimension_numbers<[1], [0], [0], [1], [0, 0, 1, 1], [], []>} : vector<32x128xbf16>, vector<128x128xbf16>, vector<32x128xf32> -> vector<32x128xf32>
      %154 = vector.extract_strided_slice %35 {offsets = [0, 0], sizes = [1, 128], strides = [1, 1]} : vector<1x384xf32> to vector<1x128xf32>
      %155 = vector.broadcast %154 : vector<1x128xf32> to vector<32x128xf32>
      %156 = arith.addf %153, %155 : vector<32x128xf32>
      %157 = arith.truncf %50 : vector<32x128xf32> to vector<32x128xbf16>
      %158 = vector.extract_strided_slice %24 {offsets = [0, 128], sizes = [128, 256], strides = [1, 1]} : vector<128x384xbf16> to vector<128x256xbf16>
      %cst_54 = arith.constant dense<0.000000e+00> : vector<32x256xf32>
      %159 = tpu.matmul %157, %158, %cst_54 {dimension_numbers = #tpu.dot_dimension_numbers<[1], [0], [0], [1], [0, 0, 1, 1], [], []>} : vector<32x128xbf16>, vector<128x256xbf16>, vector<32x256xf32> -> vector<32x256xf32>
      %160 = vector.extract_strided_slice %35 {offsets = [0, 128], sizes = [1, 256], strides = [1, 1]} : vector<1x384xf32> to vector<1x256xf32>
      %161 = vector.broadcast %160 : vector<1x256xf32> to vector<32x256xf32>
      %162 = arith.addf %159, %161 : vector<32x256xf32>
      %163 = vector.extract_strided_slice %162 {offsets = [0, 0], sizes = [32, 128], strides = [1, 1]} : vector<32x256xf32> to vector<32x128xf32>
      %164 = vector.extract_strided_slice %162 {offsets = [0, 128], sizes = [32, 128], strides = [1, 1]} : vector<32x256xf32> to vector<32x128xf32>
      %165 = vector.extract_strided_slice %156 {offsets = [0, 0], sizes = [32, 32], strides = [1, 1]} : vector<32x128xf32> to vector<32x32xf32>
      %166 = vector.extract_strided_slice %156 {offsets = [0, 32], sizes = [32, 32], strides = [1, 1]} : vector<32x128xf32> to vector<32x32xf32>
      %167 = vector.extract_strided_slice %156 {offsets = [0, 64], sizes = [32, 32], strides = [1, 1]} : vector<32x128xf32> to vector<32x32xf32>
      %168 = vector.extract_strided_slice %156 {offsets = [0, 96], sizes = [32, 32], strides = [1, 1]} : vector<32x128xf32> to vector<32x32xf32>
      %169 = vector.shape_cast %165 : vector<32x32xf32> to vector<1x32x32xf32>
      %170 = vector.shape_cast %166 : vector<32x32xf32> to vector<1x32x32xf32>
      %171 = vector.shape_cast %167 : vector<32x32xf32> to vector<1x32x32xf32>
      %172 = vector.shape_cast %168 : vector<32x32xf32> to vector<1x32x32xf32>
      %173 = tpu.concatenate %169, %170, %171, %172 in 0 : vector<1x32x32xf32>, vector<1x32x32xf32>, vector<1x32x32xf32>, vector<1x32x32xf32> -> vector<4x32x32xf32>
      %174 = vector.extract_strided_slice %163 {offsets = [0, 0], sizes = [32, 32], strides = [1, 1]} : vector<32x128xf32> to vector<32x32xf32>
      %175 = vector.extract_strided_slice %163 {offsets = [0, 32], sizes = [32, 32], strides = [1, 1]} : vector<32x128xf32> to vector<32x32xf32>
      %176 = vector.extract_strided_slice %163 {offsets = [0, 64], sizes = [32, 32], strides = [1, 1]} : vector<32x128xf32> to vector<32x32xf32>
      %177 = vector.extract_strided_slice %163 {offsets = [0, 96], sizes = [32, 32], strides = [1, 1]} : vector<32x128xf32> to vector<32x32xf32>
      %178 = vector.shape_cast %174 : vector<32x32xf32> to vector<1x32x32xf32>
      %179 = vector.shape_cast %175 : vector<32x32xf32> to vector<1x32x32xf32>
      %180 = vector.shape_cast %176 : vector<32x32xf32> to vector<1x32x32xf32>
      %181 = vector.shape_cast %177 : vector<32x32xf32> to vector<1x32x32xf32>
      %182 = tpu.concatenate %178, %179, %180, %181 in 0 : vector<1x32x32xf32>, vector<1x32x32xf32>, vector<1x32x32xf32>, vector<1x32x32xf32> -> vector<4x32x32xf32>
      %183 = vector.extract_strided_slice %164 {offsets = [0, 0], sizes = [32, 32], strides = [1, 1]} : vector<32x128xf32> to vector<32x32xf32>
      %184 = vector.extract_strided_slice %164 {offsets = [0, 32], sizes = [32, 32], strides = [1, 1]} : vector<32x128xf32> to vector<32x32xf32>
      %185 = vector.extract_strided_slice %164 {offsets = [0, 64], sizes = [32, 32], strides = [1, 1]} : vector<32x128xf32> to vector<32x32xf32>
      %186 = vector.extract_strided_slice %164 {offsets = [0, 96], sizes = [32, 32], strides = [1, 1]} : vector<32x128xf32> to vector<32x32xf32>
      %187 = vector.shape_cast %183 : vector<32x32xf32> to vector<1x32x32xf32>
      %188 = vector.shape_cast %184 : vector<32x32xf32> to vector<1x32x32xf32>
      %189 = vector.shape_cast %185 : vector<32x32xf32> to vector<1x32x32xf32>
      %190 = vector.shape_cast %186 : vector<32x32xf32> to vector<1x32x32xf32>
      %191 = tpu.concatenate %187, %188, %189, %190 in 0 : vector<1x32x32xf32>, vector<1x32x32xf32>, vector<1x32x32xf32>, vector<1x32x32xf32> -> vector<4x32x32xf32>
      "tpu.trace_start"() <{level = 10 : i32, message = "hqd,hkd->hqk"}> : () -> ()
      %cst_55 = arith.constant dense<0.000000e+00> : vector<4x32x32xf32>
      %192 = tpu.matmul %173, %182, %cst_55 {dimension_numbers = #tpu.dot_dimension_numbers<[2], [2], [1], [1], [0, 0, 0, 1, 1, 1], [0], [0]>} : vector<4x32x32xf32>, vector<4x32x32xf32>, vector<4x32x32xf32> -> vector<4x32x32xf32>
      "tpu.trace_stop"() : () -> ()
      %cst_56 = arith.constant 0.176776692 : f32
      %193 = vector.broadcast %cst_56 : f32 to vector<4x32x32xf32>
      %194 = arith.mulf %192, %193 : vector<4x32x32xf32>
      %195 = vector.shape_cast %39 : vector<32x32xf32> to vector<1x32x32xf32>
      %196 = vector.broadcast %195 : vector<1x32x32xf32> to vector<4x32x32xf32>
      %197 = arith.addf %194, %196 : vector<4x32x32xf32>
      %cst_57 = arith.constant dense<0xFF800000> : vector<4x32xf32>
      %198 = vector.multi_reduction <maximumf>, %197, %cst_57 [2] : vector<4x32x32xf32> to vector<4x32xf32>
      %199 = vector.shape_cast %198 : vector<4x32xf32> to vector<4x32x1xf32>
      %200 = vector.broadcast %199 : vector<4x32x1xf32> to vector<4x32x32xf32>
      %201 = arith.subf %197, %200 : vector<4x32x32xf32>
      %202 = math.exp %201 : vector<4x32x32xf32>
      %cst_58 = arith.constant dense<0.000000e+00> : vector<4x32xf32>
      %203 = vector.multi_reduction <add>, %202, %cst_58 [2] : vector<4x32x32xf32> to vector<4x32xf32>
      %204 = vector.shape_cast %203 : vector<4x32xf32> to vector<4x32x1xf32>
      %205 = vector.broadcast %204 : vector<4x32x1xf32> to vector<4x32x32xf32>
      %206 = arith.divf %202, %205 : vector<4x32x32xf32>
      "tpu.trace_start"() <{level = 10 : i32, message = "hqk,hkd->hqd"}> : () -> ()
      %cst_59 = arith.constant dense<0.000000e+00> : vector<4x32x32xf32>
      %207 = tpu.matmul %206, %191, %cst_59 {dimension_numbers = #tpu.dot_dimension_numbers<[2], [1], [1], [2], [0, 0, 0, 1, 1, 2], [0], [0]>} : vector<4x32x32xf32>, vector<4x32x32xf32>, vector<4x32x32xf32> -> vector<4x32x32xf32>
      "tpu.trace_stop"() : () -> ()
      %208 = vector.extract_strided_slice %207 {offsets = [0, 0, 0], sizes = [1, 32, 32], strides = [1, 1, 1]} : vector<4x32x32xf32> to vector<1x32x32xf32>
      %209 = vector.shape_cast %208 : vector<1x32x32xf32> to vector<32x32xf32>
      %210 = arith.truncf %209 : vector<32x32xf32> to vector<32x32xbf16>
      %211 = vector.extract_strided_slice %26 {offsets = [0, 0], sizes = [32, 128], strides = [1, 1]} : vector<128x128xbf16> to vector<32x128xbf16>
      %cst_60 = arith.constant dense<0.000000e+00> : vector<32x128xf32>
      %212 = tpu.matmul %210, %211, %cst_60 {dimension_numbers = #tpu.dot_dimension_numbers<[1], [0], [0], [1], [0, 0, 1, 1], [], []>} : vector<32x32xbf16>, vector<32x128xbf16>, vector<32x128xf32> -> vector<32x128xf32>
      %213 = vector.extract_strided_slice %207 {offsets = [1, 0, 0], sizes = [1, 32, 32], strides = [1, 1, 1]} : vector<4x32x32xf32> to vector<1x32x32xf32>
      %214 = vector.shape_cast %213 : vector<1x32x32xf32> to vector<32x32xf32>
      %215 = arith.truncf %214 : vector<32x32xf32> to vector<32x32xbf16>
      %216 = vector.extract_strided_slice %26 {offsets = [32, 0], sizes = [32, 128], strides = [1, 1]} : vector<128x128xbf16> to vector<32x128xbf16>
      %cst_61 = arith.constant dense<0.000000e+00> : vector<32x128xf32>
      %217 = tpu.matmul %215, %216, %cst_61 {dimension_numbers = #tpu.dot_dimension_numbers<[1], [0], [0], [1], [0, 0, 1, 1], [], []>} : vector<32x32xbf16>, vector<32x128xbf16>, vector<32x128xf32> -> vector<32x128xf32>
      %218 = arith.addf %212, %217 : vector<32x128xf32>
      %219 = vector.extract_strided_slice %207 {offsets = [2, 0, 0], sizes = [1, 32, 32], strides = [1, 1, 1]} : vector<4x32x32xf32> to vector<1x32x32xf32>
      %220 = vector.shape_cast %219 : vector<1x32x32xf32> to vector<32x32xf32>
      %221 = arith.truncf %220 : vector<32x32xf32> to vector<32x32xbf16>
      %222 = vector.extract_strided_slice %26 {offsets = [64, 0], sizes = [32, 128], strides = [1, 1]} : vector<128x128xbf16> to vector<32x128xbf16>
      %cst_62 = arith.constant dense<0.000000e+00> : vector<32x128xf32>
      %223 = tpu.matmul %221, %222, %cst_62 {dimension_numbers = #tpu.dot_dimension_numbers<[1], [0], [0], [1], [0, 0, 1, 1], [], []>} : vector<32x32xbf16>, vector<32x128xbf16>, vector<32x128xf32> -> vector<32x128xf32>
      %224 = arith.addf %218, %223 : vector<32x128xf32>
      %225 = vector.extract_strided_slice %207 {offsets = [3, 0, 0], sizes = [1, 32, 32], strides = [1, 1, 1]} : vector<4x32x32xf32> to vector<1x32x32xf32>
      %226 = vector.shape_cast %225 : vector<1x32x32xf32> to vector<32x32xf32>
      %227 = arith.truncf %226 : vector<32x32xf32> to vector<32x32xbf16>
      %228 = vector.extract_strided_slice %26 {offsets = [96, 0], sizes = [32, 128], strides = [1, 1]} : vector<128x128xbf16> to vector<32x128xbf16>
      %cst_63 = arith.constant dense<0.000000e+00> : vector<32x128xf32>
      %229 = tpu.matmul %227, %228, %cst_63 {dimension_numbers = #tpu.dot_dimension_numbers<[1], [0], [0], [1], [0, 0, 1, 1], [], []>} : vector<32x32xbf16>, vector<32x128xbf16>, vector<32x128xf32> -> vector<32x128xf32>
      %230 = arith.addf %224, %229 : vector<32x128xf32>
      %231 = vector.broadcast %29 : vector<1x128xf32> to vector<32x128xf32>
      %232 = arith.addf %230, %231 : vector<32x128xf32>
      %233 = arith.addf %150, %232 : vector<32x128xf32>
      %cst_64 = arith.constant dense<0.000000e+00> : vector<32xf32>
      %234 = vector.multi_reduction <add>, %233, %cst_64 [1] : vector<32x128xf32> to vector<32xf32>
      %235 = vector.shape_cast %234 : vector<32xf32> to vector<32x1xf32>
      %cst_65 = arith.constant 1.280000e+02 : f32
      %236 = vector.broadcast %cst_65 : f32 to vector<32x1xf32>
      %237 = arith.divf %235, %236 : vector<32x1xf32>
      %238 = arith.mulf %233, %233 : vector<32x128xf32>
      %cst_66 = arith.constant dense<0.000000e+00> : vector<32xf32>
      %239 = vector.multi_reduction <add>, %238, %cst_66 [1] : vector<32x128xf32> to vector<32xf32>
      %240 = vector.shape_cast %239 : vector<32xf32> to vector<32x1xf32>
      %cst_67 = arith.constant 1.280000e+02 : f32
      %241 = vector.broadcast %cst_67 : f32 to vector<32x1xf32>
      %242 = arith.divf %240, %241 : vector<32x1xf32>
      %243 = arith.mulf %237, %237 : vector<32x1xf32>
      %244 = arith.subf %242, %243 : vector<32x1xf32>
      %245 = vector.broadcast %237 : vector<32x1xf32> to vector<32x128xf32>
      %246 = arith.subf %233, %245 : vector<32x128xf32>
      %cst_68 = arith.constant 9.99999974E-6 : f32
      %247 = vector.broadcast %cst_68 : f32 to vector<32x1xf32>
      %248 = arith.addf %244, %247 : vector<32x1xf32>
      %249 = math.rsqrt %248 : vector<32x1xf32>
      %250 = vector.broadcast %249 : vector<32x1xf32> to vector<32x128xf32>
      %251 = arith.mulf %246, %250 : vector<32x128xf32>
      %252 = vector.broadcast %32 : vector<1x128xf32> to vector<32x128xf32>
      %253 = arith.mulf %251, %252 : vector<32x128xf32>
      %254 = vector.broadcast %33 : vector<1x128xf32> to vector<32x128xf32>
      %255 = arith.addf %253, %254 : vector<32x128xf32>
      %c0_69 = arith.constant 0 : index
      %c0_70 = arith.constant 0 : index
      %256 = vector.load %arg12[%c0_69, %c0_70] : memref<32x128xf32, #tpu.memory_space<vmem>>, vector<32x128xf32>
      tpu.vector_store %arg12[%c0_69, %c0_70], %255 {strides = array<i32>} : memref<32x128xf32, #tpu.memory_space<vmem>>, vector<32x128xf32>,
      %cst_71 = arith.constant 0.000000e+00 : f32
      %257 = vector.broadcast %cst_71 : f32 to vector<32x128xf32>
      %c0_72 = arith.constant 0 : index
      %c0_73 = arith.constant 0 : index
      %258 = vector.load %arg13[%c0_72, %c0_73] : memref<32x128xf32, #tpu.memory_space<vmem>>, vector<32x128xf32>
      tpu.vector_store %arg13[%c0_72, %c0_73], %257 {strides = array<i32>} : memref<32x128xf32, #tpu.memory_space<vmem>>, vector<32x128xf32>,
    } else {
    }
    %c0_2 = arith.constant 0 : index
    %c0_3 = arith.constant 0 : index
    %4 = vector.load %arg12[%c0_2, %c0_3] : memref<32x128xf32, #tpu.memory_space<vmem>>, vector<32x128xf32>
    %5 = arith.truncf %4 : vector<32x128xf32> to vector<32x128xbf16>
    %c0_4 = arith.constant 0 : index
    %c0_5 = arith.constant 0 : index
    %6 = vector.load %arg7[%c0_4, %c0_5] : memref<128x512xbf16, #tpu.memory_space<vmem>>, vector<128x512xbf16>
    %cst = arith.constant dense<0.000000e+00> : vector<32x512xf32>
    %7 = tpu.matmul %5, %6, %cst {dimension_numbers = #tpu.dot_dimension_numbers<[1], [0], [0], [1], [0, 0, 1, 1], [], []>} : vector<32x128xbf16>, vector<128x512xbf16>, vector<32x512xf32> -> vector<32x512xf32>
    %c0_6 = arith.constant 0 : index
    %c0_7 = arith.constant 0 : index
    %8 = vector.load %arg9[%c0_6, %c0_7] : memref<1x512xf32, #tpu.memory_space<vmem>>, vector<1x512xf32>
    %9 = vector.broadcast %8 : vector<1x512xf32> to vector<32x512xf32>
    %10 = arith.addf %7, %9 : vector<32x512xf32>
    %cst_8 = arith.constant 0.000000e+00 : f32
    %11 = vector.broadcast %cst_8 : f32 to vector<32x512xf32>
    %12 = arith.maximumf %10, %11 : vector<32x512xf32>
    %c0_9 = arith.constant 0 : index
    %c0_10 = arith.constant 0 : index
    %13 = vector.load %arg13[%c0_9, %c0_10] : memref<32x128xf32, #tpu.memory_space<vmem>>, vector<32x128xf32>
    %14 = arith.truncf %12 : vector<32x512xf32> to vector<32x512xbf16>
    %c0_11 = arith.constant 0 : index
    %c0_12 = arith.constant 0 : index
    %15 = vector.load %arg8[%c0_11, %c0_12] : memref<512x128xbf16, #tpu.memory_space<vmem>>, vector<512x128xbf16>
    %cst_13 = arith.constant dense<0.000000e+00> : vector<32x128xf32>
    %16 = tpu.matmul %14, %15, %cst_13 {dimension_numbers = #tpu.dot_dimension_numbers<[1], [0], [0], [1], [0, 0, 1, 1], [], []>} : vector<32x512xbf16>, vector<512x128xbf16>, vector<32x128xf32> -> vector<32x128xf32>
    %17 = arith.addf %13, %16 : vector<32x128xf32>
    %c0_14 = arith.constant 0 : index
    %c0_15 = arith.constant 0 : index
    %18 = vector.load %arg13[%c0_14, %c0_15] : memref<32x128xf32, #tpu.memory_space<vmem>>, vector<32x128xf32>
    tpu.vector_store %arg13[%c0_14, %c0_15], %17 {strides = array<i32>} : memref<32x128xf32, #tpu.memory_space<vmem>>, vector<32x128xf32>,
    %c3_i32 = arith.constant 3 : i32
    %19 = arith.cmpi eq, %arg1, %c3_i32 : i32
    %20 = arith.extui %19 : i1 to i32
    %c0_i32_16 = arith.constant 0 : i32
    %21 = arith.cmpi ne, %20, %c0_i32_16 : i32
    scf.if %21 {
      %c0_17 = arith.constant 0 : index
      %c1152 = arith.constant 1152 : index
      %22 = vector.load %arg6[%c0_17, %c1152] : memref<128x1408xbf16, #tpu.memory_space<vmem>>, vector<128x256xbf16>
      %23 = vector.extract_strided_slice %0 {offsets = [3, 0], sizes = [1, 128], strides = [1, 1]} : vector<16x384xf32> to vector<1x128xf32>
      %24 = vector.extract_strided_slice %0 {offsets = [8, 0], sizes = [1, 128], strides = [1, 1]} : vector<16x384xf32> to vector<1x128xf32>
      %25 = vector.extract_strided_slice %0 {offsets = [9, 0], sizes = [1, 128], strides = [1, 1]} : vector<16x384xf32> to vector<1x128xf32>
      %26 = vector.extract_strided_slice %0 {offsets = [12, 0], sizes = [1, 256], strides = [1, 1]} : vector<16x384xf32> to vector<1x256xf32>
      %c0_18 = arith.constant 0 : index
      %c0_19 = arith.constant 0 : index
      %27 = vector.load %arg12[%c0_18, %c0_19] : memref<32x128xf32, #tpu.memory_space<vmem>>, vector<32x128xf32>
      %c0_20 = arith.constant 0 : index
      %c0_21 = arith.constant 0 : index
      %28 = vector.load %arg13[%c0_20, %c0_21] : memref<32x128xf32, #tpu.memory_space<vmem>>, vector<32x128xf32>
      %29 = arith.addf %27, %28 : vector<32x128xf32>
      %30 = vector.broadcast %23 : vector<1x128xf32> to vector<32x128xf32>
      %31 = arith.addf %29, %30 : vector<32x128xf32>
      %cst_22 = arith.constant dense<0.000000e+00> : vector<32xf32>
      %32 = vector.multi_reduction <add>, %31, %cst_22 [1] : vector<32x128xf32> to vector<32xf32>
      %33 = vector.shape_cast %32 : vector<32xf32> to vector<32x1xf32>
      %cst_23 = arith.constant 1.280000e+02 : f32
      %34 = vector.broadcast %cst_23 : f32 to vector<32x1xf32>
      %35 = arith.divf %33, %34 : vector<32x1xf32>
      %36 = arith.mulf %31, %31 : vector<32x128xf32>
      %cst_24 = arith.constant dense<0.000000e+00> : vector<32xf32>
      %37 = vector.multi_reduction <add>, %36, %cst_24 [1] : vector<32x128xf32> to vector<32xf32>
      %38 = vector.shape_cast %37 : vector<32xf32> to vector<32x1xf32>
      %cst_25 = arith.constant 1.280000e+02 : f32
      %39 = vector.broadcast %cst_25 : f32 to vector<32x1xf32>
      %40 = arith.divf %38, %39 : vector<32x1xf32>
      %41 = arith.mulf %35, %35 : vector<32x1xf32>
      %42 = arith.subf %40, %41 : vector<32x1xf32>
      %43 = vector.broadcast %35 : vector<32x1xf32> to vector<32x128xf32>
      %44 = arith.subf %31, %43 : vector<32x128xf32>
      %cst_26 = arith.constant 9.99999974E-6 : f32
      %45 = vector.broadcast %cst_26 : f32 to vector<32x1xf32>
      %46 = arith.addf %42, %45 : vector<32x1xf32>
      %47 = math.rsqrt %46 : vector<32x1xf32>
      %48 = vector.broadcast %47 : vector<32x1xf32> to vector<32x128xf32>
      %49 = arith.mulf %44, %48 : vector<32x128xf32>
      %50 = vector.broadcast %24 : vector<1x128xf32> to vector<32x128xf32>
      %51 = arith.mulf %49, %50 : vector<32x128xf32>
      %52 = vector.broadcast %25 : vector<1x128xf32> to vector<32x128xf32>
      %53 = arith.addf %51, %52 : vector<32x128xf32>
      %54 = arith.truncf %53 : vector<32x128xf32> to vector<32x128xbf16>
      %cst_27 = arith.constant dense<0.000000e+00> : vector<32x256xf32>
      %55 = tpu.matmul %54, %22, %cst_27 {dimension_numbers = #tpu.dot_dimension_numbers<[1], [0], [0], [1], [0, 0, 1, 1], [], []>} : vector<32x128xbf16>, vector<128x256xbf16>, vector<32x256xf32> -> vector<32x256xf32>
      %56 = vector.broadcast %26 : vector<1x256xf32> to vector<32x256xf32>
      %57 = arith.addf %55, %56 : vector<32x256xf32>
      %58 = vector.shape_cast %57 : vector<32x256xf32> to vector<4x8x256xf32>
      %c0_28 = arith.constant 0 : index
      %c0_29 = arith.constant 0 : index
      %c0_30 = arith.constant 0 : index
      %59 = vector.load %arg11[%c0_28, %c0_29, %c0_30] : memref<4x8x256xf32, #tpu.memory_space<vmem>>, vector<4x8x256xf32>
      tpu.vector_store %arg11[%c0_28, %c0_29, %c0_30], %58 {strides = array<i32>} : memref<4x8x256xf32, #tpu.memory_space<vmem>>, vector<4x8x256xf32>,
    } else {
    }
    return
  }
  func.func @transform_0(%arg0: i32, %arg1: i32) -> (i32, i32, i32) {
    %c0_i32 = arith.constant 0 : i32
    %c0_i32_0 = arith.constant 0 : i32
    %c0_i32_1 = arith.constant 0 : i32
    return %arg0, %c0_i32, %c0_i32_0 : i32, i32, i32
  }
  func.func @transform_1(%arg0: i32, %arg1: i32) -> (i32, i32, i32) {
    %c0_i32 = arith.constant 0 : i32
    %c0_i32_0 = arith.constant 0 : i32
    %c0_i32_1 = arith.constant 0 : i32
    return %arg0, %c0_i32, %c0_i32_0 : i32, i32, i32
  }
  func.func @transform_2(%arg0: i32, %arg1: i32) -> (i32, i32, i32) {
    %c0_i32 = arith.constant 0 : i32
    %c0_i32_0 = arith.constant 0 : i32
    %c0_i32_1 = arith.constant 0 : i32
    return %arg0, %c0_i32, %c0_i32_0 : i32, i32, i32
  }
  func.func @transform_3(%arg0: i32, %arg1: i32) -> (i32, i32, i32) {
    %c0_i32 = arith.constant 0 : i32
    %c0_i32_0 = arith.constant 0 : i32
    %c0_i32_1 = arith.constant 0 : i32
    %c0_i32_2 = arith.constant 0 : i32
    return %c0_i32, %c0_i32_0, %c0_i32_1 : i32, i32, i32
  }
  func.func @transform_4(%arg0: i32, %arg1: i32) -> (i32, i32) {
    %c0_i32 = arith.constant 0 : i32
    %c0_i32_0 = arith.constant 0 : i32
    %c0_i32_1 = arith.constant 0 : i32
    return %c0_i32, %c0_i32_0 : i32, i32
  }
  func.func @transform_5(%arg0: i32, %arg1: i32) -> (i32, i32) {
    %c0_i32 = arith.constant 0 : i32
    %c0_i32_0 = arith.constant 0 : i32
    return %c0_i32, %arg1 : i32, i32
  }
  func.func @transform_6(%arg0: i32, %arg1: i32) -> (i32, i32) {
    %c0_i32 = arith.constant 0 : i32
    %c0_i32_0 = arith.constant 0 : i32
    return %arg1, %c0_i32 : i32, i32
  }
  func.func @transform_7(%arg0: i32, %arg1: i32) -> (i32, i32) {
    %c0_i32 = arith.constant 0 : i32
    %c0_i32_0 = arith.constant 0 : i32
    return %c0_i32, %arg1 : i32, i32
  }
  func.func @transform_8(%arg0: i32, %arg1: i32) -> (i32, i32) {
    %c0_i32 = arith.constant 0 : i32
    %c0_i32_0 = arith.constant 0 : i32
    %c0_i32_1 = arith.constant 0 : i32
    return %c0_i32, %c0_i32_0 : i32, i32
  }
  func.func @transform_9(%arg0: i32, %arg1: i32) -> (i32, i32, i32) {
    %c0_i32 = arith.constant 0 : i32
    %c0_i32_0 = arith.constant 0 : i32
    %c0_i32_1 = arith.constant 0 : i32
    return %arg0, %c0_i32, %c0_i32_0 : i32, i32, i32
  }
}

</mosaic_0001>

<llo_original>
// kernel: transformer_decoder_forward.1
$region0: #{transformer_decoder_forward.1}
  #allocation0 [shape = 'u32[]', space=smem, size = 0x4, offset = 0x4, fixed_abs, tag = 'smem constant byte address 0x4 - core index']
  #allocation1 [shape = 'u32[144,128]{1,0:T(1,128)}', space=vmem, size = 0x12000, scoped, tag = 'internal scratch']
  #allocation2 [shape = 'f32[32,128]{1,0:T(8,128)}', space=vmem, size = 0x4000, scoped, tag = 'scratch operand']
  #allocation3 [shape = 'f32[32,128]{1,0:T(8,128)}', space=vmem, size = 0x4000, scoped, tag = 'scratch operand']
  %s0 = inlined_call_operand.vmem [shape: f32[8,8,128], index: 0, kind: input, shape index: {}]
  %s1 = inlined_call_operand.vmem [shape: f32[8,8,128], index: 1, kind: input, shape index: {}]
  %s2 = inlined_call_operand.vmem [shape: f32[8,1,128], index: 2, kind: input, shape index: {}]
  %s3 = inlined_call_operand.vmem [shape: f32[2,32,32], index: 3, kind: input, shape index: {}]
  %s4 = inlined_call_operand.vmem [shape: bf16[128,1408], index: 4, kind: input, shape index: {}]
  %s5 = inlined_call_operand.vmem [shape: bf16[128,2048], index: 5, kind: input, shape index: {}]
  %s6 = inlined_call_operand.vmem [shape: bf16[2048,128], index: 6, kind: input, shape index: {}]
  %s7 = inlined_call_operand.vmem [shape: f32[1,2048], index: 7, kind: input, shape index: {}]
  %s8 = inlined_call_operand.vmem [shape: f32[16,384], index: 8, kind: input, shape index: {}]
  %s9 = inlined_call_operand.vmem [shape: f32[8,8,256], index: 9, kind: output, shape index: {}]
  %s10 = sld [smem:[#allocation0]]
  $region100: #{transformer_decoder_forward.1} parent=0
    _
  %s12 = ssub.s32 1, %s10
  %s13 = scalar_select 0, %s12, %s10
  $region1: #{transformer_decoder_forward.1} parent=0
    #allocation4 [shape = 'u8[262144]{0}', space=vmem, size = 0x40000, scoped, tag = 'input window, operand 5']
    loop: start=0, step=1, limit=10
    $region2: #{transformer_decoder_forward.1} parent=1 // loop_pre_header
      _
    $region3: #{transformer_decoder_forward.1} parent=1 // loop_header
      %s15 = sphi 0, %s19
      %p16 = scmp.ge.s32.totalorder %s15, 10
      %s22 = sphi 0, %s34
      %s23 = sphi 0, %s30
      %s24 = sphi 0, %s22
      %s25 = sphi 0, %s23
      %s26 = sphi 0, %s24
      %s27 = sphi 0, %s25
      %s37 = sphi 0, %s39
      %s40 = sphi 0, %s37
      %s41 = sphi 0, %s40
      %s57 = sphi 0, %s41
      %s63 = sphi 0, %s65
      %s66 = sphi 0, %s63
      %s67 = sphi 0, %s66
      %s83 = sphi 0, %s67
      %s89 = sphi 0, %s91
      %s92 = sphi 0, %s89
      %s93 = sphi 0, %s92
      %s109 = sphi 0, %s93
      %s113 = sphi 0, %s113
      %s115 = sphi 0, %s113
      %s116 = sphi 0, %s115
      %s130 = sphi 0, %s116
      %s134 = sphi 0, %s134
      %s136 = sphi 0, %s134
      %s137 = sphi 0, %s136
      %s151 = sphi 0, %s137
      %s157 = sphi 0, %s159
      %s160 = sphi 0, %s157
      %s161 = sphi 0, %s160
      %s177 = sphi 0, %s161
      %s183 = sphi 0, %s185
      %s186 = sphi 0, %s183
      %s187 = sphi 0, %s186
      %s203 = sphi 0, %s187
      %s209 = sphi 0, %s211
      %s212 = sphi 0, %s209
      %s213 = sphi 0, %s212
      %s229 = sphi 0, %s213
      %s233 = sphi 0, %s233
      %s235 = sphi 0, %s233
      %s236 = sphi 0, %s235
      %s250 = sphi 0, %s236
      %s256 = sphi 0, %s258
      %s259 = sphi 0, %s256
      %s260 = sphi 0, %s259
      %s276 = sphi 0, %s260
    $region4: #{transformer_decoder_forward.1} parent=1 // loop_header_branch
      %18 = sbr.rel (%p16) target = $region8
    $region5: #{transformer_decoder_forward.1} parent=1 // loop_body
      %s20 = ssub.s32 %s15, 1
      %s21 = ssub.s32 %s15, 2
      %s28 = sadd.s32 1, %s23
      %p29 = scmp.ge.s32.totalorder %s28, 4
      %s30 = scalar_select %p29, 0, %s28
      %s31 = sadd.s32 1, %s22
      %s32 = scalar_select %p29, %s31, %s22
      %p33 = scmp.ge.s32.totalorder %s32, 2
      %s34 = scalar_select %p33, 0, %s32
      %s35 = ssub.s32 %s22, %s34
      %p36 = scmp.eq.s32.totalorder %s35, 0
      %s38 = sadd.s32 %s37, 1
      %s39 = scalar_select %p36, %s37, %s38
      %p42 = pneg %p36
      %p43 = scmp.eq.s32.totalorder %s15, 7
      %p44 = por %p42, %p43
      %p45 = scmp.ne.s32.totalorder %s37, %s40
      %p46 = scmp.eq.s32.totalorder %s15, 0
      %p47 = por %p45, %p46
      %p48 = scmp.ne.s32.totalorder %s37, %s40
      %p49 = scmp.eq.s32.totalorder %s20, 7
      %p50 = por %p48, %p49
      %p51 = scmp.ne.s32.totalorder %s40, %s41
      %p52 = scmp.eq.s32.totalorder %s20, 0
      %p53 = por %p51, %p52
      %p54 = scmp.ne.s32.totalorder %s40, %s41
      %p55 = scmp.eq.s32.totalorder %s21, 7
      %p56 = por %p54, %p55
      %p58 = scmp.ne.s32.totalorder %s41, %s57
      %p59 = scmp.eq.s32.totalorder %s21, 0
      %p60 = por %p58, %p59
      %s61 = ssub.s32 %s22, %s34
      %p62 = scmp.eq.s32.totalorder %s61, 0
      %s64 = sadd.s32 %s63, 1
      %s65 = scalar_select %p62, %s63, %s64
      %p68 = pneg %p62
      %p69 = scmp.eq.s32.totalorder %s15, 7
      %p70 = por %p68, %p69
      %p71 = scmp.ne.s32.totalorder %s63, %s66
      %p72 = scmp.eq.s32.totalorder %s15, 0
      %p73 = por %p71, %p72
      %p74 = scmp.ne.s32.totalorder %s63, %s66
      %p75 = scmp.eq.s32.totalorder %s20, 7
      %p76 = por %p74, %p75
      %p77 = scmp.ne.s32.totalorder %s66, %s67
      %p78 = scmp.eq.s32.totalorder %s20, 0
      %p79 = por %p77, %p78
      %p80 = scmp.ne.s32.totalorder %s66, %s67
      %p81 = scmp.eq.s32.totalorder %s21, 7
      %p82 = por %p80, %p81
      %p84 = scmp.ne.s32.totalorder %s67, %s83
      %p85 = scmp.eq.s32.totalorder %s21, 0
      %p86 = por %p84, %p85
      %s87 = ssub.s32 %s22, %s34
      %p88 = scmp.eq.s32.totalorder %s87, 0
      %s90 = sadd.s32 %s89, 1
      %s91 = scalar_select %p88, %s89, %s90
      %p94 = pneg %p88
      %p95 = scmp.eq.s32.totalorder %s15, 7
      %p96 = por %p94, %p95
      %p97 = scmp.ne.s32.totalorder %s89, %s92
      %p98 = scmp.eq.s32.totalorder %s15, 0
      %p99 = por %p97, %p98
      %p100 = scmp.ne.s32.totalorder %s89, %s92
      %p101 = scmp.eq.s32.totalorder %s20, 7
      %p102 = por %p100, %p101
      %p103 = scmp.ne.s32.totalorder %s92, %s93
      %p104 = scmp.eq.s32.totalorder %s20, 0
      %p105 = por %p103, %p104
      %p106 = scmp.ne.s32.totalorder %s92, %s93
      %p107 = scmp.eq.s32.totalorder %s21, 7
      %p108 = por %p106, %p107
      %p110 = scmp.ne.s32.totalorder %s93, %s109
      %p111 = scmp.eq.s32.totalorder %s21, 0
      %p112 = por %p110, %p111
      %s114 = sadd.s32 %s113, 1
      %p117 = scmp.eq.s32.totalorder %s15, 7
      %p118 = scmp.ne.s32.totalorder %s113, %s115
      %p119 = scmp.eq.s32.totalorder %s15, 0
      %p120 = por %p118, %p119
      %p121 = scmp.ne.s32.totalorder %s113, %s115
      %p122 = scmp.eq.s32.totalorder %s20, 7
      %p123 = por %p121, %p122
      %p124 = scmp.ne.s32.totalorder %s115, %s116
      %p125 = scmp.eq.s32.totalorder %s20, 0
      %p126 = por %p124, %p125
      %p127 = scmp.ne.s32.totalorder %s115, %s116
      %p128 = scmp.eq.s32.totalorder %s21, 7
      %p129 = por %p127, %p128
      %p131 = scmp.ne.s32.totalorder %s116, %s130
      %p132 = scmp.eq.s32.totalorder %s21, 0
      %p133 = por %p131, %p132
      %s135 = sadd.s32 %s134, 1
      %p138 = scmp.eq.s32.totalorder %s15, 7
      %p139 = scmp.ne.s32.totalorder %s134, %s136
      %p140 = scmp.eq.s32.totalorder %s15, 0
      %p141 = por %p139, %p140
      %p142 = scmp.ne.s32.totalorder %s134, %s136
      %p143 = scmp.eq.s32.totalorder %s20, 7
      %p144 = por %p142, %p143
      %p145 = scmp.ne.s32.totalorder %s136, %s137
      %p146 = scmp.eq.s32.totalorder %s20, 0
      %p147 = por %p145, %p146
      %p148 = scmp.ne.s32.totalorder %s136, %s137
      %p149 = scmp.eq.s32.totalorder %s21, 7
      %p150 = por %p148, %p149
      %p152 = scmp.ne.s32.totalorder %s137, %s151
      %p153 = scmp.eq.s32.totalorder %s21, 0
      %p154 = por %p152, %p153
      %s155 = ssub.s32 %s23, %s30
      %p156 = scmp.eq.s32.totalorder %s155, 0
      %s158 = sadd.s32 %s157, 1
      %s159 = scalar_select %p156, %s157, %s158
      %p162 = pneg %p156
      %p163 = scmp.eq.s32.totalorder %s15, 7
      %p164 = por %p162, %p163
      %p165 = scmp.ne.s32.totalorder %s157, %s160
      %p166 = scmp.eq.s32.totalorder %s15, 0
      %p167 = por %p165, %p166
      %p168 = scmp.ne.s32.totalorder %s157, %s160
      %p169 = scmp.eq.s32.totalorder %s20, 7
      %p170 = por %p168, %p169
      %p171 = scmp.ne.s32.totalorder %s160, %s161
      %p172 = scmp.eq.s32.totalorder %s20, 0
      %p173 = por %p171, %p172
      %p174 = scmp.ne.s32.totalorder %s160, %s161
      %p175 = scmp.eq.s32.totalorder %s21, 7
      %p176 = por %p174, %p175
      %p178 = scmp.ne.s32.totalorder %s161, %s177
      %p179 = scmp.eq.s32.totalorder %s21, 0
      %p180 = por %p178, %p179
      %s181 = ssub.s32 %s23, %s30
      %p182 = scmp.eq.s32.totalorder %s181, 0
      %s184 = sadd.s32 %s183, 1
      %s185 = scalar_select %p182, %s183, %s184
      %p188 = pneg %p182
      %p189 = scmp.eq.s32.totalorder %s15, 7
      %p190 = por %p188, %p189
      %p191 = scmp.ne.s32.totalorder %s183, %s186
      %p192 = scmp.eq.s32.totalorder %s15, 0
      %p193 = por %p191, %p192
      %p194 = scmp.ne.s32.totalorder %s183, %s186
      %p195 = scmp.eq.s32.totalorder %s20, 7
      %p196 = por %p194, %p195
      %p197 = scmp.ne.s32.totalorder %s186, %s187
      %p198 = scmp.eq.s32.totalorder %s20, 0
      %p199 = por %p197, %p198
      %p200 = scmp.ne.s32.totalorder %s186, %s187
      %p201 = scmp.eq.s32.totalorder %s21, 7
      %p202 = por %p200, %p201
      %p204 = scmp.ne.s32.totalorder %s187, %s203
      %p205 = scmp.eq.s32.totalorder %s21, 0
      %p206 = por %p204, %p205
      %s207 = ssub.s32 %s23, %s30
      %p208 = scmp.eq.s32.totalorder %s207, 0
      %s210 = sadd.s32 %s209, 1
      %s211 = scalar_select %p208, %s209, %s210
      %p214 = pneg %p208
      %p215 = scmp.eq.s32.totalorder %s15, 7
      %p216 = por %p214, %p215
      %p217 = scmp.ne.s32.totalorder %s209, %s212
      %p218 = scmp.eq.s32.totalorder %s15, 0
      %p219 = por %p217, %p218
      %p220 = scmp.ne.s32.totalorder %s209, %s212
      %p221 = scmp.eq.s32.totalorder %s20, 7
      %p222 = por %p220, %p221
      %p223 = scmp.ne.s32.totalorder %s212, %s213
      %p224 = scmp.eq.s32.totalorder %s20, 0
      %p225 = por %p223, %p224
      %p226 = scmp.ne.s32.totalorder %s212, %s213
      %p227 = scmp.eq.s32.totalorder %s21, 7
      %p228 = por %p226, %p227
      %p230 = scmp.ne.s32.totalorder %s213, %s229
      %p231 = scmp.eq.s32.totalorder %s21, 0
      %p232 = por %p230, %p231
      %s234 = sadd.s32 %s233, 1
      %p237 = scmp.eq.s32.totalorder %s15, 7
      %p238 = scmp.ne.s32.totalorder %s233, %s235
      %p239 = scmp.eq.s32.totalorder %s15, 0
      %p240 = por %p238, %p239
      %p241 = scmp.ne.s32.totalorder %s233, %s235
      %p242 = scmp.eq.s32.totalorder %s20, 7
      %p243 = por %p241, %p242
      %p244 = scmp.ne.s32.totalorder %s235, %s236
      %p245 = scmp.eq.s32.totalorder %s20, 0
      %p246 = por %p244, %p245
      %p247 = scmp.ne.s32.totalorder %s235, %s236
      %p248 = scmp.eq.s32.totalorder %s21, 7
      %p249 = por %p247, %p248
      %p251 = scmp.ne.s32.totalorder %s236, %s250
      %p252 = scmp.eq.s32.totalorder %s21, 0
      %p253 = por %p251, %p252
      %s254 = ssub.s32 %s22, %s34
      %p255 = scmp.eq.s32.totalorder %s254, 0
      %s257 = sadd.s32 %s256, 1
      %s258 = scalar_select %p255, %s256, %s257
      %p261 = pneg %p255
      %p262 = scmp.eq.s32.totalorder %s15, 7
      %p263 = por %p261, %p262
      %p264 = scmp.ne.s32.totalorder %s256, %s259
      %p265 = scmp.eq.s32.totalorder %s15, 0
      %p266 = por %p264, %p265
      %p267 = scmp.ne.s32.totalorder %s256, %s259
      %p268 = scmp.eq.s32.totalorder %s20, 7
      %p269 = por %p267, %p268
      %p270 = scmp.ne.s32.totalorder %s259, %s260
      %p271 = scmp.eq.s32.totalorder %s20, 0
      %p272 = por %p270, %p271
      %p273 = scmp.ne.s32.totalorder %s259, %s260
      %p274 = scmp.eq.s32.totalorder %s21, 7
      %p275 = por %p273, %p274
      %p277 = scmp.ne.s32.totalorder %s260, %s276
      %p278 = scmp.eq.s32.totalorder %s21, 0
      %p279 = por %p277, %p278
      %p280 = scmp.le.s32.totalorder 1, %s15
      %p281 = scmp.lt.s32.totalorder %s15, 9
      %p282 = pnand %p280, %p281
      %p283 = pneg %p282
      // Predicated region
      $region9: #{transformer_decoder_forward.1} parent=5 // pred_check
        _
      $region10: #{transformer_decoder_forward.1} parent=5 // pred_check_branch
        %285 = sbr.rel (%p282) target = $region12
      $region11: #{transformer_decoder_forward.1} parent=5 // pred_region
        %s286 = ssub.s32 %s15, 1
        // Predicated region
        $region13: #{transformer_decoder_forward.1} parent=11 // pred_check
          %p287 = pneg %p126
        $region14: #{transformer_decoder_forward.1} parent=11 // pred_check_branch
          %289 = sbr.rel (%p287) target = $region16
        $region15: #{transformer_decoder_forward.1} parent=11 // pred_region
          _
        $region16: #{transformer_decoder_forward.1} parent=11 // pred_fallthru
          _
        // Predicated region
        $region17: #{transformer_decoder_forward.1} parent=11 // pred_check
          %p290 = pneg %p147
        $region18: #{transformer_decoder_forward.1} parent=11 // pred_check_branch
          %292 = sbr.rel (%p290) target = $region20
        $region19: #{transformer_decoder_forward.1} parent=11 // pred_region
          _
        $region20: #{transformer_decoder_forward.1} parent=11 // pred_fallthru
          _
        // Predicated region
        $region21: #{transformer_decoder_forward.1} parent=11 // pred_check
          %p293 = pneg %p246
        $region22: #{transformer_decoder_forward.1} parent=11 // pred_check_branch
          %295 = sbr.rel (%p293) target = $region24
        $region23: #{transformer_decoder_forward.1} parent=11 // pred_region
          _
        $region24: #{transformer_decoder_forward.1} parent=11 // pred_fallthru
          _
      $region12: #{transformer_decoder_forward.1} parent=5 // pred_fallthru
        _
      %p296 = scmp.lt.s32.totalorder %s15, 8
      // Predicated region
      $region25: #{transformer_decoder_forward.1} parent=5 // pred_check
        %p297 = pneg %p296
      $region26: #{transformer_decoder_forward.1} parent=5 // pred_check_branch
        %299 = sbr.rel (%p297) target = $region28
      $region27: #{transformer_decoder_forward.1} parent=5 // pred_region
        // Predicated region
        $region29: #{transformer_decoder_forward.1} parent=27 // pred_check
          %p300 = pneg %p47
        $region30: #{transformer_decoder_forward.1} parent=27 // pred_check_branch
          %302 = sbr.rel (%p300) target = $region32
        $region31: #{transformer_decoder_forward.1} parent=27 // pred_region
          %s303 = smul.u32 4, %s22
          %p304 = scmp.lt.s32.totalorder %s303, 7
          %s305 = scalar_select %p304, %s303, 7
          %s306 = smul.addr %s305, 8
          %s307 = scalar_lea.vmem %s0, %s306
          %s308 = smul.u32 4, %s22
        $region32: #{transformer_decoder_forward.1} parent=27 // pred_fallthru
          _
        // Predicated region
        $region33: #{transformer_decoder_forward.1} parent=27 // pred_check
          %p309 = pneg %p73
        $region34: #{transformer_decoder_forward.1} parent=27 // pred_check_branch
          %311 = sbr.rel (%p309) target = $region36
        $region35: #{transformer_decoder_forward.1} parent=27 // pred_region
          %s312 = smul.u32 4, %s22
          %p313 = scmp.lt.s32.totalorder %s312, 7
          %s314 = scalar_select %p313, %s312, 7
          %s315 = smul.addr %s314, 8
          %s316 = scalar_lea.vmem %s1, %s315
          %s317 = smul.u32 4, %s22
        $region36: #{transformer_decoder_forward.1} parent=27 // pred_fallthru
          _
        // Predicated region
        $region37: #{transformer_decoder_forward.1} parent=27 // pred_check
          %p318 = pneg %p99
        $region38: #{transformer_decoder_forward.1} parent=27 // pred_check_branch
          %320 = sbr.rel (%p318) target = $region40
        $region39: #{transformer_decoder_forward.1} parent=27 // pred_region
          %s321 = smul.u32 4, %s22
          %p322 = scmp.lt.s32.totalorder %s321, 7
          %s323 = scalar_select %p322, %s321, 7
          %s324 = scalar_lea.vmem %s2, %s323
          %s325 = smul.u32 4, %s22
        $region40: #{transformer_decoder_forward.1} parent=27 // pred_fallthru
          _
        // Predicated region
        $region41: #{transformer_decoder_forward.1} parent=27 // pred_check
          %p326 = pneg %p167
        $region42: #{transformer_decoder_forward.1} parent=27 // pred_check_branch
          %328 = sbr.rel (%p326) target = $region44
        $region43: #{transformer_decoder_forward.1} parent=27 // pred_region
          %s329 = sand.u32 %s157, 1
          %s330 = sand.u32 %s157, 1
          %s331 = smul.addr %s330, 256
          %s332 = scalar_lea.vmem [#allocation4], %s331
          %s333 = smul.u32 4, %s23
          %s334 = smul.addr %s333, 4
          %s335 = scalar_lea.vmem %s5, %s334
          // Predicated region
          $region45: #{transformer_decoder_forward.1} parent=43 // pred_check
            _
          $region46: #{transformer_decoder_forward.1} parent=43 // pred_check_branch
            %337 = sbr.rel (0) target = $region48
          $region47: #{transformer_decoder_forward.1} parent=43 // pred_region
            // Predicated region
            $region49: #{transformer_decoder_forward.1} parent=47 // pred_check
              _
            $region50: #{transformer_decoder_forward.1} parent=47 // pred_check_branch
              %339 = sbr.rel (0) target = $region52
            $region51: #{transformer_decoder_forward.1} parent=47 // pred_region
              loop: start=0, step=1, limit=1
              $region53: #{transformer_decoder_forward.1} parent=51 // loop_pre_header
                _
              $region54: #{transformer_decoder_forward.1} parent=51 // loop_header
                %s341 = sphi 0, %s345
                %p342 = scmp.ge.s32.totalorder %s341, 1
                %s346 = sphi %s335, %s335
                %s347 = sphi %s332, %s332
              $region55: #{transformer_decoder_forward.1} parent=51 // loop_header_branch
                %344 = sbr.rel (%p342) target = $region59
              $region56: #{transformer_decoder_forward.1} parent=51 // loop_body
                %v348 = vld [vmem:[%s346] sm:$0xff]
                %349 = vst [vmem:[%s347] sm:$0xff] %v348
                %v350 = vld [vmem:[%s346 + $0x8] sm:$0xff]
                %351 = vst [vmem:[%s347 + $0x8] sm:$0xff] %v350
                %v352 = vld [vmem:[%s346 + $0x40] sm:$0xff]
                %353 = vst [vmem:[%s347 + $0x10] sm:$0xff] %v352
                %v354 = vld [vmem:[%s346 + $0x48] sm:$0xff]
                %355 = vst [vmem:[%s347 + $0x18] sm:$0xff] %v354
                %v356 = vld [vmem:[%s346 + $0x80] sm:$0xff]
                %357 = vst [vmem:[%s347 + $0x20] sm:$0xff] %v356
                %v358 = vld [vmem:[%s346 + $0x88] sm:$0xff]
                %359 = vst [vmem:[%s347 + $0x28] sm:$0xff] %v358
                %v360 = vld [vmem:[%s346 + $0xc0] sm:$0xff]
                %361 = vst [vmem:[%s347 + $0x30] sm:$0xff] %v360
                %v362 = vld [vmem:[%s346 + $0xc8] sm:$0xff]
                %363 = vst [vmem:[%s347 + $0x38] sm:$0xff] %v362
                %v364 = vld [vmem:[%s346 + $0x100] sm:$0xff]
                %365 = vst [vmem:[%s347 + $0x40] sm:$0xff] %v364
                %v366 = vld [vmem:[%s346 + $0x108] sm:$0xff]
                %367 = vst [vmem:[%s347 + $0x48] sm:$0xff] %v366
                %v368 = vld [vmem:[%s346 + $0x140] sm:$0xff]
                %369 = vst [vmem:[%s347 + $0x50] sm:$0xff] %v368
                %v370 = vld [vmem:[%s346 + $0x148] sm:$0xff]
                %371 = vst [vmem:[%s347 + $0x58] sm:$0xff] %v370
                %v372 = vld [vmem:[%s346 + $0x180] sm:$0xff]
                %373 = vst [vmem:[%s347 + $0x60] sm:$0xff] %v372
                %v374 = vld [vmem:[%s346 + $0x188] sm:$0xff]
                %375 = vst [vmem:[%s347 + $0x68] sm:$0xff] %v374
                %v376 = vld [vmem:[%s346 + $0x1c0] sm:$0xff]
                %377 = vst [vmem:[%s347 + $0x70] sm:$0xff] %v376
                %v378 = vld [vmem:[%s346 + $0x1c8] sm:$0xff]
                %379 = vst [vmem:[%s347 + $0x78] sm:$0xff] %v378
                %v380 = vld [vmem:[%s346 + $0x200] sm:$0xff]
                %381 = vst [vmem:[%s347 + $0x80] sm:$0xff] %v380
                %v382 = vld [vmem:[%s346 + $0x208] sm:$0xff]
                %383 = vst [vmem:[%s347 + $0x88] sm:$0xff] %v382
                %v384 = vld [vmem:[%s346 + $0x240] sm:$0xff]
                %385 = vst [vmem:[%s347 + $0x90] sm:$0xff] %v384
                %v386 = vld [vmem:[%s346 + $0x248] sm:$0xff]
                %387 = vst [vmem:[%s347 + $0x98] sm:$0xff] %v386
                %v388 = vld [vmem:[%s346 + $0x280] sm:$0xff]
                %389 = vst [vmem:[%s347 + $0xa0] sm:$0xff] %v388
                %v390 = vld [vmem:[%s346 + $0x288] sm:$0xff]
                %391 = vst [vmem:[%s347 + $0xa8] sm:$0xff] %v390
                %v392 = vld [vmem:[%s346 + $0x2c0] sm:$0xff]
                %393 = vst [vmem:[%s347 + $0xb0] sm:$0xff] %v392
                %v394 = vld [vmem:[%s346 + $0x2c8] sm:$0xff]
                %395 = vst [vmem:[%s347 + $0xb8] sm:$0xff] %v394
                %v396 = vld [vmem:[%s346 + $0x300] sm:$0xff]
                %397 = vst [vmem:[%s347 + $0xc0] sm:$0xff] %v396
                %v398 = vld [vmem:[%s346 + $0x308] sm:$0xff]
                %399 = vst [vmem:[%s347 + $0xc8] sm:$0xff] %v398
                %v400 = vld [vmem:[%s346 + $0x340] sm:$0xff]
                %401 = vst [vmem:[%s347 + $0xd0] sm:$0xff] %v400
                %v402 = vld [vmem:[%s346 + $0x348] sm:$0xff]
                %403 = vst [vmem:[%s347 + $0xd8] sm:$0xff] %v402
                %v404 = vld [vmem:[%s346 + $0x380] sm:$0xff]
                %405 = vst [vmem:[%s347 + $0xe0] sm:$0xff] %v404
                %v406 = vld [vmem:[%s346 + $0x388] sm:$0xff]
                %407 = vst [vmem:[%s347 + $0xe8] sm:$0xff] %v406
                %v408 = vld [vmem:[%s346 + $0x3c0] sm:$0xff]
                %409 = vst [vmem:[%s347 + $0xf0] sm:$0xff] %v408
                %v410 = vld [vmem:[%s346 + $0x3c8] sm:$0xff]
                %411 = vst [vmem:[%s347 + $0xf8] sm:$0xff] %v410
              $region57: #{transformer_decoder_forward.1} parent=51 // loop_footer
                %s345 = sadd.s32 1, %s341
              $region58: #{transformer_decoder_forward.1} parent=51 // loop_footer_branch
                %340 = sbr.rel target = $region54
              $region59: #{transformer_decoder_forward.1} parent=51 // loop_exit
                _
            $region52: #{transformer_decoder_forward.1} parent=47 // pred_fallthru
              _
            // Predicated region
            $region60: #{transformer_decoder_forward.1} parent=47 // pred_check
              _
            $region61: #{transformer_decoder_forward.1} parent=47 // pred_check_branch
              %413 = sbr.rel target = $region63
            $region62: #{transformer_decoder_forward.1} parent=47 // pred_region
              _
            $region63: #{transformer_decoder_forward.1} parent=47 // pred_fallthru
              _
          $region48: #{transformer_decoder_forward.1} parent=43 // pred_fallthru
            _
          %414 = vnop
        $region44: #{transformer_decoder_forward.1} parent=27 // pred_fallthru
          _
        // Predicated region
        $region64: #{transformer_decoder_forward.1} parent=27 // pred_check
          %p415 = pneg %p193
        $region65: #{transformer_decoder_forward.1} parent=27 // pred_check_branch
          %417 = sbr.rel (%p415) target = $region67
        $region66: #{transformer_decoder_forward.1} parent=27 // pred_region
          %s418 = smul.u32 64, %s23
          %p419 = scmp.lt.s32.totalorder %s418, 255
          %s420 = scalar_select %p419, %s418, 255
          %s421 = smul.addr %s420, 4
          %s422 = scalar_lea.vmem %s6, %s421
          %s423 = smul.u32 64, %s23
        $region67: #{transformer_decoder_forward.1} parent=27 // pred_fallthru
          _
        // Predicated region
        $region68: #{transformer_decoder_forward.1} parent=27 // pred_check
          %p424 = pneg %p219
        $region69: #{transformer_decoder_forward.1} parent=27 // pred_check_branch
          %426 = sbr.rel (%p424) target = $region71
        $region70: #{transformer_decoder_forward.1} parent=27 // pred_region
          %s427 = smul.u32 4, %s23
          %p428 = scmp.lt.s32.totalorder %s427, 15
          %s429 = scalar_select %p428, %s427, 15
          %s430 = scalar_lea.vmem %s7, %s429
          %s431 = smul.u32 4, %s23
        $region71: #{transformer_decoder_forward.1} parent=27 // pred_fallthru
          _
      $region28: #{transformer_decoder_forward.1} parent=5 // pred_fallthru
        _
      %p432 = scmp.le.s32.totalorder 1, %s15
      %p433 = scmp.lt.s32.totalorder %s15, 9
      %p434 = pnand %p432, %p433
      %p435 = pneg %p434
      // Predicated region
      $region72: #{transformer_decoder_forward.1} parent=5 // pred_check
        _
      $region73: #{transformer_decoder_forward.1} parent=5 // pred_check_branch
        %437 = sbr.rel (%p434) target = $region75
      $region74: #{transformer_decoder_forward.1} parent=5 // pred_region
        %s438 = ssub.s32 %s15, 1
        %s439 = sand.u32 %s160, 1
        %s440 = sand.u32 %s160, 1
        %s441 = smul.addr %s440, 256
        %s442 = scalar_lea.vmem [#allocation4], %s441
        // Predicated region
        $region76: #{transformer_decoder_forward.1} parent=74 // pred_check
          %p443 = pneg %p173
        $region77: #{transformer_decoder_forward.1} parent=74 // pred_check_branch
          %445 = sbr.rel (%p443) target = $region79
        $region78: #{transformer_decoder_forward.1} parent=74 // pred_region
          _
        $region79: #{transformer_decoder_forward.1} parent=74 // pred_fallthru
          _
        %s446 = smul.u32 4, %s24
        %p447 = scmp.lt.s32.totalorder %s446, 7
        %s448 = scalar_select %p447, %s446, 7
        %s449 = smul.addr %s448, 8
        %s450 = scalar_lea.vmem %s0, %s449
        %p451 = pneg %p53
        %p452 = pneg %p50
        %s453 = smul.u32 4, %s24
        %p454 = scmp.lt.s32.totalorder %s453, 7
        %s455 = scalar_select %p454, %s453, 7
        %s456 = smul.addr %s455, 8
        %s457 = scalar_lea.vmem %s1, %s456
        %p458 = pneg %p79
        %p459 = pneg %p76
        %s460 = smul.u32 4, %s24
        %p461 = scmp.lt.s32.totalorder %s460, 7
        %s462 = scalar_select %p461, %s460, 7
        %s463 = scalar_lea.vmem %s2, %s462
        %p464 = pneg %p105
        %p465 = pneg %p102
        %p466 = pneg %p126
        %p467 = pneg %p123
        %p468 = pneg %p147
        %p469 = pneg %p144
        %s470 = sand.u32 %s160, 1
        %s471 = sand.u32 %s160, 1
        %s472 = smul.addr %s471, 256
        %s473 = scalar_lea.vmem [#allocation4], %s472
        %p474 = pneg %p173
        %p475 = pneg %p170
        %s476 = smul.u32 64, %s25
        %p477 = scmp.lt.s32.totalorder %s476, 255
        %s478 = scalar_select %p477, %s476, 255
        %s479 = smul.addr %s478, 4
        %s480 = scalar_lea.vmem %s6, %s479
        %p481 = pneg %p199
        %p482 = pneg %p196
        %s483 = smul.u32 4, %s25
        %p484 = scmp.lt.s32.totalorder %s483, 15
        %s485 = scalar_select %p484, %s483, 15
        %s486 = scalar_lea.vmem %s7, %s485
        %p487 = pneg %p225
        %p488 = pneg %p222
        %p489 = pneg %p246
        %p490 = pneg %p243
        %p491 = pneg %p272
        %p492 = pneg %p269
        %s493 = smul.u32 4, %s24
        %p494 = scmp.lt.s32.totalorder %s493, 7
        %s495 = scalar_select %p494, %s493, 7
        %s496 = smul.addr %s495, 2
        %s497 = smul.addr %s496, 8
        %s498 = scalar_lea.vmem %s9, %s497
        %s499 = smul.u32 4, %s24
        %p500 = scmp.lt.s32.totalorder %s499, 7
        %s501 = scalar_select %p500, %s499, 7
        %s502 = smul.addr %s501, 8
        %s503 = scalar_lea.vmem %s0, %s502
        %s504 = smul.u32 4, %s24
        %s505 = smul.u32 4, %s24
        %p506 = scmp.lt.s32.totalorder %s505, 7
        %s507 = scalar_select %p506, %s505, 7
        %s508 = smul.addr %s507, 8
        %s509 = scalar_lea.vmem %s1, %s508
        %s510 = smul.u32 4, %s24
        %s511 = smul.u32 4, %s24
        %p512 = scmp.lt.s32.totalorder %s511, 7
        %s513 = scalar_select %p512, %s511, 7
        %s514 = scalar_lea.vmem %s2, %s513
        %s515 = smul.u32 4, %s24
        %s516 = smul.u32 4, %s25
        %s517 = smul.u32 64, %s25
        %p518 = scmp.lt.s32.totalorder %s517, 255
        %s519 = scalar_select %p518, %s517, 255
        %s520 = smul.addr %s519, 4
        %s521 = scalar_lea.vmem %s6, %s520
        %s522 = smul.u32 64, %s25
        %s523 = smul.u32 4, %s25
        %p524 = scmp.lt.s32.totalorder %s523, 15
        %s525 = scalar_select %p524, %s523, 15
        %s526 = scalar_lea.vmem %s7, %s525
        %s527 = smul.u32 4, %s25
        %s528 = smul.u32 4, %s24
        %p529 = scmp.lt.s32.totalorder %s528, 7
        %s530 = scalar_select %p529, %s528, 7
        %s531 = smul.addr %s530, 2
        %s532 = smul.addr %s531, 8
        %s533 = scalar_lea.vmem %s9, %s532
        %s534 = smul.u32 4, %s24
        %v536 = vld [vmem:[%s8] sm:$0xff]
        %v537 = vld [vmem:[%s8 + $0x18] sm:$0xff]
        %v538 = vld [vmem:[%s8 + $0x20] sm:$0xff]
        %v539 = vld [vmem:[%s8 + $0x28] sm:$0xff]
        %p540 = scmp.eq.s32.totalorder %s25, 0
        // Predicated region
        $region80: #{transformer_decoder_forward.1} parent=74 // pred_check
          %p541 = pneg %p540
        $region81: #{transformer_decoder_forward.1} parent=74 // pred_check_branch
          %543 = sbr.rel (%p541) target = $region83
        $region82: #{transformer_decoder_forward.1} parent=74 // pred_region
          %v544 = vld [vmem:[%s4] sm:$0xf]
          %v545 = vld [vmem:[%s4 + $0x2c] sm:$0xf]
          %v546 = vld [vmem:[%s4 + $0x58] sm:$0xf]
          %v547 = vld [vmem:[%s4 + $0x84] sm:$0xf]
          %v548 = vld [vmem:[%s4 + $0xb0] sm:$0xf]
          %v549 = vld [vmem:[%s4 + $0xdc] sm:$0xf]
          %v550 = vld [vmem:[%s4 + $0x108] sm:$0xf]
          %v551 = vld [vmem:[%s4 + $0x134] sm:$0xf]
          %v552 = vld [vmem:[%s4 + $0x160] sm:$0xf]
          %v553 = vld [vmem:[%s4 + $0x18c] sm:$0xf]
          %v554 = vld [vmem:[%s4 + $0x1b8] sm:$0xf]
          %v555 = vld [vmem:[%s4 + $0x1e4] sm:$0xf]
          %v556 = vld [vmem:[%s4 + $0x210] sm:$0xf]
          %v557 = vld [vmem:[%s4 + $0x23c] sm:$0xf]
          %v558 = vld [vmem:[%s4 + $0x268] sm:$0xf]
          %v559 = vld [vmem:[%s4 + $0x294] sm:$0xf]
          %v560 = vld [vmem:[%s4 + $0x4] sm:$0xff]
          %v561 = vld [vmem:[%s4 + $0xc] sm:$0xf]
          %v562 = vld [vmem:[%s4 + $0x30] sm:$0xff]
          %v563 = vld [vmem:[%s4 + $0x38] sm:$0xf]
          %v564 = vld [vmem:[%s4 + $0x5c] sm:$0xff]
          %v565 = vld [vmem:[%s4 + $0x64] sm:$0xf]
          %v566 = vld [vmem:[%s4 + $0x88] sm:$0xff]
          %v567 = vld [vmem:[%s4 + $0x90] sm:$0xf]
          %v568 = vld [vmem:[%s4 + $0xb4] sm:$0xff]
          %v569 = vld [vmem:[%s4 + $0xbc] sm:$0xf]
          %v570 = vld [vmem:[%s4 + $0xe0] sm:$0xff]
          %v571 = vld [vmem:[%s4 + $0xe8] sm:$0xf]
          %v572 = vld [vmem:[%s4 + $0x10c] sm:$0xff]
          %v573 = vld [vmem:[%s4 + $0x114] sm:$0xf]
          %v574 = vld [vmem:[%s4 + $0x138] sm:$0xff]
          %v575 = vld [vmem:[%s4 + $0x140] sm:$0xf]
          %v576 = vld [vmem:[%s4 + $0x164] sm:$0xff]
          %v577 = vld [vmem:[%s4 + $0x16c] sm:$0xf]
          %v578 = vld [vmem:[%s4 + $0x190] sm:$0xff]
          %v579 = vld [vmem:[%s4 + $0x198] sm:$0xf]
          %v580 = vld [vmem:[%s4 + $0x1bc] sm:$0xff]
          %v581 = vld [vmem:[%s4 + $0x1c4] sm:$0xf]
          %v582 = vld [vmem:[%s4 + $0x1e8] sm:$0xff]
          %v583 = vld [vmem:[%s4 + $0x1f0] sm:$0xf]
          %v584 = vld [vmem:[%s4 + $0x214] sm:$0xff]
          %v585 = vld [vmem:[%s4 + $0x21c] sm:$0xf]
          %v586 = vld [vmem:[%s4 + $0x240] sm:$0xff]
          %v587 = vld [vmem:[%s4 + $0x248] sm:$0xf]
          %v588 = vld [vmem:[%s4 + $0x26c] sm:$0xff]
          %v589 = vld [vmem:[%s4 + $0x274] sm:$0xf]
          %v590 = vld [vmem:[%s4 + $0x298] sm:$0xff]
          %v591 = vld [vmem:[%s4 + $0x2a0] sm:$0xf]
          %v592 = vld [vmem:[%s4 + $0x10] sm:$0xff]
          %v593 = vld [vmem:[%s4 + $0x18] sm:$0xf]
          %v594 = vld [vmem:[%s4 + $0x3c] sm:$0xff]
          %v595 = vld [vmem:[%s4 + $0x44] sm:$0xf]
          %v596 = vld [vmem:[%s4 + $0x68] sm:$0xff]
          %v597 = vld [vmem:[%s4 + $0x70] sm:$0xf]
          %v598 = vld [vmem:[%s4 + $0x94] sm:$0xff]
          %v599 = vld [vmem:[%s4 + $0x9c] sm:$0xf]
          %v600 = vld [vmem:[%s4 + $0xc0] sm:$0xff]
          %v601 = vld [vmem:[%s4 + $0xc8] sm:$0xf]
          %v602 = vld [vmem:[%s4 + $0xec] sm:$0xff]
          %v603 = vld [vmem:[%s4 + $0xf4] sm:$0xf]
          %v604 = vld [vmem:[%s4 + $0x118] sm:$0xff]
          %v605 = vld [vmem:[%s4 + $0x120] sm:$0xf]
          %v606 = vld [vmem:[%s4 + $0x144] sm:$0xff]
          %v607 = vld [vmem:[%s4 + $0x14c] sm:$0xf]
          %v608 = vld [vmem:[%s4 + $0x170] sm:$0xff]
          %v609 = vld [vmem:[%s4 + $0x178] sm:$0xf]
          %v610 = vld [vmem:[%s4 + $0x19c] sm:$0xff]
          %v611 = vld [vmem:[%s4 + $0x1a4] sm:$0xf]
          %v612 = vld [vmem:[%s4 + $0x1c8] sm:$0xff]
          %v613 = vld [vmem:[%s4 + $0x1d0] sm:$0xf]
          %v614 = vld [vmem:[%s4 + $0x1f4] sm:$0xff]
          %v615 = vld [vmem:[%s4 + $0x1fc] sm:$0xf]
          %v616 = vld [vmem:[%s4 + $0x220] sm:$0xff]
          %v617 = vld [vmem:[%s4 + $0x228] sm:$0xf]
          %v618 = vld [vmem:[%s4 + $0x24c] sm:$0xff]
          %v619 = vld [vmem:[%s4 + $0x254] sm:$0xf]
          %v620 = vld [vmem:[%s4 + $0x278] sm:$0xff]
          %v621 = vld [vmem:[%s4 + $0x280] sm:$0xf]
          %v622 = vld [vmem:[%s4 + $0x2a4] sm:$0xff]
          %v623 = vld [vmem:[%s4 + $0x2ac] sm:$0xf]
          %v624 = vld [vmem:[%s4 + $0x1c] sm:$0xf]
          %v625 = vld [vmem:[%s4 + $0x48] sm:$0xf]
          %v626 = vld [vmem:[%s4 + $0x74] sm:$0xf]
          %v627 = vld [vmem:[%s4 + $0xa0] sm:$0xf]
          %v628 = vld [vmem:[%s4 + $0xcc] sm:$0xf]
          %v629 = vld [vmem:[%s4 + $0xf8] sm:$0xf]
          %v630 = vld [vmem:[%s4 + $0x124] sm:$0xf]
          %v631 = vld [vmem:[%s4 + $0x150] sm:$0xf]
          %v632 = vld [vmem:[%s4 + $0x17c] sm:$0xf]
          %v633 = vld [vmem:[%s4 + $0x1a8] sm:$0xf]
          %v634 = vld [vmem:[%s4 + $0x1d4] sm:$0xf]
          %v635 = vld [vmem:[%s4 + $0x200] sm:$0xf]
          %v636 = vld [vmem:[%s4 + $0x22c] sm:$0xf]
          %v637 = vld [vmem:[%s4 + $0x258] sm:$0xf]
          %v638 = vld [vmem:[%s4 + $0x284] sm:$0xf]
          %v639 = vld [vmem:[%s4 + $0x2b0] sm:$0xf]
          %v640 = vld [vmem:[%s4 + $0x20] sm:$0xf]
          %v641 = vld [vmem:[%s4 + $0x4c] sm:$0xf]
          %v642 = vld [vmem:[%s4 + $0x78] sm:$0xf]
          %v643 = vld [vmem:[%s4 + $0xa4] sm:$0xf]
          %v644 = vld [vmem:[%s4 + $0xd0] sm:$0xf]
          %v645 = vld [vmem:[%s4 + $0xfc] sm:$0xf]
          %v646 = vld [vmem:[%s4 + $0x128] sm:$0xf]
          %v647 = vld [vmem:[%s4 + $0x154] sm:$0xf]
          %v648 = vld [vmem:[%s4 + $0x180] sm:$0xf]
          %v649 = vld [vmem:[%s4 + $0x1ac] sm:$0xf]
          %v650 = vld [vmem:[%s4 + $0x1d8] sm:$0xf]
          %v651 = vld [vmem:[%s4 + $0x204] sm:$0xf]
          %v652 = vld [vmem:[%s4 + $0x230] sm:$0xf]
          %v653 = vld [vmem:[%s4 + $0x25c] sm:$0xf]
          %v654 = vld [vmem:[%s4 + $0x288] sm:$0xf]
          %v655 = vld [vmem:[%s4 + $0x2b4] sm:$0xf]
          %v656 = vld [vmem:[%s3] sm:$0xff]
          %v657 = vld [vmem:[%s3 + $0x8] sm:$0xff]
          %v658 = vld [vmem:[%s3 + $0x10] sm:$0xff]
          %v659 = vld [vmem:[%s3 + $0x18] sm:$0xff]
          %s660 = scalar_lea.vmem %s3, 32
          %v661 = vld [vmem:[%s660] sm:$0xff]
          %v662 = vld [vmem:[%s660 + $0x8] sm:$0xff]
          %v663 = vld [vmem:[%s660 + $0x10] sm:$0xff]
          %v664 = vld [vmem:[%s660 + $0x18] sm:$0xff]
          %v665 = vld [vmem:[%s503] sm:$0xff]
          %v666 = vld [vmem:[%s503 + $0x8] sm:$0xff]
          %v667 = vld [vmem:[%s503 + $0x10] sm:$0xff]
          %v668 = vld [vmem:[%s503 + $0x18] sm:$0xff]
          %v669 = vpack.c.bf16 %v666, %v665
          %v670 = vpack.c.bf16 %v668, %v667
          %v671 = vlaneseq
          %v672 = vshrl.u32 %v671, 7
          %v673 = vsub.s32 0, %v672
          %v674 = vrot.slane %v536, %v673
          %v691 = vunpack.c.l.b16 %v544
          %v692 = vunpack.c.l.b16 %v545
          %v693 = vunpack.c.l.b16 %v546
          %v694 = vunpack.c.l.b16 %v547
          %v695 = vunpack.c.l.b16 %v548
          %v696 = vunpack.c.l.b16 %v549
          %v697 = vunpack.c.l.b16 %v550
          %v698 = vunpack.c.l.b16 %v551
          %v699 = vunpack.c.l.b16 %v552
          %v700 = vunpack.c.l.b16 %v553
          %v701 = vunpack.c.l.b16 %v554
          %v702 = vunpack.c.l.b16 %v555
          %v703 = vunpack.c.l.b16 %v556
          %v704 = vunpack.c.l.b16 %v557
          %v705 = vunpack.c.l.b16 %v558
          %v706 = vunpack.c.l.b16 %v559
          %v707 = vpack.c.b16 %v692, %v691
          %v708 = vpack.c.b16 %v694, %v693
          %v709 = vpack.c.b16 %v696, %v695
          %v710 = vpack.c.b16 %v698, %v697
          %v711 = vpack.c.b16 %v700, %v699
          %v712 = vpack.c.b16 %v702, %v701
          %v713 = vpack.c.b16 %v704, %v703
          %v714 = vpack.c.b16 %v706, %v705
          %723 = vmatprep.subr.bf16.mxu0 0
          %724 = vmatpush1.bf16.msra.mxu0 %v714
          %725 = vmatprep.subr.bf16.mxu0 0
          %726 = vmatpush1.bf16.msra.mxu0 %v713
          %727 = vmatprep.subr.bf16.mxu0 0
          %728 = vmatpush1.bf16.msra.mxu0 %v712
          %729 = vmatprep.subr.bf16.mxu0 0
          %730 = vmatpush1.bf16.msra.mxu0 %v711
          %731 = vmatprep.subr.bf16.mxu0 0
          %732 = vmatpush1.bf16.msra.mxu0 %v710
          %733 = vmatprep.subr.bf16.mxu0 0
          %734 = vmatpush1.bf16.msra.mxu0 %v709
          %735 = vmatprep.subr.bf16.mxu0 0
          %736 = vmatpush1.bf16.msra.mxu0 %v708
          %737 = vmatprep.subr.bf16.mxu0 0
          %738 = vmatpush1.bf16.msra.mxu0 %v707
          %739 = vmatprep.subr.bf16.mxu0 0
          %740 = vmatpush2.bf16.msra.mxu0 0
          %741 = vmatprep.subr.bf16.mxu0 0
          %742 = vmatpush2.bf16.msra.mxu0 0
          %743 = vmatprep.subr.bf16.mxu0 0
          %744 = vmatpush2.bf16.msra.mxu0 0
          %745 = vmatprep.subr.bf16.mxu0 0
          %746 = vmatpush2.bf16.msra.mxu0 0
          %747 = vmatprep.subr.bf16.mxu0 0
          %748 = vmatpush2.bf16.msra.mxu0 0
          %749 = vmatprep.subr.bf16.mxu0 0
          %750 = vmatpush2.bf16.msra.mxu0 0
          %751 = vmatprep.subr.bf16.mxu0 0
          %752 = vmatpush2.bf16.msra.mxu0 0
          %753 = vmatprep.subr.bf16.mxu0 0
          %754 = vmatpush2.bf16.msra.mxu0 0
          %755 = vmatprep.mubr.bf16.mxu0 0
          %756 = vmatmul.mubr.bf16.gmra.mxu0 %v669
          %v757 = vpop.f32.mrf.mxu0
          %v758 = vadd.f32 %v674, %v757
          %v759 = vpop.f32.mrf.mxu0
          %v760 = vpop.f32.mrf.mxu0
          %v761 = vadd.f32 %v674, %v760
          %v762 = vpop.f32.mrf.mxu0
          %763 = vmatprep.mubr.bf16.mxu0 0
          %764 = vmatmul.mubr.bf16.gmra.mxu0 %v670
          %v765 = vpop.f32.mrf.mxu0
          %v766 = vadd.f32 %v674, %v765
          %v767 = vpop.f32.mrf.mxu0
          %v768 = vpop.f32.mrf.mxu0
          %v769 = vadd.f32 %v674, %v768
          %v770 = vpop.f32.mrf.mxu0
          %771 = vdwg.mxu0
          %v772 = vld [vmem:[%s514] sm:$0x1]
          %v773 = vld [vmem:[%s514 + $0x1] sm:$0x1]
          %v774 = vld [vmem:[%s514 + $0x2] sm:$0x1]
          %v775 = vld [vmem:[%s514 + $0x3] sm:$0x1]
          %v780 = vlaneseq
          %v781 = vshrl.u32 %v780, 7
          %v782 = vsub.s32 0, %v781
          %v783 = vrot.slane %v772, %v782
          %v784 = vlaneseq
          %v785 = vshrl.u32 %v784, 7
          %v786 = vsub.s32 0, %v785
          %v787 = vrot.slane %v773, %v786
          %v788 = vlaneseq
          %v789 = vshrl.u32 %v788, 7
          %v790 = vsub.s32 0, %v789
          %v791 = vrot.slane %v774, %v790
          %v792 = vlaneseq
          %v793 = vshrl.u32 %v792, 7
          %v794 = vsub.s32 0, %v793
          %v795 = vrot.slane %v775, %v794
          %v800 = vadd.f32 %v758, %v783
          %v801 = vadd.f32 %v761, %v787
          %v802 = vadd.f32 %v766, %v791
          %v803 = vadd.f32 %v769, %v795
          %v804 = vld [vmem:[%s509] sm:$0xff]
          %v805 = vld [vmem:[%s509 + $0x8] sm:$0xff]
          %v806 = vld [vmem:[%s509 + $0x10] sm:$0xff]
          %v807 = vld [vmem:[%s509 + $0x18] sm:$0xff]
          %v808 = vpack.c.bf16 %v805, %v804
          %v809 = vpack.c.bf16 %v807, %v806
          %v810 = vlaneseq
          %v811 = vshrl.u32 %v810, 7
          %v812 = vsub.s32 2, %v811
          %v813 = vrot.slane %v537, %v812
          %v814 = vlaneseq
          %v815 = vshrl.u32 %v814, 7
          %v816 = vsub.s32 2, %v815
          %v817 = vrot.slane %v538, %v816
          %v818 = vlaneseq
          %v819 = vshrl.u32 %v818, 7
          %v820 = vsub.s32 2, %v819
          %v821 = vrot.slane %v539, %v820
          %v854 = vunpack.c.l.b16 %v560
          %v855 = vunpack.c.h.b16 %v560
          %v856 = vunpack.c.l.b16 %v561
          %v857 = vunpack.c.l.b16 %v562
          %v858 = vunpack.c.h.b16 %v562
          %v859 = vunpack.c.l.b16 %v563
          %v860 = vunpack.c.l.b16 %v564
          %v861 = vunpack.c.h.b16 %v564
          %v862 = vunpack.c.l.b16 %v565
          %v863 = vunpack.c.l.b16 %v566
          %v864 = vunpack.c.h.b16 %v566
          %v865 = vunpack.c.l.b16 %v567
          %v866 = vunpack.c.l.b16 %v568
          %v867 = vunpack.c.h.b16 %v568
          %v868 = vunpack.c.l.b16 %v569
          %v869 = vunpack.c.l.b16 %v570
          %v870 = vunpack.c.h.b16 %v570
          %v871 = vunpack.c.l.b16 %v571
          %v872 = vunpack.c.l.b16 %v572
          %v873 = vunpack.c.h.b16 %v572
          %v874 = vunpack.c.l.b16 %v573
          %v875 = vunpack.c.l.b16 %v574
          %v876 = vunpack.c.h.b16 %v574
          %v877 = vunpack.c.l.b16 %v575
          %v878 = vunpack.c.l.b16 %v576
          %v879 = vunpack.c.h.b16 %v576
          %v880 = vunpack.c.l.b16 %v577
          %v881 = vunpack.c.l.b16 %v578
          %v882 = vunpack.c.h.b16 %v578
          %v883 = vunpack.c.l.b16 %v579
          %v884 = vunpack.c.l.b16 %v580
          %v885 = vunpack.c.h.b16 %v580
          %v886 = vunpack.c.l.b16 %v581
          %v887 = vunpack.c.l.b16 %v582
          %v888 = vunpack.c.h.b16 %v582
          %v889 = vunpack.c.l.b16 %v583
          %v890 = vunpack.c.l.b16 %v584
          %v891 = vunpack.c.h.b16 %v584
          %v892 = vunpack.c.l.b16 %v585
          %v893 = vunpack.c.l.b16 %v586
          %v894 = vunpack.c.h.b16 %v586
          %v895 = vunpack.c.l.b16 %v587
          %v896 = vunpack.c.l.b16 %v588
          %v897 = vunpack.c.h.b16 %v588
          %v898 = vunpack.c.l.b16 %v589
          %v899 = vunpack.c.l.b16 %v590
          %v900 = vunpack.c.h.b16 %v590
          %v901 = vunpack.c.l.b16 %v591
          %v902 = vpack.c.b16 %v857, %v854
          %v903 = vpack.c.b16 %v858, %v855
          %v904 = vpack.c.b16 %v859, %v856
          %v905 = vpack.c.b16 %v863, %v860
          %v906 = vpack.c.b16 %v864, %v861
          %v907 = vpack.c.b16 %v865, %v862
          %v908 = vpack.c.b16 %v869, %v866
          %v909 = vpack.c.b16 %v870, %v867
          %v910 = vpack.c.b16 %v871, %v868
          %v911 = vpack.c.b16 %v875, %v872
          %v912 = vpack.c.b16 %v876, %v873
          %v913 = vpack.c.b16 %v877, %v874
          %v914 = vpack.c.b16 %v881, %v878
          %v915 = vpack.c.b16 %v882, %v879
          %v916 = vpack.c.b16 %v883, %v880
          %v917 = vpack.c.b16 %v887, %v884
          %v918 = vpack.c.b16 %v888, %v885
          %v919 = vpack.c.b16 %v889, %v886
          %v920 = vpack.c.b16 %v893, %v890
          %v921 = vpack.c.b16 %v894, %v891
          %v922 = vpack.c.b16 %v895, %v892
          %v923 = vpack.c.b16 %v899, %v896
          %v924 = vpack.c.b16 %v900, %v897
          %v925 = vpack.c.b16 %v901, %v898
          %950 = vmatprep.subr.bf16.mxu0 %v924
          %951 = vmatpush1.bf16.msra.mxu0 %v923
          %952 = vmatprep.subr.bf16.mxu0 %v921
          %953 = vmatpush1.bf16.msra.mxu0 %v920
          %954 = vmatprep.subr.bf16.mxu0 %v918
          %955 = vmatpush1.bf16.msra.mxu0 %v917
          %956 = vmatprep.subr.bf16.mxu0 %v915
          %957 = vmatpush1.bf16.msra.mxu0 %v914
          %958 = vmatprep.subr.bf16.mxu0 %v912
          %959 = vmatpush1.bf16.msra.mxu0 %v911
          %960 = vmatprep.subr.bf16.mxu0 %v909
          %961 = vmatpush1.bf16.msra.mxu0 %v908
          %962 = vmatprep.subr.bf16.mxu0 %v906
          %963 = vmatpush1.bf16.msra.mxu0 %v905
          %964 = vmatprep.subr.bf16.mxu0 %v903
          %965 = vmatpush1.bf16.msra.mxu0 %v902
          %966 = vmatprep.subr.bf16.mxu0 0
          %967 = vmatpush2.bf16.msra.mxu0 0
          %968 = vmatprep.subr.bf16.mxu0 0
          %969 = vmatpush2.bf16.msra.mxu0 0
          %970 = vmatprep.subr.bf16.mxu0 0
          %971 = vmatpush2.bf16.msra.mxu0 0
          %972 = vmatprep.subr.bf16.mxu0 0
          %973 = vmatpush2.bf16.msra.mxu0 0
          %974 = vmatprep.subr.bf16.mxu0 0
          %975 = vmatpush2.bf16.msra.mxu0 0
          %976 = vmatprep.subr.bf16.mxu0 0
          %977 = vmatpush2.bf16.msra.mxu0 0
          %978 = vmatprep.subr.bf16.mxu0 0
          %979 = vmatpush2.bf16.msra.mxu0 0
          %980 = vmatprep.subr.bf16.mxu0 0
          %981 = vmatpush2.bf16.msra.mxu0 0
          %982 = vmatprep.mubr.bf16.mxu0 0
          %983 = vmatmul.mubr.bf16.gmra.mxu0 %v808
          %v984 = vpop.f32.mrf.mxu0
          %v985 = vadd.f32 %v813, %v984
          %v986 = vpop.f32.mrf.mxu0
          %v987 = vadd.f32 %v817, %v986
          %v988 = vpop.f32.mrf.mxu0
          %v989 = vadd.f32 %v813, %v988
          %v990 = vpop.f32.mrf.mxu0
          %v991 = vadd.f32 %v817, %v990
          %992 = vmatprep.mubr.bf16.mxu0 0
          %993 = vmatmul.mubr.bf16.gmra.mxu0 %v809
          %v994 = vpop.f32.mrf.mxu0
          %v995 = vadd.f32 %v813, %v994
          %v996 = vpop.f32.mrf.mxu0
          %v997 = vadd.f32 %v817, %v996
          %v998 = vpop.f32.mrf.mxu0
          %v999 = vadd.f32 %v813, %v998
          %v1000 = vpop.f32.mrf.mxu0
          %v1001 = vadd.f32 %v817, %v1000
          %1002 = vdwg.mxu0
          %1003 = vmatprep.subr.bf16.mxu0 0
          %1004 = vmatpush1.bf16.msra.mxu0 %v925
          %1005 = vmatprep.subr.bf16.mxu0 0
          %1006 = vmatpush1.bf16.msra.mxu0 %v922
          %1007 = vmatprep.subr.bf16.mxu0 0
          %1008 = vmatpush1.bf16.msra.mxu0 %v919
          %1009 = vmatprep.subr.bf16.mxu0 0
          %1010 = vmatpush1.bf16.msra.mxu0 %v916
          %1011 = vmatprep.subr.bf16.mxu0 0
          %1012 = vmatpush1.bf16.msra.mxu0 %v913
          %1013 = vmatprep.subr.bf16.mxu0 0
          %1014 = vmatpush1.bf16.msra.mxu0 %v910
          %1015 = vmatprep.subr.bf16.mxu0 0
          %1016 = vmatpush1.bf16.msra.mxu0 %v907
          %1017 = vmatprep.subr.bf16.mxu0 0
          %1018 = vmatpush1.bf16.msra.mxu0 %v904
          %1019 = vmatprep.subr.bf16.mxu0 0
          %1020 = vmatpush2.bf16.msra.mxu0 0
          %1021 = vmatprep.subr.bf16.mxu0 0
          %1022 = vmatpush2.bf16.msra.mxu0 0
          %1023 = vmatprep.subr.bf16.mxu0 0
          %1024 = vmatpush2.bf16.msra.mxu0 0
          %1025 = vmatprep.subr.bf16.mxu0 0
          %1026 = vmatpush2.bf16.msra.mxu0 0
          %1027 = vmatprep.subr.bf16.mxu0 0
          %1028 = vmatpush2.bf16.msra.mxu0 0
          %1029 = vmatprep.subr.bf16.mxu0 0
          %1030 = vmatpush2.bf16.msra.mxu0 0
          %1031 = vmatprep.subr.bf16.mxu0 0
          %1032 = vmatpush2.bf16.msra.mxu0 0
          %1033 = vmatprep.subr.bf16.mxu0 0
          %1034 = vmatpush2.bf16.msra.mxu0 0
          %1035 = vmatprep.mubr.bf16.mxu0 0
          %1036 = vmatmul.mubr.bf16.gmra.mxu0 %v808
          %v1037 = vpop.f32.mrf.mxu0
          %v1038 = vadd.f32 %v821, %v1037
          %v1039 = vpop.f32.mrf.mxu0
          %v1040 = vpop.f32.mrf.mxu0
          %v1041 = vadd.f32 %v821, %v1040
          %v1042 = vpop.f32.mrf.mxu0
          %1043 = vmatprep.mubr.bf16.mxu0 0
          %1044 = vmatmul.mubr.bf16.gmra.mxu0 %v809
          %v1045 = vpop.f32.mrf.mxu0
          %v1046 = vadd.f32 %v821, %v1045
          %v1047 = vpop.f32.mrf.mxu0
          %v1048 = vpop.f32.mrf.mxu0
          %v1049 = vadd.f32 %v821, %v1048
          %v1050 = vpop.f32.mrf.mxu0
          %1051 = vdwg.mxu0
          %1056 = vrot.lane.b32.xlu0 %v985, 96
          %v1057 = vpop.permute.xlu0 %1056
          %1058 = vrot.lane.b32.xlu0 %v989, 96
          %v1059 = vpop.permute.xlu0 %1058
          %1060 = vrot.lane.b32.xlu0 %v995, 96
          %v1061 = vpop.permute.xlu0 %1060
          %1062 = vrot.lane.b32.xlu0 %v999, 96
          %v1063 = vpop.permute.xlu0 %1062
          %1064 = vrot.lane.b32.xlu0 %v985, 64
          %v1065 = vpop.permute.xlu0 %1064
          %1066 = vrot.lane.b32.xlu0 %v989, 64
          %v1067 = vpop.permute.xlu0 %1066
          %1068 = vrot.lane.b32.xlu0 %v995, 64
          %v1069 = vpop.permute.xlu0 %1068
          %1070 = vrot.lane.b32.xlu0 %v999, 64
          %v1071 = vpop.permute.xlu0 %1070
          %1072 = vrot.lane.b32.xlu0 %v985, 32
          %v1073 = vpop.permute.xlu0 %1072
          %1074 = vrot.lane.b32.xlu0 %v989, 32
          %v1075 = vpop.permute.xlu0 %1074
          %1076 = vrot.lane.b32.xlu0 %v995, 32
          %v1077 = vpop.permute.xlu0 %1076
          %1078 = vrot.lane.b32.xlu0 %v999, 32
          %v1079 = vpop.permute.xlu0 %1078
          %1084 = vrot.lane.b32.xlu0 %v987, 96
          %v1085 = vpop.permute.xlu0 %1084
          %1086 = vrot.lane.b32.xlu0 %v991, 96
          %v1087 = vpop.permute.xlu0 %1086
          %1088 = vrot.lane.b32.xlu0 %v997, 96
          %v1089 = vpop.permute.xlu0 %1088
          %1090 = vrot.lane.b32.xlu0 %v1001, 96
          %v1091 = vpop.permute.xlu0 %1090
          %1092 = vrot.lane.b32.xlu0 %v987, 64
          %v1093 = vpop.permute.xlu0 %1092
          %1094 = vrot.lane.b32.xlu0 %v991, 64
          %v1095 = vpop.permute.xlu0 %1094
          %1096 = vrot.lane.b32.xlu0 %v997, 64
          %v1097 = vpop.permute.xlu0 %1096
          %1098 = vrot.lane.b32.xlu0 %v1001, 64
          %v1099 = vpop.permute.xlu0 %1098
          %1100 = vrot.lane.b32.xlu0 %v987, 32
          %v1101 = vpop.permute.xlu0 %1100
          %1102 = vrot.lane.b32.xlu0 %v991, 32
          %v1103 = vpop.permute.xlu0 %1102
          %1104 = vrot.lane.b32.xlu0 %v997, 32
          %v1105 = vpop.permute.xlu0 %1104
          %1106 = vrot.lane.b32.xlu0 %v1001, 32
          %v1107 = vpop.permute.xlu0 %1106
          %1112 = vrot.lane.b32.xlu0 %v1038, 96
          %v1113 = vpop.permute.xlu0 %1112
          %1114 = vrot.lane.b32.xlu0 %v1041, 96
          %v1115 = vpop.permute.xlu0 %1114
          %1116 = vrot.lane.b32.xlu0 %v1046, 96
          %v1117 = vpop.permute.xlu0 %1116
          %1118 = vrot.lane.b32.xlu0 %v1049, 96
          %v1119 = vpop.permute.xlu0 %1118
          %1124 = vrot.lane.b32.xlu0 %v1038, 64
          %v1125 = vpop.permute.xlu0 %1124
          %1126 = vrot.lane.b32.xlu0 %v1041, 64
          %v1127 = vpop.permute.xlu0 %1126
          %1128 = vrot.lane.b32.xlu0 %v1046, 64
          %v1129 = vpop.permute.xlu0 %1128
          %1130 = vrot.lane.b32.xlu0 %v1049, 64
          %v1131 = vpop.permute.xlu0 %1130
          %1136 = vrot.lane.b32.xlu0 %v1038, 32
          %v1137 = vpop.permute.xlu0 %1136
          %1138 = vrot.lane.b32.xlu0 %v1041, 32
          %v1139 = vpop.permute.xlu0 %1138
          %1140 = vrot.lane.b32.xlu0 %v1046, 32
          %v1141 = vpop.permute.xlu0 %1140
          %1142 = vrot.lane.b32.xlu0 %v1049, 32
          %v1143 = vpop.permute.xlu0 %1142
          %vm1148 = vcmask 261120
          %v1149 = vsel %vm1148, %v985, 0
          %v1151 = vsel %vm1148, %v989, 0
          %v1153 = vsel %vm1148, %v995, 0
          %v1155 = vsel %vm1148, %v999, 0
          %v1157 = vsel %vm1148, %v987, 0
          %v1159 = vsel %vm1148, %v991, 0
          %v1161 = vsel %vm1148, %v997, 0
          %v1163 = vsel %vm1148, %v1001, 0
          %1165 = vmatprep.subr.mxu0 0.0
          %1166 = vmatpush1.xpose.msra.mxu0 0.0
          %1167 = vmatprep.subr.mxu0 0.0
          %1168 = vmatpush1.xpose.msra.mxu0 0.0
          %1169 = vmatprep.subr.mxu0 0.0
          %1170 = vmatpush1.xpose.msra.mxu0 0.0
          %1171 = vmatprep.subr.mxu0 0.0
          %1172 = vmatpush1.xpose.msra.mxu0 0.0
          %1173 = vmatprep.subr.mxu0 0.0
          %1174 = vmatpush1.xpose.msra.mxu0 0.0
          %1175 = vmatprep.subr.mxu0 0.0
          %1176 = vmatpush1.xpose.msra.mxu0 0.0
          %1177 = vmatprep.subr.mxu0 0.0
          %1178 = vmatpush1.xpose.msra.mxu0 0.0
          %1179 = vmatprep.subr.mxu0 0.0
          %1180 = vmatpush1.xpose.msra.mxu0 0.0
          %1181 = vmatprep.subr.mxu0 0.0
          %1182 = vmatpush1.xpose.msra.mxu0 0.0
          %1183 = vmatprep.subr.mxu0 0.0
          %1184 = vmatpush1.xpose.msra.mxu0 0.0
          %1185 = vmatprep.subr.mxu0 0.0
          %1186 = vmatpush1.xpose.msra.mxu0 0.0
          %1187 = vmatprep.subr.mxu0 0.0
          %1188 = vmatpush1.xpose.msra.mxu0 0.0
          %1189 = vmatprep.subr.mxu0 0.0
          %1190 = vmatpush1.xpose.msra.mxu0 %v1163
          %1191 = vmatprep.subr.mxu0 0.0
          %1192 = vmatpush1.xpose.msra.mxu0 %v1161
          %1193 = vmatprep.subr.mxu0 0.0
          %1194 = vmatpush1.xpose.msra.mxu0 %v1159
          %1195 = vmatprep.subr.mxu0 0.0
          %1196 = vmatpush1.xpose.msra.mxu0 %v1157
          %1197 = vmatprep.subr.mxu0 0.0
          %1198 = vmatpush2.xpose.msra.mxu0 0.0
          %1199 = vmatprep.subr.mxu0 0.0
          %1200 = vmatpush2.xpose.msra.mxu0 0.0
          %1201 = vmatprep.subr.mxu0 0.0
          %1202 = vmatpush2.xpose.msra.mxu0 0.0
          %1203 = vmatprep.subr.mxu0 0.0
          %1204 = vmatpush2.xpose.msra.mxu0 0.0
          %1205 = vmatprep.subr.mxu0 0.0
          %1206 = vmatpush2.xpose.msra.mxu0 0.0
          %1207 = vmatprep.subr.mxu0 0.0
          %1208 = vmatpush2.xpose.msra.mxu0 0.0
          %1209 = vmatprep.subr.mxu0 0.0
          %1210 = vmatpush2.xpose.msra.mxu0 0.0
          %1211 = vmatprep.subr.mxu0 0.0
          %1212 = vmatpush2.xpose.msra.mxu0 0.0
          %1213 = vmatprep.subr.mxu0 0.0
          %1214 = vmatpush2.xpose.msra.mxu0 0.0
          %1215 = vmatprep.subr.mxu0 0.0
          %1216 = vmatpush2.xpose.msra.mxu0 0.0
          %1217 = vmatprep.subr.mxu0 0.0
          %1218 = vmatpush2.xpose.msra.mxu0 0.0
          %1219 = vmatprep.subr.mxu0 0.0
          %1220 = vmatpush2.xpose.msra.mxu0 0.0
          %1221 = vmatprep.subr.mxu0 0.0
          %1222 = vmatpush2.xpose.msra.mxu0 0.0
          %1223 = vmatprep.subr.mxu0 0.0
          %1224 = vmatpush2.xpose.msra.mxu0 0.0
          %1225 = vmatprep.subr.mxu0 0.0
          %1226 = vmatpush2.xpose.msra.mxu0 0.0
          %1227 = vmatprep.subr.mxu0 0.0
          %1228 = vmatpush2.xpose.msra.mxu0 0.0
          %1229 = vmatprep.mubr.f32.mxu0 0.0
          %1230 = vmatmul.mubr.f32.gmra.mxu0 %v1149
          %v1231 = vpop.f32.mrf.mxu0
          %v1232 = vadd.f32 0.0, %v1231
          %v1233 = vpop.f32.mrf.mxu0
          %1234 = vmatprep.mubr.f32.mxu0 0.0
          %1235 = vmatmul.mubr.f32.gmra.mxu0 %v1151
          %v1236 = vpop.f32.mrf.mxu0
          %v1237 = vadd.f32 0.0, %v1236
          %v1238 = vpop.f32.mrf.mxu0
          %1239 = vmatprep.mubr.f32.mxu0 0.0
          %1240 = vmatmul.mubr.f32.gmra.mxu0 %v1153
          %v1241 = vpop.f32.mrf.mxu0
          %v1242 = vadd.f32 0.0, %v1241
          %v1243 = vpop.f32.mrf.mxu0
          %1244 = vmatprep.mubr.f32.mxu0 0.0
          %1245 = vmatmul.mubr.f32.gmra.mxu0 %v1155
          %v1246 = vpop.f32.mrf.mxu0
          %v1247 = vadd.f32 0.0, %v1246
          %v1248 = vpop.f32.mrf.mxu0
          %1249 = vdwg.mxu0
          %v1250 = vsel %vm1148, %v1057, 0
          %v1252 = vsel %vm1148, %v1059, 0
          %v1254 = vsel %vm1148, %v1061, 0
          %v1256 = vsel %vm1148, %v1063, 0
          %v1258 = vsel %vm1148, %v1085, 0
          %v1260 = vsel %vm1148, %v1087, 0
          %v1262 = vsel %vm1148, %v1089, 0
          %v1264 = vsel %vm1148, %v1091, 0
          %1266 = vmatprep.subr.mxu0 0.0
          %1267 = vmatpush1.xpose.msra.mxu0 0.0
          %1268 = vmatprep.subr.mxu0 0.0
          %1269 = vmatpush1.xpose.msra.mxu0 0.0
          %1270 = vmatprep.subr.mxu0 0.0
          %1271 = vmatpush1.xpose.msra.mxu0 0.0
          %1272 = vmatprep.subr.mxu0 0.0
          %1273 = vmatpush1.xpose.msra.mxu0 0.0
          %1274 = vmatprep.subr.mxu0 0.0
          %1275 = vmatpush1.xpose.msra.mxu0 0.0
          %1276 = vmatprep.subr.mxu0 0.0
          %1277 = vmatpush1.xpose.msra.mxu0 0.0
          %1278 = vmatprep.subr.mxu0 0.0
          %1279 = vmatpush1.xpose.msra.mxu0 0.0
          %1280 = vmatprep.subr.mxu0 0.0
          %1281 = vmatpush1.xpose.msra.mxu0 0.0
          %1282 = vmatprep.subr.mxu0 0.0
          %1283 = vmatpush1.xpose.msra.mxu0 0.0
          %1284 = vmatprep.subr.mxu0 0.0
          %1285 = vmatpush1.xpose.msra.mxu0 0.0
          %1286 = vmatprep.subr.mxu0 0.0
          %1287 = vmatpush1.xpose.msra.mxu0 0.0
          %1288 = vmatprep.subr.mxu0 0.0
          %1289 = vmatpush1.xpose.msra.mxu0 0.0
          %1290 = vmatprep.subr.mxu0 0.0
          %1291 = vmatpush1.xpose.msra.mxu0 %v1264
          %1292 = vmatprep.subr.mxu0 0.0
          %1293 = vmatpush1.xpose.msra.mxu0 %v1262
          %1294 = vmatprep.subr.mxu0 0.0
          %1295 = vmatpush1.xpose.msra.mxu0 %v1260
          %1296 = vmatprep.subr.mxu0 0.0
          %1297 = vmatpush1.xpose.msra.mxu0 %v1258
          %1298 = vmatprep.subr.mxu0 0.0
          %1299 = vmatpush2.xpose.msra.mxu0 0.0
          %1300 = vmatprep.subr.mxu0 0.0
          %1301 = vmatpush2.xpose.msra.mxu0 0.0
          %1302 = vmatprep.subr.mxu0 0.0
          %1303 = vmatpush2.xpose.msra.mxu0 0.0
          %1304 = vmatprep.subr.mxu0 0.0
          %1305 = vmatpush2.xpose.msra.mxu0 0.0
          %1306 = vmatprep.subr.mxu0 0.0
          %1307 = vmatpush2.xpose.msra.mxu0 0.0
          %1308 = vmatprep.subr.mxu0 0.0
          %1309 = vmatpush2.xpose.msra.mxu0 0.0
          %1310 = vmatprep.subr.mxu0 0.0
          %1311 = vmatpush2.xpose.msra.mxu0 0.0
          %1312 = vmatprep.subr.mxu0 0.0
          %1313 = vmatpush2.xpose.msra.mxu0 0.0
          %1314 = vmatprep.subr.mxu0 0.0
          %1315 = vmatpush2.xpose.msra.mxu0 0.0
          %1316 = vmatprep.subr.mxu0 0.0
          %1317 = vmatpush2.xpose.msra.mxu0 0.0
          %1318 = vmatprep.subr.mxu0 0.0
          %1319 = vmatpush2.xpose.msra.mxu0 0.0
          %1320 = vmatprep.subr.mxu0 0.0
          %1321 = vmatpush2.xpose.msra.mxu0 0.0
          %1322 = vmatprep.subr.mxu0 0.0
          %1323 = vmatpush2.xpose.msra.mxu0 0.0
          %1324 = vmatprep.subr.mxu0 0.0
          %1325 = vmatpush2.xpose.msra.mxu0 0.0
          %1326 = vmatprep.subr.mxu0 0.0
          %1327 = vmatpush2.xpose.msra.mxu0 0.0
          %1328 = vmatprep.subr.mxu0 0.0
          %1329 = vmatpush2.xpose.msra.mxu0 0.0
          %1330 = vmatprep.mubr.f32.mxu0 0.0
          %1331 = vmatmul.mubr.f32.gmra.mxu0 %v1250
          %v1332 = vpop.f32.mrf.mxu0
          %v1333 = vadd.f32 0.0, %v1332
          %v1334 = vpop.f32.mrf.mxu0
          %1335 = vmatprep.mubr.f32.mxu0 0.0
          %1336 = vmatmul.mubr.f32.gmra.mxu0 %v1252
          %v1337 = vpop.f32.mrf.mxu0
          %v1338 = vadd.f32 0.0, %v1337
          %v1339 = vpop.f32.mrf.mxu0
          %1340 = vmatprep.mubr.f32.mxu0 0.0
          %1341 = vmatmul.mubr.f32.gmra.mxu0 %v1254
          %v1342 = vpop.f32.mrf.mxu0
          %v1343 = vadd.f32 0.0, %v1342
          %v1344 = vpop.f32.mrf.mxu0
          %1345 = vmatprep.mubr.f32.mxu0 0.0
          %1346 = vmatmul.mubr.f32.gmra.mxu0 %v1256
          %v1347 = vpop.f32.mrf.mxu0
          %v1348 = vadd.f32 0.0, %v1347
          %v1349 = vpop.f32.mrf.mxu0
          %1350 = vdwg.mxu0
          %v1351 = vsel %vm1148, %v1065, 0
          %v1353 = vsel %vm1148, %v1067, 0
          %v1355 = vsel %vm1148, %v1069, 0
          %v1357 = vsel %vm1148, %v1071, 0
          %v1359 = vsel %vm1148, %v1093, 0
          %v1361 = vsel %vm1148, %v1095, 0
          %v1363 = vsel %vm1148, %v1097, 0
          %v1365 = vsel %vm1148, %v1099, 0
          %1367 = vmatprep.subr.mxu0 0.0
          %1368 = vmatpush1.xpose.msra.mxu0 0.0
          %1369 = vmatprep.subr.mxu0 0.0
          %1370 = vmatpush1.xpose.msra.mxu0 0.0
          %1371 = vmatprep.subr.mxu0 0.0
          %1372 = vmatpush1.xpose.msra.mxu0 0.0
          %1373 = vmatprep.subr.mxu0 0.0
          %1374 = vmatpush1.xpose.msra.mxu0 0.0
          %1375 = vmatprep.subr.mxu0 0.0
          %1376 = vmatpush1.xpose.msra.mxu0 0.0
          %1377 = vmatprep.subr.mxu0 0.0
          %1378 = vmatpush1.xpose.msra.mxu0 0.0
          %1379 = vmatprep.subr.mxu0 0.0
          %1380 = vmatpush1.xpose.msra.mxu0 0.0
          %1381 = vmatprep.subr.mxu0 0.0
          %1382 = vmatpush1.xpose.msra.mxu0 0.0
          %1383 = vmatprep.subr.mxu0 0.0
          %1384 = vmatpush1.xpose.msra.mxu0 0.0
          %1385 = vmatprep.subr.mxu0 0.0
          %1386 = vmatpush1.xpose.msra.mxu0 0.0
          %1387 = vmatprep.subr.mxu0 0.0
          %1388 = vmatpush1.xpose.msra.mxu0 0.0
          %1389 = vmatprep.subr.mxu0 0.0
          %1390 = vmatpush1.xpose.msra.mxu0 0.0
          %1391 = vmatprep.subr.mxu0 0.0
          %1392 = vmatpush1.xpose.msra.mxu0 %v1365
          %1393 = vmatprep.subr.mxu0 0.0
          %1394 = vmatpush1.xpose.msra.mxu0 %v1363
          %1395 = vmatprep.subr.mxu0 0.0
          %1396 = vmatpush1.xpose.msra.mxu0 %v1361
          %1397 = vmatprep.subr.mxu0 0.0
          %1398 = vmatpush1.xpose.msra.mxu0 %v1359
          %1399 = vmatprep.subr.mxu0 0.0
          %1400 = vmatpush2.xpose.msra.mxu0 0.0
          %1401 = vmatprep.subr.mxu0 0.0
          %1402 = vmatpush2.xpose.msra.mxu0 0.0
          %1403 = vmatprep.subr.mxu0 0.0
          %1404 = vmatpush2.xpose.msra.mxu0 0.0
          %1405 = vmatprep.subr.mxu0 0.0
          %1406 = vmatpush2.xpose.msra.mxu0 0.0
          %1407 = vmatprep.subr.mxu0 0.0
          %1408 = vmatpush2.xpose.msra.mxu0 0.0
          %1409 = vmatprep.subr.mxu0 0.0
          %1410 = vmatpush2.xpose.msra.mxu0 0.0
          %1411 = vmatprep.subr.mxu0 0.0
          %1412 = vmatpush2.xpose.msra.mxu0 0.0
          %1413 = vmatprep.subr.mxu0 0.0
          %1414 = vmatpush2.xpose.msra.mxu0 0.0
          %1415 = vmatprep.subr.mxu0 0.0
          %1416 = vmatpush2.xpose.msra.mxu0 0.0
          %1417 = vmatprep.subr.mxu0 0.0
          %1418 = vmatpush2.xpose.msra.mxu0 0.0
          %1419 = vmatprep.subr.mxu0 0.0
          %1420 = vmatpush2.xpose.msra.mxu0 0.0
          %1421 = vmatprep.subr.mxu0 0.0
          %1422 = vmatpush2.xpose.msra.mxu0 0.0
          %1423 = vmatprep.subr.mxu0 0.0
          %1424 = vmatpush2.xpose.msra.mxu0 0.0
          %1425 = vmatprep.subr.mxu0 0.0
          %1426 = vmatpush2.xpose.msra.mxu0 0.0
          %1427 = vmatprep.subr.mxu0 0.0
          %1428 = vmatpush2.xpose.msra.mxu0 0.0
          %1429 = vmatprep.subr.mxu0 0.0
          %1430 = vmatpush2.xpose.msra.mxu0 0.0
          %1431 = vmatprep.mubr.f32.mxu0 0.0
          %1432 = vmatmul.mubr.f32.gmra.mxu0 %v1351
          %v1433 = vpop.f32.mrf.mxu0
          %v1434 = vadd.f32 0.0, %v1433
          %v1435 = vpop.f32.mrf.mxu0
          %1436 = vmatprep.mubr.f32.mxu0 0.0
          %1437 = vmatmul.mubr.f32.gmra.mxu0 %v1353
          %v1438 = vpop.f32.mrf.mxu0
          %v1439 = vadd.f32 0.0, %v1438
          %v1440 = vpop.f32.mrf.mxu0
          %1441 = vmatprep.mubr.f32.mxu0 0.0
          %1442 = vmatmul.mubr.f32.gmra.mxu0 %v1355
          %v1443 = vpop.f32.mrf.mxu0
          %v1444 = vadd.f32 0.0, %v1443
          %v1445 = vpop.f32.mrf.mxu0
          %1446 = vmatprep.mubr.f32.mxu0 0.0
          %1447 = vmatmul.mubr.f32.gmra.mxu0 %v1357
          %v1448 = vpop.f32.mrf.mxu0
          %v1449 = vadd.f32 0.0, %v1448
          %v1450 = vpop.f32.mrf.mxu0
          %1451 = vdwg.mxu0
          %v1452 = vsel %vm1148, %v1073, 0
          %v1454 = vsel %vm1148, %v1075, 0
          %v1456 = vsel %vm1148, %v1077, 0
          %v1458 = vsel %vm1148, %v1079, 0
          %v1460 = vsel %vm1148, %v1101, 0
          %v1462 = vsel %vm1148, %v1103, 0
          %v1464 = vsel %vm1148, %v1105, 0
          %v1466 = vsel %vm1148, %v1107, 0
          %1468 = vmatprep.subr.mxu0 0.0
          %1469 = vmatpush1.xpose.msra.mxu0 0.0
          %1470 = vmatprep.subr.mxu0 0.0
          %1471 = vmatpush1.xpose.msra.mxu0 0.0
          %1472 = vmatprep.subr.mxu0 0.0
          %1473 = vmatpush1.xpose.msra.mxu0 0.0
          %1474 = vmatprep.subr.mxu0 0.0
          %1475 = vmatpush1.xpose.msra.mxu0 0.0
          %1476 = vmatprep.subr.mxu0 0.0
          %1477 = vmatpush1.xpose.msra.mxu0 0.0
          %1478 = vmatprep.subr.mxu0 0.0
          %1479 = vmatpush1.xpose.msra.mxu0 0.0
          %1480 = vmatprep.subr.mxu0 0.0
          %1481 = vmatpush1.xpose.msra.mxu0 0.0
          %1482 = vmatprep.subr.mxu0 0.0
          %1483 = vmatpush1.xpose.msra.mxu0 0.0
          %1484 = vmatprep.subr.mxu0 0.0
          %1485 = vmatpush1.xpose.msra.mxu0 0.0
          %1486 = vmatprep.subr.mxu0 0.0
          %1487 = vmatpush1.xpose.msra.mxu0 0.0
          %1488 = vmatprep.subr.mxu0 0.0
          %1489 = vmatpush1.xpose.msra.mxu0 0.0
          %1490 = vmatprep.subr.mxu0 0.0
          %1491 = vmatpush1.xpose.msra.mxu0 0.0
          %1492 = vmatprep.subr.mxu0 0.0
          %1493 = vmatpush1.xpose.msra.mxu0 %v1466
          %1494 = vmatprep.subr.mxu0 0.0
          %1495 = vmatpush1.xpose.msra.mxu0 %v1464
          %1496 = vmatprep.subr.mxu0 0.0
          %1497 = vmatpush1.xpose.msra.mxu0 %v1462
          %1498 = vmatprep.subr.mxu0 0.0
          %1499 = vmatpush1.xpose.msra.mxu0 %v1460
          %1500 = vmatprep.subr.mxu0 0.0
          %1501 = vmatpush2.xpose.msra.mxu0 0.0
          %1502 = vmatprep.subr.mxu0 0.0
          %1503 = vmatpush2.xpose.msra.mxu0 0.0
          %1504 = vmatprep.subr.mxu0 0.0
          %1505 = vmatpush2.xpose.msra.mxu0 0.0
          %1506 = vmatprep.subr.mxu0 0.0
          %1507 = vmatpush2.xpose.msra.mxu0 0.0
          %1508 = vmatprep.subr.mxu0 0.0
          %1509 = vmatpush2.xpose.msra.mxu0 0.0
          %1510 = vmatprep.subr.mxu0 0.0
          %1511 = vmatpush2.xpose.msra.mxu0 0.0
          %1512 = vmatprep.subr.mxu0 0.0
          %1513 = vmatpush2.xpose.msra.mxu0 0.0
          %1514 = vmatprep.subr.mxu0 0.0
          %1515 = vmatpush2.xpose.msra.mxu0 0.0
          %1516 = vmatprep.subr.mxu0 0.0
          %1517 = vmatpush2.xpose.msra.mxu0 0.0
          %1518 = vmatprep.subr.mxu0 0.0
          %1519 = vmatpush2.xpose.msra.mxu0 0.0
          %1520 = vmatprep.subr.mxu0 0.0
          %1521 = vmatpush2.xpose.msra.mxu0 0.0
          %1522 = vmatprep.subr.mxu0 0.0
          %1523 = vmatpush2.xpose.msra.mxu0 0.0
          %1524 = vmatprep.subr.mxu0 0.0
          %1525 = vmatpush2.xpose.msra.mxu0 0.0
          %1526 = vmatprep.subr.mxu0 0.0
          %1527 = vmatpush2.xpose.msra.mxu0 0.0
          %1528 = vmatprep.subr.mxu0 0.0
          %1529 = vmatpush2.xpose.msra.mxu0 0.0
          %1530 = vmatprep.subr.mxu0 0.0
          %1531 = vmatpush2.xpose.msra.mxu0 0.0
          %1532 = vmatprep.mubr.f32.mxu0 0.0
          %1533 = vmatmul.mubr.f32.gmra.mxu0 %v1452
          %v1534 = vpop.f32.mrf.mxu0
          %v1535 = vadd.f32 0.0, %v1534
          %v1536 = vpop.f32.mrf.mxu0
          %1537 = vmatprep.mubr.f32.mxu0 0.0
          %1538 = vmatmul.mubr.f32.gmra.mxu0 %v1454
          %v1539 = vpop.f32.mrf.mxu0
          %v1540 = vadd.f32 0.0, %v1539
          %v1541 = vpop.f32.mrf.mxu0
          %1542 = vmatprep.mubr.f32.mxu0 0.0
          %1543 = vmatmul.mubr.f32.gmra.mxu0 %v1456
          %v1544 = vpop.f32.mrf.mxu0
          %v1545 = vadd.f32 0.0, %v1544
          %v1546 = vpop.f32.mrf.mxu0
          %1547 = vmatprep.mubr.f32.mxu0 0.0
          %1548 = vmatmul.mubr.f32.gmra.mxu0 %v1458
          %v1549 = vpop.f32.mrf.mxu0
          %v1550 = vadd.f32 0.0, %v1549
          %v1551 = vpop.f32.mrf.mxu0
          %1552 = vdwg.mxu0
          %v1553 = vmul.f32 %v1232, 0.17677669
          %v1554 = vmul.f32 %v1237, 0.17677669
          %v1555 = vmul.f32 %v1242, 0.17677669
          %v1556 = vmul.f32 %v1247, 0.17677669
          %v1557 = vmul.f32 %v1333, 0.17677669
          %v1558 = vmul.f32 %v1338, 0.17677669
          %v1559 = vmul.f32 %v1343, 0.17677669
          %v1560 = vmul.f32 %v1348, 0.17677669
          %v1561 = vmul.f32 %v1434, 0.17677669
          %v1562 = vmul.f32 %v1439, 0.17677669
          %v1563 = vmul.f32 %v1444, 0.17677669
          %v1564 = vmul.f32 %v1449, 0.17677669
          %v1565 = vmul.f32 %v1535, 0.17677669
          %v1566 = vmul.f32 %v1540, 0.17677669
          %v1567 = vmul.f32 %v1545, 0.17677669
          %v1568 = vmul.f32 %v1550, 0.17677669
          %v1569 = vadd.f32 %v1553, %v656
          %v1570 = vadd.f32 %v1554, %v657
          %v1571 = vadd.f32 %v1555, %v658
          %v1572 = vadd.f32 %v1556, %v659
          %v1573 = vadd.f32 %v1557, %v656
          %v1574 = vadd.f32 %v1558, %v657
          %v1575 = vadd.f32 %v1559, %v658
          %v1576 = vadd.f32 %v1560, %v659
          %v1577 = vadd.f32 %v1561, %v656
          %v1578 = vadd.f32 %v1562, %v657
          %v1579 = vadd.f32 %v1563, %v658
          %v1580 = vadd.f32 %v1564, %v659
          %v1581 = vadd.f32 %v1565, %v656
          %v1582 = vadd.f32 %v1566, %v657
          %v1583 = vadd.f32 %v1567, %v658
          %v1584 = vadd.f32 %v1568, %v659
          %v1585 = vsel %vm1148, %v1569, -inf
          %1586 = vmax.xlane.f32.xlu0 %v1585
          %v1587 = vpop.xlane.xlu0 %1586
          %v1588 = vsel %vm1148, %v1570, -inf
          %1589 = vmax.xlane.f32.xlu0 %v1588
          %v1590 = vpop.xlane.xlu0 %1589
          %v1591 = vsel %vm1148, %v1571, -inf
          %1592 = vmax.xlane.f32.xlu0 %v1591
          %v1593 = vpop.xlane.xlu0 %1592
          %v1594 = vsel %vm1148, %v1572, -inf
          %1595 = vmax.xlane.f32.xlu0 %v1594
          %v1596 = vpop.xlane.xlu0 %1595
          %v1597 = vsel %vm1148, %v1573, -inf
          %1598 = vmax.xlane.f32.xlu0 %v1597
          %v1599 = vpop.xlane.xlu0 %1598
          %v1600 = vsel %vm1148, %v1574, -inf
          %1601 = vmax.xlane.f32.xlu0 %v1600
          %v1602 = vpop.xlane.xlu0 %1601
          %v1603 = vsel %vm1148, %v1575, -inf
          %1604 = vmax.xlane.f32.xlu0 %v1603
          %v1605 = vpop.xlane.xlu0 %1604
          %v1606 = vsel %vm1148, %v1576, -inf
          %1607 = vmax.xlane.f32.xlu0 %v1606
          %v1608 = vpop.xlane.xlu0 %1607
          %v1609 = vsel %vm1148, %v1577, -inf
          %1610 = vmax.xlane.f32.xlu0 %v1609
          %v1611 = vpop.xlane.xlu0 %1610
          %v1612 = vsel %vm1148, %v1578, -inf
          %1613 = vmax.xlane.f32.xlu0 %v1612
          %v1614 = vpop.xlane.xlu0 %1613
          %v1615 = vsel %vm1148, %v1579, -inf
          %1616 = vmax.xlane.f32.xlu0 %v1615
          %v1617 = vpop.xlane.xlu0 %1616
          %v1618 = vsel %vm1148, %v1580, -inf
          %1619 = vmax.xlane.f32.xlu0 %v1618
          %v1620 = vpop.xlane.xlu0 %1619
          %v1621 = vsel %vm1148, %v1581, -inf
          %1622 = vmax.xlane.f32.xlu0 %v1621
          %v1623 = vpop.xlane.xlu0 %1622
          %v1624 = vsel %vm1148, %v1582, -inf
          %1625 = vmax.xlane.f32.xlu0 %v1624
          %v1626 = vpop.xlane.xlu0 %1625
          %v1627 = vsel %vm1148, %v1583, -inf
          %1628 = vmax.xlane.f32.xlu0 %v1627
          %v1629 = vpop.xlane.xlu0 %1628
          %v1630 = vsel %vm1148, %v1584, -inf
          %1631 = vmax.xlane.f32.xlu0 %v1630
          %v1632 = vpop.xlane.xlu0 %1631
          %v1633 = vsub.f32 %v1569, %v1587
          %v1634 = vsub.f32 %v1570, %v1590
          %v1635 = vsub.f32 %v1571, %v1593
          %v1636 = vsub.f32 %v1572, %v1596
          %v1637 = vsub.f32 %v1573, %v1599
          %v1638 = vsub.f32 %v1574, %v1602
          %v1639 = vsub.f32 %v1575, %v1605
          %v1640 = vsub.f32 %v1576, %v1608
          %v1641 = vsub.f32 %v1577, %v1611
          %v1642 = vsub.f32 %v1578, %v1614
          %v1643 = vsub.f32 %v1579, %v1617
          %v1644 = vsub.f32 %v1580, %v1620
          %v1645 = vsub.f32 %v1581, %v1623
          %v1646 = vsub.f32 %v1582, %v1626
          %v1647 = vsub.f32 %v1583, %v1629
          %v1648 = vsub.f32 %v1584, %v1632
          %v1649 = vmul.f32 %v1633, 1.442695
          %v1650 = vpow.pop %v1649
          %v1651 = vmul.f32 %v1634, 1.442695
          %v1652 = vpow.pop %v1651
          %v1653 = vmul.f32 %v1635, 1.442695
          %v1654 = vpow.pop %v1653
          %v1655 = vmul.f32 %v1636, 1.442695
          %v1656 = vpow.pop %v1655
          %v1657 = vmul.f32 %v1637, 1.442695
          %v1658 = vpow.pop %v1657
          %v1659 = vmul.f32 %v1638, 1.442695
          %v1660 = vpow.pop %v1659
          %v1661 = vmul.f32 %v1639, 1.442695
          %v1662 = vpow.pop %v1661
          %v1663 = vmul.f32 %v1640, 1.442695
          %v1664 = vpow.pop %v1663
          %v1665 = vmul.f32 %v1641, 1.442695
          %v1666 = vpow.pop %v1665
          %v1667 = vmul.f32 %v1642, 1.442695
          %v1668 = vpow.pop %v1667
          %v1669 = vmul.f32 %v1643, 1.442695
          %v1670 = vpow.pop %v1669
          %v1671 = vmul.f32 %v1644, 1.442695
          %v1672 = vpow.pop %v1671
          %v1673 = vmul.f32 %v1645, 1.442695
          %v1674 = vpow.pop %v1673
          %v1675 = vmul.f32 %v1646, 1.442695
          %v1676 = vpow.pop %v1675
          %v1677 = vmul.f32 %v1647, 1.442695
          %v1678 = vpow.pop %v1677
          %v1679 = vmul.f32 %v1648, 1.442695
          %v1680 = vpow.pop %v1679
          %v1681 = vsel %vm1148, %v1650, 0.0
          %1682 = vadd.xlane.f32.xlu0 %v1681
          %v1683 = vpop.xlane.xlu0 %1682
          %v1684 = vsel %vm1148, %v1652, 0.0
          %1685 = vadd.xlane.f32.xlu0 %v1684
          %v1686 = vpop.xlane.xlu0 %1685
          %v1687 = vsel %vm1148, %v1654, 0.0
          %1688 = vadd.xlane.f32.xlu0 %v1687
          %v1689 = vpop.xlane.xlu0 %1688
          %v1690 = vsel %vm1148, %v1656, 0.0
          %1691 = vadd.xlane.f32.xlu0 %v1690
          %v1692 = vpop.xlane.xlu0 %1691
          %v1693 = vsel %vm1148, %v1658, 0.0
          %1694 = vadd.xlane.f32.xlu0 %v1693
          %v1695 = vpop.xlane.xlu0 %1694
          %v1696 = vsel %vm1148, %v1660, 0.0
          %1697 = vadd.xlane.f32.xlu0 %v1696
          %v1698 = vpop.xlane.xlu0 %1697
          %v1699 = vsel %vm1148, %v1662, 0.0
          %1700 = vadd.xlane.f32.xlu0 %v1699
          %v1701 = vpop.xlane.xlu0 %1700
          %v1702 = vsel %vm1148, %v1664, 0.0
          %1703 = vadd.xlane.f32.xlu0 %v1702
          %v1704 = vpop.xlane.xlu0 %1703
          %v1705 = vsel %vm1148, %v1666, 0.0
          %1706 = vadd.xlane.f32.xlu0 %v1705
          %v1707 = vpop.xlane.xlu0 %1706
          %v1708 = vsel %vm1148, %v1668, 0.0
          %1709 = vadd.xlane.f32.xlu0 %v1708
          %v1710 = vpop.xlane.xlu0 %1709
          %v1711 = vsel %vm1148, %v1670, 0.0
          %1712 = vadd.xlane.f32.xlu0 %v1711
          %v1713 = vpop.xlane.xlu0 %1712
          %v1714 = vsel %vm1148, %v1672, 0.0
          %1715 = vadd.xlane.f32.xlu0 %v1714
          %v1716 = vpop.xlane.xlu0 %1715
          %v1717 = vsel %vm1148, %v1674, 0.0
          %1718 = vadd.xlane.f32.xlu0 %v1717
          %v1719 = vpop.xlane.xlu0 %1718
          %v1720 = vsel %vm1148, %v1676, 0.0
          %1721 = vadd.xlane.f32.xlu0 %v1720
          %v1722 = vpop.xlane.xlu0 %1721
          %v1723 = vsel %vm1148, %v1678, 0.0
          %1724 = vadd.xlane.f32.xlu0 %v1723
          %v1725 = vpop.xlane.xlu0 %1724
          %v1726 = vsel %vm1148, %v1680, 0.0
          %1727 = vadd.xlane.f32.xlu0 %v1726
          %v1728 = vpop.xlane.xlu0 %1727
          %v1729 = vrcp.pop %v1683
          %v1730 = vmul.f32 %v1650, %v1729
          %v1731 = vrcp.pop %v1686
          %v1732 = vmul.f32 %v1652, %v1731
          %v1733 = vrcp.pop %v1689
          %v1734 = vmul.f32 %v1654, %v1733
          %v1735 = vrcp.pop %v1692
          %v1736 = vmul.f32 %v1656, %v1735
          %v1737 = vrcp.pop %v1695
          %v1738 = vmul.f32 %v1658, %v1737
          %v1739 = vrcp.pop %v1698
          %v1740 = vmul.f32 %v1660, %v1739
          %v1741 = vrcp.pop %v1701
          %v1742 = vmul.f32 %v1662, %v1741
          %v1743 = vrcp.pop %v1704
          %v1744 = vmul.f32 %v1664, %v1743
          %v1745 = vrcp.pop %v1707
          %v1746 = vmul.f32 %v1666, %v1745
          %v1747 = vrcp.pop %v1710
          %v1748 = vmul.f32 %v1668, %v1747
          %v1749 = vrcp.pop %v1713
          %v1750 = vmul.f32 %v1670, %v1749
          %v1751 = vrcp.pop %v1716
          %v1752 = vmul.f32 %v1672, %v1751
          %v1753 = vrcp.pop %v1719
          %v1754 = vmul.f32 %v1674, %v1753
          %v1755 = vrcp.pop %v1722
          %v1756 = vmul.f32 %v1676, %v1755
          %v1757 = vrcp.pop %v1725
          %v1758 = vmul.f32 %v1678, %v1757
          %v1759 = vrcp.pop %v1728
          %v1760 = vmul.f32 %v1680, %v1759
          %v1762 = vsel %vm1148, %v1730, 0
          %v1765 = vsel %vm1148, %v1732, 0
          %v1768 = vsel %vm1148, %v1734, 0
          %v1771 = vsel %vm1148, %v1736, 0
          %1773 = vmatprep.subr.mxu0 0.0
          %1774 = vmatpush1.msra.mxu0 0.0
          %1775 = vmatprep.subr.mxu0 0.0
          %1776 = vmatpush1.msra.mxu0 0.0
          %1777 = vmatprep.subr.mxu0 0.0
          %1778 = vmatpush1.msra.mxu0 0.0
          %1779 = vmatprep.subr.mxu0 0.0
          %1780 = vmatpush1.msra.mxu0 0.0
          %1781 = vmatprep.subr.mxu0 0.0
          %1782 = vmatpush1.msra.mxu0 0.0
          %1783 = vmatprep.subr.mxu0 0.0
          %1784 = vmatpush1.msra.mxu0 0.0
          %1785 = vmatprep.subr.mxu0 0.0
          %1786 = vmatpush1.msra.mxu0 0.0
          %1787 = vmatprep.subr.mxu0 0.0
          %1788 = vmatpush1.msra.mxu0 0.0
          %1789 = vmatprep.subr.mxu0 0.0
          %1790 = vmatpush1.msra.mxu0 0.0
          %1791 = vmatprep.subr.mxu0 0.0
          %1792 = vmatpush1.msra.mxu0 0.0
          %1793 = vmatprep.subr.mxu0 0.0
          %1794 = vmatpush1.msra.mxu0 0.0
          %1795 = vmatprep.subr.mxu0 0.0
          %1796 = vmatpush1.msra.mxu0 0.0
          %1797 = vmatprep.subr.mxu0 0.0
          %1798 = vmatpush1.msra.mxu0 %v1049
          %1799 = vmatprep.subr.mxu0 0.0
          %1800 = vmatpush1.msra.mxu0 %v1046
          %1801 = vmatprep.subr.mxu0 0.0
          %1802 = vmatpush1.msra.mxu0 %v1041
          %1803 = vmatprep.subr.mxu0 0.0
          %1804 = vmatpush1.msra.mxu0 %v1038
          %1805 = vmatprep.subr.mxu0 0.0
          %1806 = vmatpush2.msra.mxu0 0.0
          %1807 = vmatprep.subr.mxu0 0.0
          %1808 = vmatpush2.msra.mxu0 0.0
          %1809 = vmatprep.subr.mxu0 0.0
          %1810 = vmatpush2.msra.mxu0 0.0
          %1811 = vmatprep.subr.mxu0 0.0
          %1812 = vmatpush2.msra.mxu0 0.0
          %1813 = vmatprep.subr.mxu0 0.0
          %1814 = vmatpush2.msra.mxu0 0.0
          %1815 = vmatprep.subr.mxu0 0.0
          %1816 = vmatpush2.msra.mxu0 0.0
          %1817 = vmatprep.subr.mxu0 0.0
          %1818 = vmatpush2.msra.mxu0 0.0
          %1819 = vmatprep.subr.mxu0 0.0
          %1820 = vmatpush2.msra.mxu0 0.0
          %1821 = vmatprep.subr.mxu0 0.0
          %1822 = vmatpush2.msra.mxu0 0.0
          %1823 = vmatprep.subr.mxu0 0.0
          %1824 = vmatpush2.msra.mxu0 0.0
          %1825 = vmatprep.subr.mxu0 0.0
          %1826 = vmatpush2.msra.mxu0 0.0
          %1827 = vmatprep.subr.mxu0 0.0
          %1828 = vmatpush2.msra.mxu0 0.0
          %1829 = vmatprep.subr.mxu0 0.0
          %1830 = vmatpush2.msra.mxu0 0.0
          %1831 = vmatprep.subr.mxu0 0.0
          %1832 = vmatpush2.msra.mxu0 0.0
          %1833 = vmatprep.subr.mxu0 0.0
          %1834 = vmatpush2.msra.mxu0 0.0
          %1835 = vmatprep.subr.mxu0 0.0
          %1836 = vmatpush2.msra.mxu0 0.0
          %1837 = vmatprep.mubr.f32.mxu0 0.0
          %1838 = vmatmul.mubr.f32.gmra.mxu0 %v1762
          %v1839 = vpop.f32.mrf.mxu0
          %v1840 = vadd.f32 0.0, %v1839
          %v1841 = vpop.f32.mrf.mxu0
          %1842 = vmatprep.mubr.f32.mxu0 0.0
          %1843 = vmatmul.mubr.f32.gmra.mxu0 %v1765
          %v1844 = vpop.f32.mrf.mxu0
          %v1845 = vadd.f32 0.0, %v1844
          %v1846 = vpop.f32.mrf.mxu0
          %1847 = vmatprep.mubr.f32.mxu0 0.0
          %1848 = vmatmul.mubr.f32.gmra.mxu0 %v1768
          %v1849 = vpop.f32.mrf.mxu0
          %v1850 = vadd.f32 0.0, %v1849
          %v1851 = vpop.f32.mrf.mxu0
          %1852 = vmatprep.mubr.f32.mxu0 0.0
          %1853 = vmatmul.mubr.f32.gmra.mxu0 %v1771
          %v1854 = vpop.f32.mrf.mxu0
          %v1855 = vadd.f32 0.0, %v1854
          %v1856 = vpop.f32.mrf.mxu0
          %1857 = vdwg.mxu0
          %v1859 = vsel %vm1148, %v1738, 0
          %v1862 = vsel %vm1148, %v1740, 0
          %v1865 = vsel %vm1148, %v1742, 0
          %v1868 = vsel %vm1148, %v1744, 0
          %1870 = vmatprep.subr.mxu0 0.0
          %1871 = vmatpush1.msra.mxu0 0.0
          %1872 = vmatprep.subr.mxu0 0.0
          %1873 = vmatpush1.msra.mxu0 0.0
          %1874 = vmatprep.subr.mxu0 0.0
          %1875 = vmatpush1.msra.mxu0 0.0
          %1876 = vmatprep.subr.mxu0 0.0
          %1877 = vmatpush1.msra.mxu0 0.0
          %1878 = vmatprep.subr.mxu0 0.0
          %1879 = vmatpush1.msra.mxu0 0.0
          %1880 = vmatprep.subr.mxu0 0.0
          %1881 = vmatpush1.msra.mxu0 0.0
          %1882 = vmatprep.subr.mxu0 0.0
          %1883 = vmatpush1.msra.mxu0 0.0
          %1884 = vmatprep.subr.mxu0 0.0
          %1885 = vmatpush1.msra.mxu0 0.0
          %1886 = vmatprep.subr.mxu0 0.0
          %1887 = vmatpush1.msra.mxu0 0.0
          %1888 = vmatprep.subr.mxu0 0.0
          %1889 = vmatpush1.msra.mxu0 0.0
          %1890 = vmatprep.subr.mxu0 0.0
          %1891 = vmatpush1.msra.mxu0 0.0
          %1892 = vmatprep.subr.mxu0 0.0
          %1893 = vmatpush1.msra.mxu0 0.0
          %1894 = vmatprep.subr.mxu0 0.0
          %1895 = vmatpush1.msra.mxu0 %v1119
          %1896 = vmatprep.subr.mxu0 0.0
          %1897 = vmatpush1.msra.mxu0 %v1117
          %1898 = vmatprep.subr.mxu0 0.0
          %1899 = vmatpush1.msra.mxu0 %v1115
          %1900 = vmatprep.subr.mxu0 0.0
          %1901 = vmatpush1.msra.mxu0 %v1113
          %1902 = vmatprep.subr.mxu0 0.0
          %1903 = vmatpush2.msra.mxu0 0.0
          %1904 = vmatprep.subr.mxu0 0.0
          %1905 = vmatpush2.msra.mxu0 0.0
          %1906 = vmatprep.subr.mxu0 0.0
          %1907 = vmatpush2.msra.mxu0 0.0
          %1908 = vmatprep.subr.mxu0 0.0
          %1909 = vmatpush2.msra.mxu0 0.0
          %1910 = vmatprep.subr.mxu0 0.0
          %1911 = vmatpush2.msra.mxu0 0.0
          %1912 = vmatprep.subr.mxu0 0.0
          %1913 = vmatpush2.msra.mxu0 0.0
          %1914 = vmatprep.subr.mxu0 0.0
          %1915 = vmatpush2.msra.mxu0 0.0
          %1916 = vmatprep.subr.mxu0 0.0
          %1917 = vmatpush2.msra.mxu0 0.0
          %1918 = vmatprep.subr.mxu0 0.0
          %1919 = vmatpush2.msra.mxu0 0.0
          %1920 = vmatprep.subr.mxu0 0.0
          %1921 = vmatpush2.msra.mxu0 0.0
          %1922 = vmatprep.subr.mxu0 0.0
          %1923 = vmatpush2.msra.mxu0 0.0
          %1924 = vmatprep.subr.mxu0 0.0
          %1925 = vmatpush2.msra.mxu0 0.0
          %1926 = vmatprep.subr.mxu0 0.0
          %1927 = vmatpush2.msra.mxu0 0.0
          %1928 = vmatprep.subr.mxu0 0.0
          %1929 = vmatpush2.msra.mxu0 0.0
          %1930 = vmatprep.subr.mxu0 0.0
          %1931 = vmatpush2.msra.mxu0 0.0
          %1932 = vmatprep.subr.mxu0 0.0
          %1933 = vmatpush2.msra.mxu0 0.0
          %1934 = vmatprep.mubr.f32.mxu0 0.0
          %1935 = vmatmul.mubr.f32.gmra.mxu0 %v1859
          %v1936 = vpop.f32.mrf.mxu0
          %v1937 = vadd.f32 0.0, %v1936
          %v1938 = vpop.f32.mrf.mxu0
          %1939 = vmatprep.mubr.f32.mxu0 0.0
          %1940 = vmatmul.mubr.f32.gmra.mxu0 %v1862
          %v1941 = vpop.f32.mrf.mxu0
          %v1942 = vadd.f32 0.0, %v1941
          %v1943 = vpop.f32.mrf.mxu0
          %1944 = vmatprep.mubr.f32.mxu0 0.0
          %1945 = vmatmul.mubr.f32.gmra.mxu0 %v1865
          %v1946 = vpop.f32.mrf.mxu0
          %v1947 = vadd.f32 0.0, %v1946
          %v1948 = vpop.f32.mrf.mxu0
          %1949 = vmatprep.mubr.f32.mxu0 0.0
          %1950 = vmatmul.mubr.f32.gmra.mxu0 %v1868
          %v1951 = vpop.f32.mrf.mxu0
          %v1952 = vadd.f32 0.0, %v1951
          %v1953 = vpop.f32.mrf.mxu0
          %1954 = vdwg.mxu0
          %v1956 = vsel %vm1148, %v1746, 0
          %v1959 = vsel %vm1148, %v1748, 0
          %v1962 = vsel %vm1148, %v1750, 0
          %v1965 = vsel %vm1148, %v1752, 0
          %1967 = vmatprep.subr.mxu0 0.0
          %1968 = vmatpush1.msra.mxu0 0.0
          %1969 = vmatprep.subr.mxu0 0.0
          %1970 = vmatpush1.msra.mxu0 0.0
          %1971 = vmatprep.subr.mxu0 0.0
          %1972 = vmatpush1.msra.mxu0 0.0
          %1973 = vmatprep.subr.mxu0 0.0
          %1974 = vmatpush1.msra.mxu0 0.0
          %1975 = vmatprep.subr.mxu0 0.0
          %1976 = vmatpush1.msra.mxu0 0.0
          %1977 = vmatprep.subr.mxu0 0.0
          %1978 = vmatpush1.msra.mxu0 0.0
          %1979 = vmatprep.subr.mxu0 0.0
          %1980 = vmatpush1.msra.mxu0 0.0
          %1981 = vmatprep.subr.mxu0 0.0
          %1982 = vmatpush1.msra.mxu0 0.0
          %1983 = vmatprep.subr.mxu0 0.0
          %1984 = vmatpush1.msra.mxu0 0.0
          %1985 = vmatprep.subr.mxu0 0.0
          %1986 = vmatpush1.msra.mxu0 0.0
          %1987 = vmatprep.subr.mxu0 0.0
          %1988 = vmatpush1.msra.mxu0 0.0
          %1989 = vmatprep.subr.mxu0 0.0
          %1990 = vmatpush1.msra.mxu0 0.0
          %1991 = vmatprep.subr.mxu0 0.0
          %1992 = vmatpush1.msra.mxu0 %v1131
          %1993 = vmatprep.subr.mxu0 0.0
          %1994 = vmatpush1.msra.mxu0 %v1129
          %1995 = vmatprep.subr.mxu0 0.0
          %1996 = vmatpush1.msra.mxu0 %v1127
          %1997 = vmatprep.subr.mxu0 0.0
          %1998 = vmatpush1.msra.mxu0 %v1125
          %1999 = vmatprep.subr.mxu0 0.0
          %2000 = vmatpush2.msra.mxu0 0.0
          %2001 = vmatprep.subr.mxu0 0.0
          %2002 = vmatpush2.msra.mxu0 0.0
          %2003 = vmatprep.subr.mxu0 0.0
          %2004 = vmatpush2.msra.mxu0 0.0
          %2005 = vmatprep.subr.mxu0 0.0
          %2006 = vmatpush2.msra.mxu0 0.0
          %2007 = vmatprep.subr.mxu0 0.0
          %2008 = vmatpush2.msra.mxu0 0.0
          %2009 = vmatprep.subr.mxu0 0.0
          %2010 = vmatpush2.msra.mxu0 0.0
          %2011 = vmatprep.subr.mxu0 0.0
          %2012 = vmatpush2.msra.mxu0 0.0
          %2013 = vmatprep.subr.mxu0 0.0
          %2014 = vmatpush2.msra.mxu0 0.0
          %2015 = vmatprep.subr.mxu0 0.0
          %2016 = vmatpush2.msra.mxu0 0.0
          %2017 = vmatprep.subr.mxu0 0.0
          %2018 = vmatpush2.msra.mxu0 0.0
          %2019 = vmatprep.subr.mxu0 0.0
          %2020 = vmatpush2.msra.mxu0 0.0
          %2021 = vmatprep.subr.mxu0 0.0
          %2022 = vmatpush2.msra.mxu0 0.0
          %2023 = vmatprep.subr.mxu0 0.0
          %2024 = vmatpush2.msra.mxu0 0.0
          %2025 = vmatprep.subr.mxu0 0.0
          %2026 = vmatpush2.msra.mxu0 0.0
          %2027 = vmatprep.subr.mxu0 0.0
          %2028 = vmatpush2.msra.mxu0 0.0
          %2029 = vmatprep.subr.mxu0 0.0
          %2030 = vmatpush2.msra.mxu0 0.0
          %2031 = vmatprep.mubr.f32.mxu0 0.0
          %2032 = vmatmul.mubr.f32.gmra.mxu0 %v1956
          %v2033 = vpop.f32.mrf.mxu0
          %v2034 = vadd.f32 0.0, %v2033
          %v2035 = vpop.f32.mrf.mxu0
          %2036 = vmatprep.mubr.f32.mxu0 0.0
          %2037 = vmatmul.mubr.f32.gmra.mxu0 %v1959
          %v2038 = vpop.f32.mrf.mxu0
          %v2039 = vadd.f32 0.0, %v2038
          %v2040 = vpop.f32.mrf.mxu0
          %2041 = vmatprep.mubr.f32.mxu0 0.0
          %2042 = vmatmul.mubr.f32.gmra.mxu0 %v1962
          %v2043 = vpop.f32.mrf.mxu0
          %v2044 = vadd.f32 0.0, %v2043
          %v2045 = vpop.f32.mrf.mxu0
          %2046 = vmatprep.mubr.f32.mxu0 0.0
          %2047 = vmatmul.mubr.f32.gmra.mxu0 %v1965
          %v2048 = vpop.f32.mrf.mxu0
          %v2049 = vadd.f32 0.0, %v2048
          %v2050 = vpop.f32.mrf.mxu0
          %2051 = vdwg.mxu0
          %v2053 = vsel %vm1148, %v1754, 0
          %v2056 = vsel %vm1148, %v1756, 0
          %v2059 = vsel %vm1148, %v1758, 0
          %v2062 = vsel %vm1148, %v1760, 0
          %2064 = vmatprep.subr.mxu0 0.0
          %2065 = vmatpush1.msra.mxu0 0.0
          %2066 = vmatprep.subr.mxu0 0.0
          %2067 = vmatpush1.msra.mxu0 0.0
          %2068 = vmatprep.subr.mxu0 0.0
          %2069 = vmatpush1.msra.mxu0 0.0
          %2070 = vmatprep.subr.mxu0 0.0
          %2071 = vmatpush1.msra.mxu0 0.0
          %2072 = vmatprep.subr.mxu0 0.0
          %2073 = vmatpush1.msra.mxu0 0.0
          %2074 = vmatprep.subr.mxu0 0.0
          %2075 = vmatpush1.msra.mxu0 0.0
          %2076 = vmatprep.subr.mxu0 0.0
          %2077 = vmatpush1.msra.mxu0 0.0
          %2078 = vmatprep.subr.mxu0 0.0
          %2079 = vmatpush1.msra.mxu0 0.0
          %2080 = vmatprep.subr.mxu0 0.0
          %2081 = vmatpush1.msra.mxu0 0.0
          %2082 = vmatprep.subr.mxu0 0.0
          %2083 = vmatpush1.msra.mxu0 0.0
          %2084 = vmatprep.subr.mxu0 0.0
          %2085 = vmatpush1.msra.mxu0 0.0
          %2086 = vmatprep.subr.mxu0 0.0
          %2087 = vmatpush1.msra.mxu0 0.0
          %2088 = vmatprep.subr.mxu0 0.0
          %2089 = vmatpush1.msra.mxu0 %v1143
          %2090 = vmatprep.subr.mxu0 0.0
          %2091 = vmatpush1.msra.mxu0 %v1141
          %2092 = vmatprep.subr.mxu0 0.0
          %2093 = vmatpush1.msra.mxu0 %v1139
          %2094 = vmatprep.subr.mxu0 0.0
          %2095 = vmatpush1.msra.mxu0 %v1137
          %2096 = vmatprep.subr.mxu0 0.0
          %2097 = vmatpush2.msra.mxu0 0.0
          %2098 = vmatprep.subr.mxu0 0.0
          %2099 = vmatpush2.msra.mxu0 0.0
          %2100 = vmatprep.subr.mxu0 0.0
          %2101 = vmatpush2.msra.mxu0 0.0
          %2102 = vmatprep.subr.mxu0 0.0
          %2103 = vmatpush2.msra.mxu0 0.0
          %2104 = vmatprep.subr.mxu0 0.0
          %2105 = vmatpush2.msra.mxu0 0.0
          %2106 = vmatprep.subr.mxu0 0.0
          %2107 = vmatpush2.msra.mxu0 0.0
          %2108 = vmatprep.subr.mxu0 0.0
          %2109 = vmatpush2.msra.mxu0 0.0
          %2110 = vmatprep.subr.mxu0 0.0
          %2111 = vmatpush2.msra.mxu0 0.0
          %2112 = vmatprep.subr.mxu0 0.0
          %2113 = vmatpush2.msra.mxu0 0.0
          %2114 = vmatprep.subr.mxu0 0.0
          %2115 = vmatpush2.msra.mxu0 0.0
          %2116 = vmatprep.subr.mxu0 0.0
          %2117 = vmatpush2.msra.mxu0 0.0
          %2118 = vmatprep.subr.mxu0 0.0
          %2119 = vmatpush2.msra.mxu0 0.0
          %2120 = vmatprep.subr.mxu0 0.0
          %2121 = vmatpush2.msra.mxu0 0.0
          %2122 = vmatprep.subr.mxu0 0.0
          %2123 = vmatpush2.msra.mxu0 0.0
          %2124 = vmatprep.subr.mxu0 0.0
          %2125 = vmatpush2.msra.mxu0 0.0
          %2126 = vmatprep.subr.mxu0 0.0
          %2127 = vmatpush2.msra.mxu0 0.0
          %2128 = vmatprep.mubr.f32.mxu0 0.0
          %2129 = vmatmul.mubr.f32.gmra.mxu0 %v2053
          %v2130 = vpop.f32.mrf.mxu0
          %v2131 = vadd.f32 0.0, %v2130
          %v2132 = vpop.f32.mrf.mxu0
          %2133 = vmatprep.mubr.f32.mxu0 0.0
          %2134 = vmatmul.mubr.f32.gmra.mxu0 %v2056
          %v2135 = vpop.f32.mrf.mxu0
          %v2136 = vadd.f32 0.0, %v2135
          %v2137 = vpop.f32.mrf.mxu0
          %2138 = vmatprep.mubr.f32.mxu0 0.0
          %2139 = vmatmul.mubr.f32.gmra.mxu0 %v2059
          %v2140 = vpop.f32.mrf.mxu0
          %v2141 = vadd.f32 0.0, %v2140
          %v2142 = vpop.f32.mrf.mxu0
          %2143 = vmatprep.mubr.f32.mxu0 0.0
          %2144 = vmatmul.mubr.f32.gmra.mxu0 %v2062
          %v2145 = vpop.f32.mrf.mxu0
          %v2146 = vadd.f32 0.0, %v2145
          %v2147 = vpop.f32.mrf.mxu0
          %2148 = vdwg.mxu0
          %v2149 = vpack.c.bf16 %v1845, %v1840
          %v2150 = vpack.c.bf16 %v1855, %v1850
          %v2151 = vpack.c.bf16 %v1942, %v1937
          %v2152 = vpack.c.bf16 %v1952, %v1947
          %v2157 = vunpack.c.l.b16 %v628
          %v2158 = vunpack.c.l.b16 %v629
          %v2159 = vunpack.c.l.b16 %v630
          %v2160 = vunpack.c.l.b16 %v631
          %v2161 = vpack.c.b16 %v2158, %v2157
          %v2162 = vpack.c.b16 %v2160, %v2159
          %v2166 = vsel %vm1148, %v2151, 0
          %v2169 = vsel %vm1148, %v2152, 0
          %2171 = vmatprep.subr.bf16.mxu0 0
          %2172 = vmatpush1.bf16.msra.mxu0 0
          %2173 = vmatprep.subr.bf16.mxu0 0
          %2174 = vmatpush1.bf16.msra.mxu0 0
          %2175 = vmatprep.subr.bf16.mxu0 0
          %2176 = vmatpush1.bf16.msra.mxu0 0
          %2177 = vmatprep.subr.bf16.mxu0 0
          %2178 = vmatpush1.bf16.msra.mxu0 0
          %2179 = vmatprep.subr.bf16.mxu0 0
          %2180 = vmatpush1.bf16.msra.mxu0 0
          %2181 = vmatprep.subr.bf16.mxu0 0
          %2182 = vmatpush1.bf16.msra.mxu0 0
          %2183 = vmatprep.subr.bf16.mxu0 0
          %2184 = vmatpush1.bf16.msra.mxu0 %v2162
          %2185 = vmatprep.subr.bf16.mxu0 0
          %2186 = vmatpush1.bf16.msra.mxu0 %v2161
          %2187 = vmatprep.subr.bf16.mxu0 0
          %2188 = vmatpush2.bf16.msra.mxu0 0
          %2189 = vmatprep.subr.bf16.mxu0 0
          %2190 = vmatpush2.bf16.msra.mxu0 0
          %2191 = vmatprep.subr.bf16.mxu0 0
          %2192 = vmatpush2.bf16.msra.mxu0 0
          %2193 = vmatprep.subr.bf16.mxu0 0
          %2194 = vmatpush2.bf16.msra.mxu0 0
          %2195 = vmatprep.subr.bf16.mxu0 0
          %2196 = vmatpush2.bf16.msra.mxu0 0
          %2197 = vmatprep.subr.bf16.mxu0 0
          %2198 = vmatpush2.bf16.msra.mxu0 0
          %2199 = vmatprep.subr.bf16.mxu0 0
          %2200 = vmatpush2.bf16.msra.mxu0 0
          %2201 = vmatprep.subr.bf16.mxu0 0
          %2202 = vmatpush2.bf16.msra.mxu0 0
          %2203 = vmatprep.mubr.bf16.mxu0 0
          %2204 = vmatmul.mubr.bf16.gmra.mxu0 %v2166
          %v2205 = vpop.f32.mrf.mxu0
          %v2206 = vadd.f32 0.0, %v2205
          %v2207 = vpop.f32.mrf.mxu0
          %v2208 = vpop.f32.mrf.mxu0
          %v2209 = vadd.f32 0.0, %v2208
          %v2210 = vpop.f32.mrf.mxu0
          %2211 = vmatprep.mubr.bf16.mxu0 0
          %2212 = vmatmul.mubr.bf16.gmra.mxu0 %v2169
          %v2213 = vpop.f32.mrf.mxu0
          %v2214 = vadd.f32 0.0, %v2213
          %v2215 = vpop.f32.mrf.mxu0
          %v2216 = vpop.f32.mrf.mxu0
          %v2217 = vadd.f32 0.0, %v2216
          %v2218 = vpop.f32.mrf.mxu0
          %2219 = vdwg.mxu0
          %v2224 = vunpack.c.l.b16 %v624
          %v2225 = vunpack.c.l.b16 %v625
          %v2226 = vunpack.c.l.b16 %v626
          %v2227 = vunpack.c.l.b16 %v627
          %v2228 = vpack.c.b16 %v2225, %v2224
          %v2229 = vpack.c.b16 %v2227, %v2226
          %v2233 = vsel %vm1148, %v2149, 0
          %v2236 = vsel %vm1148, %v2150, 0
          %2238 = vmatprep.subr.bf16.mxu0 0
          %2239 = vmatpush1.bf16.msra.mxu0 0
          %2240 = vmatprep.subr.bf16.mxu0 0
          %2241 = vmatpush1.bf16.msra.mxu0 0
          %2242 = vmatprep.subr.bf16.mxu0 0
          %2243 = vmatpush1.bf16.msra.mxu0 0
          %2244 = vmatprep.subr.bf16.mxu0 0
          %2245 = vmatpush1.bf16.msra.mxu0 0
          %2246 = vmatprep.subr.bf16.mxu0 0
          %2247 = vmatpush1.bf16.msra.mxu0 0
          %2248 = vmatprep.subr.bf16.mxu0 0
          %2249 = vmatpush1.bf16.msra.mxu0 0
          %2250 = vmatprep.subr.bf16.mxu0 0
          %2251 = vmatpush1.bf16.msra.mxu0 %v2229
          %2252 = vmatprep.subr.bf16.mxu0 0
          %2253 = vmatpush1.bf16.msra.mxu0 %v2228
          %2254 = vmatprep.subr.bf16.mxu0 0
          %2255 = vmatpush2.bf16.msra.mxu0 0
          %2256 = vmatprep.subr.bf16.mxu0 0
          %2257 = vmatpush2.bf16.msra.mxu0 0
          %2258 = vmatprep.subr.bf16.mxu0 0
          %2259 = vmatpush2.bf16.msra.mxu0 0
          %2260 = vmatprep.subr.bf16.mxu0 0
          %2261 = vmatpush2.bf16.msra.mxu0 0
          %2262 = vmatprep.subr.bf16.mxu0 0
          %2263 = vmatpush2.bf16.msra.mxu0 0
          %2264 = vmatprep.subr.bf16.mxu0 0
          %2265 = vmatpush2.bf16.msra.mxu0 0
          %2266 = vmatprep.subr.bf16.mxu0 0
          %2267 = vmatpush2.bf16.msra.mxu0 0
          %2268 = vmatprep.subr.bf16.mxu0 0
          %2269 = vmatpush2.bf16.msra.mxu0 0
          %2270 = vmatprep.mubr.bf16.mxu0 0
          %2271 = vmatmul.mubr.bf16.gmra.mxu0 %v2233
          %v2272 = vpop.f32.mrf.mxu0
          %v2273 = vadd.f32 %v2206, %v2272
          %v2274 = vpop.f32.mrf.mxu0
          %v2275 = vpop.f32.mrf.mxu0
          %v2276 = vadd.f32 %v2209, %v2275
          %v2277 = vpop.f32.mrf.mxu0
          %2278 = vmatprep.mubr.bf16.mxu0 0
          %2279 = vmatmul.mubr.bf16.gmra.mxu0 %v2236
          %v2280 = vpop.f32.mrf.mxu0
          %v2281 = vadd.f32 %v2214, %v2280
          %v2282 = vpop.f32.mrf.mxu0
          %v2283 = vpop.f32.mrf.mxu0
          %v2284 = vadd.f32 %v2217, %v2283
          %v2285 = vpop.f32.mrf.mxu0
          %2286 = vdwg.mxu0
          %v2287 = vpack.c.bf16 %v2039, %v2034
          %v2288 = vpack.c.bf16 %v2049, %v2044
          %v2293 = vunpack.c.l.b16 %v632
          %v2294 = vunpack.c.l.b16 %v633
          %v2295 = vunpack.c.l.b16 %v634
          %v2296 = vunpack.c.l.b16 %v635
          %v2297 = vpack.c.b16 %v2294, %v2293
          %v2298 = vpack.c.b16 %v2296, %v2295
          %v2302 = vsel %vm1148, %v2287, 0
          %v2305 = vsel %vm1148, %v2288, 0
          %2307 = vmatprep.subr.bf16.mxu0 0
          %2308 = vmatpush1.bf16.msra.mxu0 0
          %2309 = vmatprep.subr.bf16.mxu0 0
          %2310 = vmatpush1.bf16.msra.mxu0 0
          %2311 = vmatprep.subr.bf16.mxu0 0
          %2312 = vmatpush1.bf16.msra.mxu0 0
          %2313 = vmatprep.subr.bf16.mxu0 0
          %2314 = vmatpush1.bf16.msra.mxu0 0
          %2315 = vmatprep.subr.bf16.mxu0 0
          %2316 = vmatpush1.bf16.msra.mxu0 0
          %2317 = vmatprep.subr.bf16.mxu0 0
          %2318 = vmatpush1.bf16.msra.mxu0 0
          %2319 = vmatprep.subr.bf16.mxu0 0
          %2320 = vmatpush1.bf16.msra.mxu0 %v2298
          %2321 = vmatprep.subr.bf16.mxu0 0
          %2322 = vmatpush1.bf16.msra.mxu0 %v2297
          %2323 = vmatprep.subr.bf16.mxu0 0
          %2324 = vmatpush2.bf16.msra.mxu0 0
          %2325 = vmatprep.subr.bf16.mxu0 0
          %2326 = vmatpush2.bf16.msra.mxu0 0
          %2327 = vmatprep.subr.bf16.mxu0 0
          %2328 = vmatpush2.bf16.msra.mxu0 0
          %2329 = vmatprep.subr.bf16.mxu0 0
          %2330 = vmatpush2.bf16.msra.mxu0 0
          %2331 = vmatprep.subr.bf16.mxu0 0
          %2332 = vmatpush2.bf16.msra.mxu0 0
          %2333 = vmatprep.subr.bf16.mxu0 0
          %2334 = vmatpush2.bf16.msra.mxu0 0
          %2335 = vmatprep.subr.bf16.mxu0 0
          %2336 = vmatpush2.bf16.msra.mxu0 0
          %2337 = vmatprep.subr.bf16.mxu0 0
          %2338 = vmatpush2.bf16.msra.mxu0 0
          %2339 = vmatprep.mubr.bf16.mxu0 0
          %2340 = vmatmul.mubr.bf16.gmra.mxu0 %v2302
          %v2341 = vpop.f32.mrf.mxu0
          %v2342 = vadd.f32 0.0, %v2341
          %v2343 = vpop.f32.mrf.mxu0
          %v2344 = vpop.f32.mrf.mxu0
          %v2345 = vadd.f32 0.0, %v2344
          %v2346 = vpop.f32.mrf.mxu0
          %2347 = vmatprep.mubr.bf16.mxu0 0
          %2348 = vmatmul.mubr.bf16.gmra.mxu0 %v2305
          %v2349 = vpop.f32.mrf.mxu0
          %v2350 = vadd.f32 0.0, %v2349
          %v2351 = vpop.f32.mrf.mxu0
          %v2352 = vpop.f32.mrf.mxu0
          %v2353 = vadd.f32 0.0, %v2352
          %v2354 = vpop.f32.mrf.mxu0
          %2355 = vdwg.mxu0
          %v2356 = vadd.f32 %v2273, %v2342
          %v2357 = vadd.f32 %v2276, %v2345
          %v2358 = vadd.f32 %v2281, %v2350
          %v2359 = vadd.f32 %v2284, %v2353
          %v2360 = vpack.c.bf16 %v2136, %v2131
          %v2361 = vpack.c.bf16 %v2146, %v2141
          %v2366 = vunpack.c.l.b16 %v636
          %v2367 = vunpack.c.l.b16 %v637
          %v2368 = vunpack.c.l.b16 %v638
          %v2369 = vunpack.c.l.b16 %v639
          %v2370 = vpack.c.b16 %v2367, %v2366
          %v2371 = vpack.c.b16 %v2369, %v2368
          %v2375 = vsel %vm1148, %v2360, 0
          %v2378 = vsel %vm1148, %v2361, 0
          %2380 = vmatprep.subr.bf16.mxu0 0
          %2381 = vmatpush1.bf16.msra.mxu0 0
          %2382 = vmatprep.subr.bf16.mxu0 0
          %2383 = vmatpush1.bf16.msra.mxu0 0
          %2384 = vmatprep.subr.bf16.mxu0 0
          %2385 = vmatpush1.bf16.msra.mxu0 0
          %2386 = vmatprep.subr.bf16.mxu0 0
          %2387 = vmatpush1.bf16.msra.mxu0 0
          %2388 = vmatprep.subr.bf16.mxu0 0
          %2389 = vmatpush1.bf16.msra.mxu0 0
          %2390 = vmatprep.subr.bf16.mxu0 0
          %2391 = vmatpush1.bf16.msra.mxu0 0
          %2392 = vmatprep.subr.bf16.mxu0 0
          %2393 = vmatpush1.bf16.msra.mxu0 %v2371
          %2394 = vmatprep.subr.bf16.mxu0 0
          %2395 = vmatpush1.bf16.msra.mxu0 %v2370
          %2396 = vmatprep.subr.bf16.mxu0 0
          %2397 = vmatpush2.bf16.msra.mxu0 0
          %2398 = vmatprep.subr.bf16.mxu0 0
          %2399 = vmatpush2.bf16.msra.mxu0 0
          %2400 = vmatprep.subr.bf16.mxu0 0
          %2401 = vmatpush2.bf16.msra.mxu0 0
          %2402 = vmatprep.subr.bf16.mxu0 0
          %2403 = vmatpush2.bf16.msra.mxu0 0
          %2404 = vmatprep.subr.bf16.mxu0 0
          %2405 = vmatpush2.bf16.msra.mxu0 0
          %2406 = vmatprep.subr.bf16.mxu0 0
          %2407 = vmatpush2.bf16.msra.mxu0 0
          %2408 = vmatprep.subr.bf16.mxu0 0
          %2409 = vmatpush2.bf16.msra.mxu0 0
          %2410 = vmatprep.subr.bf16.mxu0 0
          %2411 = vmatpush2.bf16.msra.mxu0 0
          %2412 = vmatprep.mubr.bf16.mxu0 0
          %2413 = vmatmul.mubr.bf16.gmra.mxu0 %v2375
          %v2414 = vpop.f32.mrf.mxu0
          %v2415 = vadd.f32 0.0, %v2414
          %v2416 = vpop.f32.mrf.mxu0
          %v2417 = vpop.f32.mrf.mxu0
          %v2418 = vadd.f32 0.0, %v2417
          %v2419 = vpop.f32.mrf.mxu0
          %2420 = vmatprep.mubr.bf16.mxu0 0
          %2421 = vmatmul.mubr.bf16.gmra.mxu0 %v2378
          %v2422 = vpop.f32.mrf.mxu0
          %v2423 = vadd.f32 0.0, %v2422
          %v2424 = vpop.f32.mrf.mxu0
          %v2425 = vpop.f32.mrf.mxu0
          %v2426 = vadd.f32 0.0, %v2425
          %v2427 = vpop.f32.mrf.mxu0
          %2428 = vdwg.mxu0
          %v2429 = vadd.f32 %v2356, %v2415
          %v2430 = vadd.f32 %v2357, %v2418
          %v2431 = vadd.f32 %v2358, %v2423
          %v2432 = vadd.f32 %v2359, %v2426
          %v2433 = vlaneseq
          %v2434 = vshrl.u32 %v2433, 7
          %v2435 = vsub.s32 1, %v2434
          %v2436 = vrot.slane %v536, %v2435
          %v2437 = vadd.f32 %v2429, %v2436
          %v2438 = vadd.f32 %v2430, %v2436
          %v2439 = vadd.f32 %v2431, %v2436
          %v2440 = vadd.f32 %v2432, %v2436
          %v2441 = vadd.f32 %v804, %v2437
          %v2442 = vadd.f32 %v805, %v2438
          %v2443 = vadd.f32 %v806, %v2439
          %v2444 = vadd.f32 %v807, %v2440
          %2445 = vadd.xlane.f32.xlu0 %v2441
          %v2446 = vpop.xlane.xlu0 %2445
          %2447 = vadd.xlane.f32.xlu0 %v2442
          %v2448 = vpop.xlane.xlu0 %2447
          %2449 = vadd.xlane.f32.xlu0 %v2443
          %v2450 = vpop.xlane.xlu0 %2449
          %2451 = vadd.xlane.f32.xlu0 %v2444
          %v2452 = vpop.xlane.xlu0 %2451
          %v2453 = vrcp.pop 128.0
          %v2454 = vmul.f32 %v2446, %v2453
          %v2455 = vmul.f32 %v2448, %v2453
          %v2456 = vmul.f32 %v2450, %v2453
          %v2457 = vmul.f32 %v2452, %v2453
          %v2458 = vmul.f32 %v2441, %v2441
          %v2459 = vmul.f32 %v2442, %v2442
          %v2460 = vmul.f32 %v2443, %v2443
          %v2461 = vmul.f32 %v2444, %v2444
          %2462 = vadd.xlane.f32.xlu0 %v2458
          %v2463 = vpop.xlane.xlu0 %2462
          %2464 = vadd.xlane.f32.xlu0 %v2459
          %v2465 = vpop.xlane.xlu0 %2464
          %2466 = vadd.xlane.f32.xlu0 %v2460
          %v2467 = vpop.xlane.xlu0 %2466
          %2468 = vadd.xlane.f32.xlu0 %v2461
          %v2469 = vpop.xlane.xlu0 %2468
          %v2470 = vmul.f32 %v2463, %v2453
          %v2471 = vmul.f32 %v2465, %v2453
          %v2472 = vmul.f32 %v2467, %v2453
          %v2473 = vmul.f32 %v2469, %v2453
          %v2474 = vmul.f32 %v2454, %v2454
          %v2475 = vmul.f32 %v2455, %v2455
          %v2476 = vmul.f32 %v2456, %v2456
          %v2477 = vmul.f32 %v2457, %v2457
          %v2478 = vsub.f32 %v2470, %v2474
          %v2479 = vsub.f32 %v2471, %v2475
          %v2480 = vsub.f32 %v2472, %v2476
          %v2481 = vsub.f32 %v2473, %v2477
          %v2482 = vsub.f32 %v2441, %v2454
          %v2483 = vsub.f32 %v2442, %v2455
          %v2484 = vsub.f32 %v2443, %v2456
          %v2485 = vsub.f32 %v2444, %v2457
          %v2486 = vadd.f32 %v2478, 1e-05
          %v2487 = vadd.f32 %v2479, 1e-05
          %v2488 = vadd.f32 %v2480, 1e-05
          %v2489 = vadd.f32 %v2481, 1e-05
          %v2490 = vrsqrt.pop %v2486
          %v2491 = vrsqrt.pop %v2487
          %v2492 = vrsqrt.pop %v2488
          %v2493 = vrsqrt.pop %v2489
          %v2494 = vmul.f32 %v2482, %v2490
          %v2495 = vmul.f32 %v2483, %v2491
          %v2496 = vmul.f32 %v2484, %v2492
          %v2497 = vmul.f32 %v2485, %v2493
          %v2498 = vlaneseq
          %v2499 = vshrl.u32 %v2498, 7
          %v2500 = vsub.s32 4, %v2499
          %v2501 = vrot.slane %v536, %v2500
          %v2502 = vmul.f32 %v2494, %v2501
          %v2503 = vmul.f32 %v2495, %v2501
          %v2504 = vmul.f32 %v2496, %v2501
          %v2505 = vmul.f32 %v2497, %v2501
          %v2506 = vlaneseq
          %v2507 = vshrl.u32 %v2506, 7
          %v2508 = vsub.s32 5, %v2507
          %v2509 = vrot.slane %v536, %v2508
          %v2510 = vadd.f32 %v2502, %v2509
          %v2511 = vadd.f32 %v2503, %v2509
          %v2512 = vadd.f32 %v2504, %v2509
          %v2513 = vadd.f32 %v2505, %v2509
          %v2514 = vpack.c.bf16 %v2511, %v2510
          %v2515 = vpack.c.bf16 %v2513, %v2512
          %v2516 = vlaneseq
          %v2517 = vshrl.u32 %v2516, 7
          %v2518 = vsub.s32 3, %v2517
          %v2519 = vrot.slane %v537, %v2518
          %v2536 = vunpack.c.l.b16 %v592
          %v2537 = vunpack.c.l.b16 %v594
          %v2538 = vunpack.c.l.b16 %v596
          %v2539 = vunpack.c.l.b16 %v598
          %v2540 = vunpack.c.l.b16 %v600
          %v2541 = vunpack.c.l.b16 %v602
          %v2542 = vunpack.c.l.b16 %v604
          %v2543 = vunpack.c.l.b16 %v606
          %v2544 = vunpack.c.l.b16 %v608
          %v2545 = vunpack.c.l.b16 %v610
          %v2546 = vunpack.c.l.b16 %v612
          %v2547 = vunpack.c.l.b16 %v614
          %v2548 = vunpack.c.l.b16 %v616
          %v2549 = vunpack.c.l.b16 %v618
          %v2550 = vunpack.c.l.b16 %v620
          %v2551 = vunpack.c.l.b16 %v622
          %v2552 = vpack.c.b16 %v2537, %v2536
          %v2553 = vpack.c.b16 %v2539, %v2538
          %v2554 = vpack.c.b16 %v2541, %v2540
          %v2555 = vpack.c.b16 %v2543, %v2542
          %v2556 = vpack.c.b16 %v2545, %v2544
          %v2557 = vpack.c.b16 %v2547, %v2546
          %v2558 = vpack.c.b16 %v2549, %v2548
          %v2559 = vpack.c.b16 %v2551, %v2550
          %2568 = vmatprep.subr.bf16.mxu0 0
          %2569 = vmatpush1.bf16.msra.mxu0 %v2559
          %2570 = vmatprep.subr.bf16.mxu0 0
          %2571 = vmatpush1.bf16.msra.mxu0 %v2558
          %2572 = vmatprep.subr.bf16.mxu0 0
          %2573 = vmatpush1.bf16.msra.mxu0 %v2557
          %2574 = vmatprep.subr.bf16.mxu0 0
          %2575 = vmatpush1.bf16.msra.mxu0 %v2556
          %2576 = vmatprep.subr.bf16.mxu0 0
          %2577 = vmatpush1.bf16.msra.mxu0 %v2555
          %2578 = vmatprep.subr.bf16.mxu0 0
          %2579 = vmatpush1.bf16.msra.mxu0 %v2554
          %2580 = vmatprep.subr.bf16.mxu0 0
          %2581 = vmatpush1.bf16.msra.mxu0 %v2553
          %2582 = vmatprep.subr.bf16.mxu0 0
          %2583 = vmatpush1.bf16.msra.mxu0 %v2552
          %2584 = vmatprep.subr.bf16.mxu0 0
          %2585 = vmatpush2.bf16.msra.mxu0 0
          %2586 = vmatprep.subr.bf16.mxu0 0
          %2587 = vmatpush2.bf16.msra.mxu0 0
          %2588 = vmatprep.subr.bf16.mxu0 0
          %2589 = vmatpush2.bf16.msra.mxu0 0
          %2590 = vmatprep.subr.bf16.mxu0 0
          %2591 = vmatpush2.bf16.msra.mxu0 0
          %2592 = vmatprep.subr.bf16.mxu0 0
          %2593 = vmatpush2.bf16.msra.mxu0 0
          %2594 = vmatprep.subr.bf16.mxu0 0
          %2595 = vmatpush2.bf16.msra.mxu0 0
          %2596 = vmatprep.subr.bf16.mxu0 0
          %2597 = vmatpush2.bf16.msra.mxu0 0
          %2598 = vmatprep.subr.bf16.mxu0 0
          %2599 = vmatpush2.bf16.msra.mxu0 0
          %2600 = vmatprep.mubr.bf16.mxu0 0
          %2601 = vmatmul.mubr.bf16.gmra.mxu0 %v2514
          %v2602 = vpop.f32.mrf.mxu0
          %v2603 = vadd.f32 %v2519, %v2602
          %v2604 = vpop.f32.mrf.mxu0
          %v2605 = vpop.f32.mrf.mxu0
          %v2606 = vadd.f32 %v2519, %v2605
          %v2607 = vpop.f32.mrf.mxu0
          %2608 = vmatprep.mubr.bf16.mxu0 0
          %2609 = vmatmul.mubr.bf16.gmra.mxu0 %v2515
          %v2610 = vpop.f32.mrf.mxu0
          %v2611 = vadd.f32 %v2519, %v2610
          %v2612 = vpop.f32.mrf.mxu0
          %v2613 = vpop.f32.mrf.mxu0
          %v2614 = vadd.f32 %v2519, %v2613
          %v2615 = vpop.f32.mrf.mxu0
          %2616 = vdwg.mxu0
          %v2617 = vpack.c.bf16 %v801, %v800
          %v2618 = vpack.c.bf16 %v803, %v802
          %v2619 = vlaneseq
          %v2620 = vshrl.u32 %v2619, 7
          %v2621 = vsub.s32 3, %v2620
          %v2622 = vrot.slane %v538, %v2621
          %v2623 = vlaneseq
          %v2624 = vshrl.u32 %v2623, 7
          %v2625 = vsub.s32 3, %v2624
          %v2626 = vrot.slane %v539, %v2625
          %v2643 = vunpack.c.h.b16 %v592
          %v2644 = vunpack.c.l.b16 %v593
          %v2645 = vunpack.c.h.b16 %v594
          %v2646 = vunpack.c.l.b16 %v595
          %v2647 = vunpack.c.h.b16 %v596
          %v2648 = vunpack.c.l.b16 %v597
          %v2649 = vunpack.c.h.b16 %v598
          %v2650 = vunpack.c.l.b16 %v599
          %v2651 = vunpack.c.h.b16 %v600
          %v2652 = vunpack.c.l.b16 %v601
          %v2653 = vunpack.c.h.b16 %v602
          %v2654 = vunpack.c.l.b16 %v603
          %v2655 = vunpack.c.h.b16 %v604
          %v2656 = vunpack.c.l.b16 %v605
          %v2657 = vunpack.c.h.b16 %v606
          %v2658 = vunpack.c.l.b16 %v607
          %v2659 = vunpack.c.h.b16 %v608
          %v2660 = vunpack.c.l.b16 %v609
          %v2661 = vunpack.c.h.b16 %v610
          %v2662 = vunpack.c.l.b16 %v611
          %v2663 = vunpack.c.h.b16 %v612
          %v2664 = vunpack.c.l.b16 %v613
          %v2665 = vunpack.c.h.b16 %v614
          %v2666 = vunpack.c.l.b16 %v615
          %v2667 = vunpack.c.h.b16 %v616
          %v2668 = vunpack.c.l.b16 %v617
          %v2669 = vunpack.c.h.b16 %v618
          %v2670 = vunpack.c.l.b16 %v619
          %v2671 = vunpack.c.h.b16 %v620
          %v2672 = vunpack.c.l.b16 %v621
          %v2673 = vunpack.c.h.b16 %v622
          %v2674 = vunpack.c.l.b16 %v623
          %v2675 = vpack.c.b16 %v2645, %v2643
          %v2676 = vpack.c.b16 %v2646, %v2644
          %v2677 = vpack.c.b16 %v2649, %v2647
          %v2678 = vpack.c.b16 %v2650, %v2648
          %v2679 = vpack.c.b16 %v2653, %v2651
          %v2680 = vpack.c.b16 %v2654, %v2652
          %v2681 = vpack.c.b16 %v2657, %v2655
          %v2682 = vpack.c.b16 %v2658, %v2656
          %v2683 = vpack.c.b16 %v2661, %v2659
          %v2684 = vpack.c.b16 %v2662, %v2660
          %v2685 = vpack.c.b16 %v2665, %v2663
          %v2686 = vpack.c.b16 %v2666, %v2664
          %v2687 = vpack.c.b16 %v2669, %v2667
          %v2688 = vpack.c.b16 %v2670, %v2668
          %v2689 = vpack.c.b16 %v2673, %v2671
          %v2690 = vpack.c.b16 %v2674, %v2672
          %2707 = vmatprep.subr.bf16.mxu0 %v2690
          %2708 = vmatpush1.bf16.msra.mxu0 %v2689
          %2709 = vmatprep.subr.bf16.mxu0 %v2688
          %2710 = vmatpush1.bf16.msra.mxu0 %v2687
          %2711 = vmatprep.subr.bf16.mxu0 %v2686
          %2712 = vmatpush1.bf16.msra.mxu0 %v2685
          %2713 = vmatprep.subr.bf16.mxu0 %v2684
          %2714 = vmatpush1.bf16.msra.mxu0 %v2683
          %2715 = vmatprep.subr.bf16.mxu0 %v2682
          %2716 = vmatpush1.bf16.msra.mxu0 %v2681
          %2717 = vmatprep.subr.bf16.mxu0 %v2680
          %2718 = vmatpush1.bf16.msra.mxu0 %v2679
          %2719 = vmatprep.subr.bf16.mxu0 %v2678
          %2720 = vmatpush1.bf16.msra.mxu0 %v2677
          %2721 = vmatprep.subr.bf16.mxu0 %v2676
          %2722 = vmatpush1.bf16.msra.mxu0 %v2675
          %2723 = vmatprep.subr.bf16.mxu0 0
          %2724 = vmatpush2.bf16.msra.mxu0 0
          %2725 = vmatprep.subr.bf16.mxu0 0
          %2726 = vmatpush2.bf16.msra.mxu0 0
          %2727 = vmatprep.subr.bf16.mxu0 0
          %2728 = vmatpush2.bf16.msra.mxu0 0
          %2729 = vmatprep.subr.bf16.mxu0 0
          %2730 = vmatpush2.bf16.msra.mxu0 0
          %2731 = vmatprep.subr.bf16.mxu0 0
          %2732 = vmatpush2.bf16.msra.mxu0 0
          %2733 = vmatprep.subr.bf16.mxu0 0
          %2734 = vmatpush2.bf16.msra.mxu0 0
          %2735 = vmatprep.subr.bf16.mxu0 0
          %2736 = vmatpush2.bf16.msra.mxu0 0
          %2737 = vmatprep.subr.bf16.mxu0 0
          %2738 = vmatpush2.bf16.msra.mxu0 0
          %2739 = vmatprep.mubr.bf16.mxu0 0
          %2740 = vmatmul.mubr.bf16.gmra.mxu0 %v2617
          %v2741 = vpop.f32.mrf.mxu0
          %v2742 = vadd.f32 %v2622, %v2741
          %v2743 = vpop.f32.mrf.mxu0
          %v2744 = vadd.f32 %v2626, %v2743
          %v2745 = vpop.f32.mrf.mxu0
          %v2746 = vadd.f32 %v2622, %v2745
          %v2747 = vpop.f32.mrf.mxu0
          %v2748 = vadd.f32 %v2626, %v2747
          %2749 = vmatprep.mubr.bf16.mxu0 0
          %2750 = vmatmul.mubr.bf16.gmra.mxu0 %v2618
          %v2751 = vpop.f32.mrf.mxu0
          %v2752 = vadd.f32 %v2622, %v2751
          %v2753 = vpop.f32.mrf.mxu0
          %v2754 = vadd.f32 %v2626, %v2753
          %v2755 = vpop.f32.mrf.mxu0
          %v2756 = vadd.f32 %v2622, %v2755
          %v2757 = vpop.f32.mrf.mxu0
          %v2758 = vadd.f32 %v2626, %v2757
          %2759 = vdwg.mxu0
          %2764 = vrot.lane.b32.xlu0 %v2603, 96
          %v2765 = vpop.permute.xlu0 %2764
          %2766 = vrot.lane.b32.xlu0 %v2606, 96
          %v2767 = vpop.permute.xlu0 %2766
          %2768 = vrot.lane.b32.xlu0 %v2611, 96
          %v2769 = vpop.permute.xlu0 %2768
          %2770 = vrot.lane.b32.xlu0 %v2614, 96
          %v2771 = vpop.permute.xlu0 %2770
          %2772 = vrot.lane.b32.xlu0 %v2603, 64
          %v2773 = vpop.permute.xlu0 %2772
          %2774 = vrot.lane.b32.xlu0 %v2606, 64
          %v2775 = vpop.permute.xlu0 %2774
          %2776 = vrot.lane.b32.xlu0 %v2611, 64
          %v2777 = vpop.permute.xlu0 %2776
          %2778 = vrot.lane.b32.xlu0 %v2614, 64
          %v2779 = vpop.permute.xlu0 %2778
          %2780 = vrot.lane.b32.xlu0 %v2603, 32
          %v2781 = vpop.permute.xlu0 %2780
          %2782 = vrot.lane.b32.xlu0 %v2606, 32
          %v2783 = vpop.permute.xlu0 %2782
          %2784 = vrot.lane.b32.xlu0 %v2611, 32
          %v2785 = vpop.permute.xlu0 %2784
          %2786 = vrot.lane.b32.xlu0 %v2614, 32
          %v2787 = vpop.permute.xlu0 %2786
          %2792 = vrot.lane.b32.xlu0 %v2742, 96
          %v2793 = vpop.permute.xlu0 %2792
          %2794 = vrot.lane.b32.xlu0 %v2746, 96
          %v2795 = vpop.permute.xlu0 %2794
          %2796 = vrot.lane.b32.xlu0 %v2752, 96
          %v2797 = vpop.permute.xlu0 %2796
          %2798 = vrot.lane.b32.xlu0 %v2756, 96
          %v2799 = vpop.permute.xlu0 %2798
          %2800 = vrot.lane.b32.xlu0 %v2742, 64
          %v2801 = vpop.permute.xlu0 %2800
          %2802 = vrot.lane.b32.xlu0 %v2746, 64
          %v2803 = vpop.permute.xlu0 %2802
          %2804 = vrot.lane.b32.xlu0 %v2752, 64
          %v2805 = vpop.permute.xlu0 %2804
          %2806 = vrot.lane.b32.xlu0 %v2756, 64
          %v2807 = vpop.permute.xlu0 %2806
          %2808 = vrot.lane.b32.xlu0 %v2742, 32
          %v2809 = vpop.permute.xlu0 %2808
          %2810 = vrot.lane.b32.xlu0 %v2746, 32
          %v2811 = vpop.permute.xlu0 %2810
          %2812 = vrot.lane.b32.xlu0 %v2752, 32
          %v2813 = vpop.permute.xlu0 %2812
          %2814 = vrot.lane.b32.xlu0 %v2756, 32
          %v2815 = vpop.permute.xlu0 %2814
          %2820 = vrot.lane.b32.xlu0 %v2744, 96
          %v2821 = vpop.permute.xlu0 %2820
          %2822 = vrot.lane.b32.xlu0 %v2748, 96
          %v2823 = vpop.permute.xlu0 %2822
          %2824 = vrot.lane.b32.xlu0 %v2754, 96
          %v2825 = vpop.permute.xlu0 %2824
          %2826 = vrot.lane.b32.xlu0 %v2758, 96
          %v2827 = vpop.permute.xlu0 %2826
          %2832 = vrot.lane.b32.xlu0 %v2744, 64
          %v2833 = vpop.permute.xlu0 %2832
          %2834 = vrot.lane.b32.xlu0 %v2748, 64
          %v2835 = vpop.permute.xlu0 %2834
          %2836 = vrot.lane.b32.xlu0 %v2754, 64
          %v2837 = vpop.permute.xlu0 %2836
          %2838 = vrot.lane.b32.xlu0 %v2758, 64
          %v2839 = vpop.permute.xlu0 %2838
          %2844 = vrot.lane.b32.xlu0 %v2744, 32
          %v2845 = vpop.permute.xlu0 %2844
          %2846 = vrot.lane.b32.xlu0 %v2748, 32
          %v2847 = vpop.permute.xlu0 %2846
          %2848 = vrot.lane.b32.xlu0 %v2754, 32
          %v2849 = vpop.permute.xlu0 %2848
          %2850 = vrot.lane.b32.xlu0 %v2758, 32
          %v2851 = vpop.permute.xlu0 %2850
          %v2856 = vsel %vm1148, %v2603, 0
          %v2858 = vsel %vm1148, %v2606, 0
          %v2860 = vsel %vm1148, %v2611, 0
          %v2862 = vsel %vm1148, %v2614, 0
          %v2864 = vsel %vm1148, %v2742, 0
          %v2866 = vsel %vm1148, %v2746, 0
          %v2868 = vsel %vm1148, %v2752, 0
          %v2870 = vsel %vm1148, %v2756, 0
          %2872 = vmatprep.subr.mxu0 0.0
          %2873 = vmatpush1.xpose.msra.mxu0 0.0
          %2874 = vmatprep.subr.mxu0 0.0
          %2875 = vmatpush1.xpose.msra.mxu0 0.0
          %2876 = vmatprep.subr.mxu0 0.0
          %2877 = vmatpush1.xpose.msra.mxu0 0.0
          %2878 = vmatprep.subr.mxu0 0.0
          %2879 = vmatpush1.xpose.msra.mxu0 0.0
          %2880 = vmatprep.subr.mxu0 0.0
          %2881 = vmatpush1.xpose.msra.mxu0 0.0
          %2882 = vmatprep.subr.mxu0 0.0
          %2883 = vmatpush1.xpose.msra.mxu0 0.0
          %2884 = vmatprep.subr.mxu0 0.0
          %2885 = vmatpush1.xpose.msra.mxu0 0.0
          %2886 = vmatprep.subr.mxu0 0.0
          %2887 = vmatpush1.xpose.msra.mxu0 0.0
          %2888 = vmatprep.subr.mxu0 0.0
          %2889 = vmatpush1.xpose.msra.mxu0 0.0
          %2890 = vmatprep.subr.mxu0 0.0
          %2891 = vmatpush1.xpose.msra.mxu0 0.0
          %2892 = vmatprep.subr.mxu0 0.0
          %2893 = vmatpush1.xpose.msra.mxu0 0.0
          %2894 = vmatprep.subr.mxu0 0.0
          %2895 = vmatpush1.xpose.msra.mxu0 0.0
          %2896 = vmatprep.subr.mxu0 0.0
          %2897 = vmatpush1.xpose.msra.mxu0 %v2870
          %2898 = vmatprep.subr.mxu0 0.0
          %2899 = vmatpush1.xpose.msra.mxu0 %v2868
          %2900 = vmatprep.subr.mxu0 0.0
          %2901 = vmatpush1.xpose.msra.mxu0 %v2866
          %2902 = vmatprep.subr.mxu0 0.0
          %2903 = vmatpush1.xpose.msra.mxu0 %v2864
          %2904 = vmatprep.subr.mxu0 0.0
          %2905 = vmatpush2.xpose.msra.mxu0 0.0
          %2906 = vmatprep.subr.mxu0 0.0
          %2907 = vmatpush2.xpose.msra.mxu0 0.0
          %2908 = vmatprep.subr.mxu0 0.0
          %2909 = vmatpush2.xpose.msra.mxu0 0.0
          %2910 = vmatprep.subr.mxu0 0.0
          %2911 = vmatpush2.xpose.msra.mxu0 0.0
          %2912 = vmatprep.subr.mxu0 0.0
          %2913 = vmatpush2.xpose.msra.mxu0 0.0
          %2914 = vmatprep.subr.mxu0 0.0
          %2915 = vmatpush2.xpose.msra.mxu0 0.0
          %2916 = vmatprep.subr.mxu0 0.0
          %2917 = vmatpush2.xpose.msra.mxu0 0.0
          %2918 = vmatprep.subr.mxu0 0.0
          %2919 = vmatpush2.xpose.msra.mxu0 0.0
          %2920 = vmatprep.subr.mxu0 0.0
          %2921 = vmatpush2.xpose.msra.mxu0 0.0
          %2922 = vmatprep.subr.mxu0 0.0
          %2923 = vmatpush2.xpose.msra.mxu0 0.0
          %2924 = vmatprep.subr.mxu0 0.0
          %2925 = vmatpush2.xpose.msra.mxu0 0.0
          %2926 = vmatprep.subr.mxu0 0.0
          %2927 = vmatpush2.xpose.msra.mxu0 0.0
          %2928 = vmatprep.subr.mxu0 0.0
          %2929 = vmatpush2.xpose.msra.mxu0 0.0
          %2930 = vmatprep.subr.mxu0 0.0
          %2931 = vmatpush2.xpose.msra.mxu0 0.0
          %2932 = vmatprep.subr.mxu0 0.0
          %2933 = vmatpush2.xpose.msra.mxu0 0.0
          %2934 = vmatprep.subr.mxu0 0.0
          %2935 = vmatpush2.xpose.msra.mxu0 0.0
          %2936 = vmatprep.mubr.f32.mxu0 0.0
          %2937 = vmatmul.mubr.f32.gmra.mxu0 %v2856
          %v2938 = vpop.f32.mrf.mxu0
          %v2939 = vadd.f32 0.0, %v2938
          %v2940 = vpop.f32.mrf.mxu0
          %2941 = vmatprep.mubr.f32.mxu0 0.0
          %2942 = vmatmul.mubr.f32.gmra.mxu0 %v2858
          %v2943 = vpop.f32.mrf.mxu0
          %v2944 = vadd.f32 0.0, %v2943
          %v2945 = vpop.f32.mrf.mxu0
          %2946 = vmatprep.mubr.f32.mxu0 0.0
          %2947 = vmatmul.mubr.f32.gmra.mxu0 %v2860
          %v2948 = vpop.f32.mrf.mxu0
          %v2949 = vadd.f32 0.0, %v2948
          %v2950 = vpop.f32.mrf.mxu0
          %2951 = vmatprep.mubr.f32.mxu0 0.0
          %2952 = vmatmul.mubr.f32.gmra.mxu0 %v2862
          %v2953 = vpop.f32.mrf.mxu0
          %v2954 = vadd.f32 0.0, %v2953
          %v2955 = vpop.f32.mrf.mxu0
          %2956 = vdwg.mxu0
          %v2957 = vsel %vm1148, %v2765, 0
          %v2959 = vsel %vm1148, %v2767, 0
          %v2961 = vsel %vm1148, %v2769, 0
          %v2963 = vsel %vm1148, %v2771, 0
          %v2965 = vsel %vm1148, %v2793, 0
          %v2967 = vsel %vm1148, %v2795, 0
          %v2969 = vsel %vm1148, %v2797, 0
          %v2971 = vsel %vm1148, %v2799, 0
          %2973 = vmatprep.subr.mxu0 0.0
          %2974 = vmatpush1.xpose.msra.mxu0 0.0
          %2975 = vmatprep.subr.mxu0 0.0
          %2976 = vmatpush1.xpose.msra.mxu0 0.0
          %2977 = vmatprep.subr.mxu0 0.0
          %2978 = vmatpush1.xpose.msra.mxu0 0.0
          %2979 = vmatprep.subr.mxu0 0.0
          %2980 = vmatpush1.xpose.msra.mxu0 0.0
          %2981 = vmatprep.subr.mxu0 0.0
          %2982 = vmatpush1.xpose.msra.mxu0 0.0
          %2983 = vmatprep.subr.mxu0 0.0
          %2984 = vmatpush1.xpose.msra.mxu0 0.0
          %2985 = vmatprep.subr.mxu0 0.0
          %2986 = vmatpush1.xpose.msra.mxu0 0.0
          %2987 = vmatprep.subr.mxu0 0.0
          %2988 = vmatpush1.xpose.msra.mxu0 0.0
          %2989 = vmatprep.subr.mxu0 0.0
          %2990 = vmatpush1.xpose.msra.mxu0 0.0
          %2991 = vmatprep.subr.mxu0 0.0
          %2992 = vmatpush1.xpose.msra.mxu0 0.0
          %2993 = vmatprep.subr.mxu0 0.0
          %2994 = vmatpush1.xpose.msra.mxu0 0.0
          %2995 = vmatprep.subr.mxu0 0.0
          %2996 = vmatpush1.xpose.msra.mxu0 0.0
          %2997 = vmatprep.subr.mxu0 0.0
          %2998 = vmatpush1.xpose.msra.mxu0 %v2971
          %2999 = vmatprep.subr.mxu0 0.0
          %3000 = vmatpush1.xpose.msra.mxu0 %v2969
          %3001 = vmatprep.subr.mxu0 0.0
          %3002 = vmatpush1.xpose.msra.mxu0 %v2967
          %3003 = vmatprep.subr.mxu0 0.0
          %3004 = vmatpush1.xpose.msra.mxu0 %v2965
          %3005 = vmatprep.subr.mxu0 0.0
          %3006 = vmatpush2.xpose.msra.mxu0 0.0
          %3007 = vmatprep.subr.mxu0 0.0
          %3008 = vmatpush2.xpose.msra.mxu0 0.0
          %3009 = vmatprep.subr.mxu0 0.0
          %3010 = vmatpush2.xpose.msra.mxu0 0.0
          %3011 = vmatprep.subr.mxu0 0.0
          %3012 = vmatpush2.xpose.msra.mxu0 0.0
          %3013 = vmatprep.subr.mxu0 0.0
          %3014 = vmatpush2.xpose.msra.mxu0 0.0
          %3015 = vmatprep.subr.mxu0 0.0
          %3016 = vmatpush2.xpose.msra.mxu0 0.0
          %3017 = vmatprep.subr.mxu0 0.0
          %3018 = vmatpush2.xpose.msra.mxu0 0.0
          %3019 = vmatprep.subr.mxu0 0.0
          %3020 = vmatpush2.xpose.msra.mxu0 0.0
          %3021 = vmatprep.subr.mxu0 0.0
          %3022 = vmatpush2.xpose.msra.mxu0 0.0
          %3023 = vmatprep.subr.mxu0 0.0
          %3024 = vmatpush2.xpose.msra.mxu0 0.0
          %3025 = vmatprep.subr.mxu0 0.0
          %3026 = vmatpush2.xpose.msra.mxu0 0.0
          %3027 = vmatprep.subr.mxu0 0.0
          %3028 = vmatpush2.xpose.msra.mxu0 0.0
          %3029 = vmatprep.subr.mxu0 0.0
          %3030 = vmatpush2.xpose.msra.mxu0 0.0
          %3031 = vmatprep.subr.mxu0 0.0
          %3032 = vmatpush2.xpose.msra.mxu0 0.0
          %3033 = vmatprep.subr.mxu0 0.0
          %3034 = vmatpush2.xpose.msra.mxu0 0.0
          %3035 = vmatprep.subr.mxu0 0.0
          %3036 = vmatpush2.xpose.msra.mxu0 0.0
          %3037 = vmatprep.mubr.f32.mxu0 0.0
          %3038 = vmatmul.mubr.f32.gmra.mxu0 %v2957
          %v3039 = vpop.f32.mrf.mxu0
          %v3040 = vadd.f32 0.0, %v3039
          %v3041 = vpop.f32.mrf.mxu0
          %3042 = vmatprep.mubr.f32.mxu0 0.0
          %3043 = vmatmul.mubr.f32.gmra.mxu0 %v2959
          %v3044 = vpop.f32.mrf.mxu0
          %v3045 = vadd.f32 0.0, %v3044
          %v3046 = vpop.f32.mrf.mxu0
          %3047 = vmatprep.mubr.f32.mxu0 0.0
          %3048 = vmatmul.mubr.f32.gmra.mxu0 %v2961
          %v3049 = vpop.f32.mrf.mxu0
          %v3050 = vadd.f32 0.0, %v3049
          %v3051 = vpop.f32.mrf.mxu0
          %3052 = vmatprep.mubr.f32.mxu0 0.0
          %3053 = vmatmul.mubr.f32.gmra.mxu0 %v2963
          %v3054 = vpop.f32.mrf.mxu0
          %v3055 = vadd.f32 0.0, %v3054
          %v3056 = vpop.f32.mrf.mxu0
          %3057 = vdwg.mxu0
          %v3058 = vsel %vm1148, %v2773, 0
          %v3060 = vsel %vm1148, %v2775, 0
          %v3062 = vsel %vm1148, %v2777, 0
          %v3064 = vsel %vm1148, %v2779, 0
          %v3066 = vsel %vm1148, %v2801, 0
          %v3068 = vsel %vm1148, %v2803, 0
          %v3070 = vsel %vm1148, %v2805, 0
          %v3072 = vsel %vm1148, %v2807, 0
          %3074 = vmatprep.subr.mxu0 0.0
          %3075 = vmatpush1.xpose.msra.mxu0 0.0
          %3076 = vmatprep.subr.mxu0 0.0
          %3077 = vmatpush1.xpose.msra.mxu0 0.0
          %3078 = vmatprep.subr.mxu0 0.0
          %3079 = vmatpush1.xpose.msra.mxu0 0.0
          %3080 = vmatprep.subr.mxu0 0.0
          %3081 = vmatpush1.xpose.msra.mxu0 0.0
          %3082 = vmatprep.subr.mxu0 0.0
          %3083 = vmatpush1.xpose.msra.mxu0 0.0
          %3084 = vmatprep.subr.mxu0 0.0
          %3085 = vmatpush1.xpose.msra.mxu0 0.0
          %3086 = vmatprep.subr.mxu0 0.0
          %3087 = vmatpush1.xpose.msra.mxu0 0.0
          %3088 = vmatprep.subr.mxu0 0.0
          %3089 = vmatpush1.xpose.msra.mxu0 0.0
          %3090 = vmatprep.subr.mxu0 0.0
          %3091 = vmatpush1.xpose.msra.mxu0 0.0
          %3092 = vmatprep.subr.mxu0 0.0
          %3093 = vmatpush1.xpose.msra.mxu0 0.0
          %3094 = vmatprep.subr.mxu0 0.0
          %3095 = vmatpush1.xpose.msra.mxu0 0.0
          %3096 = vmatprep.subr.mxu0 0.0
          %3097 = vmatpush1.xpose.msra.mxu0 0.0
          %3098 = vmatprep.subr.mxu0 0.0
          %3099 = vmatpush1.xpose.msra.mxu0 %v3072
          %3100 = vmatprep.subr.mxu0 0.0
          %3101 = vmatpush1.xpose.msra.mxu0 %v3070
          %3102 = vmatprep.subr.mxu0 0.0
          %3103 = vmatpush1.xpose.msra.mxu0 %v3068
          %3104 = vmatprep.subr.mxu0 0.0
          %3105 = vmatpush1.xpose.msra.mxu0 %v3066
          %3106 = vmatprep.subr.mxu0 0.0
          %3107 = vmatpush2.xpose.msra.mxu0 0.0
          %3108 = vmatprep.subr.mxu0 0.0
          %3109 = vmatpush2.xpose.msra.mxu0 0.0
          %3110 = vmatprep.subr.mxu0 0.0
          %3111 = vmatpush2.xpose.msra.mxu0 0.0
          %3112 = vmatprep.subr.mxu0 0.0
          %3113 = vmatpush2.xpose.msra.mxu0 0.0
          %3114 = vmatprep.subr.mxu0 0.0
          %3115 = vmatpush2.xpose.msra.mxu0 0.0
          %3116 = vmatprep.subr.mxu0 0.0
          %3117 = vmatpush2.xpose.msra.mxu0 0.0
          %3118 = vmatprep.subr.mxu0 0.0
          %3119 = vmatpush2.xpose.msra.mxu0 0.0
          %3120 = vmatprep.subr.mxu0 0.0
          %3121 = vmatpush2.xpose.msra.mxu0 0.0
          %3122 = vmatprep.subr.mxu0 0.0
          %3123 = vmatpush2.xpose.msra.mxu0 0.0
          %3124 = vmatprep.subr.mxu0 0.0
          %3125 = vmatpush2.xpose.msra.mxu0 0.0
          %3126 = vmatprep.subr.mxu0 0.0
          %3127 = vmatpush2.xpose.msra.mxu0 0.0
          %3128 = vmatprep.subr.mxu0 0.0
          %3129 = vmatpush2.xpose.msra.mxu0 0.0
          %3130 = vmatprep.subr.mxu0 0.0
          %3131 = vmatpush2.xpose.msra.mxu0 0.0
          %3132 = vmatprep.subr.mxu0 0.0
          %3133 = vmatpush2.xpose.msra.mxu0 0.0
          %3134 = vmatprep.subr.mxu0 0.0
          %3135 = vmatpush2.xpose.msra.mxu0 0.0
          %3136 = vmatprep.subr.mxu0 0.0
          %3137 = vmatpush2.xpose.msra.mxu0 0.0
          %3138 = vmatprep.mubr.f32.mxu0 0.0
          %3139 = vmatmul.mubr.f32.gmra.mxu0 %v3058
          %v3140 = vpop.f32.mrf.mxu0
          %v3141 = vadd.f32 0.0, %v3140
          %v3142 = vpop.f32.mrf.mxu0
          %3143 = vmatprep.mubr.f32.mxu0 0.0
          %3144 = vmatmul.mubr.f32.gmra.mxu0 %v3060
          %v3145 = vpop.f32.mrf.mxu0
          %v3146 = vadd.f32 0.0, %v3145
          %v3147 = vpop.f32.mrf.mxu0
          %3148 = vmatprep.mubr.f32.mxu0 0.0
          %3149 = vmatmul.mubr.f32.gmra.mxu0 %v3062
          %v3150 = vpop.f32.mrf.mxu0
          %v3151 = vadd.f32 0.0, %v3150
          %v3152 = vpop.f32.mrf.mxu0
          %3153 = vmatprep.mubr.f32.mxu0 0.0
          %3154 = vmatmul.mubr.f32.gmra.mxu0 %v3064
          %v3155 = vpop.f32.mrf.mxu0
          %v3156 = vadd.f32 0.0, %v3155
          %v3157 = vpop.f32.mrf.mxu0
          %3158 = vdwg.mxu0
          %v3159 = vsel %vm1148, %v2781, 0
          %v3161 = vsel %vm1148, %v2783, 0
          %v3163 = vsel %vm1148, %v2785, 0
          %v3165 = vsel %vm1148, %v2787, 0
          %v3167 = vsel %vm1148, %v2809, 0
          %v3169 = vsel %vm1148, %v2811, 0
          %v3171 = vsel %vm1148, %v2813, 0
          %v3173 = vsel %vm1148, %v2815, 0
          %3175 = vmatprep.subr.mxu0 0.0
          %3176 = vmatpush1.xpose.msra.mxu0 0.0
          %3177 = vmatprep.subr.mxu0 0.0
          %3178 = vmatpush1.xpose.msra.mxu0 0.0
          %3179 = vmatprep.subr.mxu0 0.0
          %3180 = vmatpush1.xpose.msra.mxu0 0.0
          %3181 = vmatprep.subr.mxu0 0.0
          %3182 = vmatpush1.xpose.msra.mxu0 0.0
          %3183 = vmatprep.subr.mxu0 0.0
          %3184 = vmatpush1.xpose.msra.mxu0 0.0
          %3185 = vmatprep.subr.mxu0 0.0
          %3186 = vmatpush1.xpose.msra.mxu0 0.0
          %3187 = vmatprep.subr.mxu0 0.0
          %3188 = vmatpush1.xpose.msra.mxu0 0.0
          %3189 = vmatprep.subr.mxu0 0.0
          %3190 = vmatpush1.xpose.msra.mxu0 0.0
          %3191 = vmatprep.subr.mxu0 0.0
          %3192 = vmatpush1.xpose.msra.mxu0 0.0
          %3193 = vmatprep.subr.mxu0 0.0
          %3194 = vmatpush1.xpose.msra.mxu0 0.0
          %3195 = vmatprep.subr.mxu0 0.0
          %3196 = vmatpush1.xpose.msra.mxu0 0.0
          %3197 = vmatprep.subr.mxu0 0.0
          %3198 = vmatpush1.xpose.msra.mxu0 0.0
          %3199 = vmatprep.subr.mxu0 0.0
          %3200 = vmatpush1.xpose.msra.mxu0 %v3173
          %3201 = vmatprep.subr.mxu0 0.0
          %3202 = vmatpush1.xpose.msra.mxu0 %v3171
          %3203 = vmatprep.subr.mxu0 0.0
          %3204 = vmatpush1.xpose.msra.mxu0 %v3169
          %3205 = vmatprep.subr.mxu0 0.0
          %3206 = vmatpush1.xpose.msra.mxu0 %v3167
          %3207 = vmatprep.subr.mxu0 0.0
          %3208 = vmatpush2.xpose.msra.mxu0 0.0
          %3209 = vmatprep.subr.mxu0 0.0
          %3210 = vmatpush2.xpose.msra.mxu0 0.0
          %3211 = vmatprep.subr.mxu0 0.0
          %3212 = vmatpush2.xpose.msra.mxu0 0.0
          %3213 = vmatprep.subr.mxu0 0.0
          %3214 = vmatpush2.xpose.msra.mxu0 0.0
          %3215 = vmatprep.subr.mxu0 0.0
          %3216 = vmatpush2.xpose.msra.mxu0 0.0
          %3217 = vmatprep.subr.mxu0 0.0
          %3218 = vmatpush2.xpose.msra.mxu0 0.0
          %3219 = vmatprep.subr.mxu0 0.0
          %3220 = vmatpush2.xpose.msra.mxu0 0.0
          %3221 = vmatprep.subr.mxu0 0.0
          %3222 = vmatpush2.xpose.msra.mxu0 0.0
          %3223 = vmatprep.subr.mxu0 0.0
          %3224 = vmatpush2.xpose.msra.mxu0 0.0
          %3225 = vmatprep.subr.mxu0 0.0
          %3226 = vmatpush2.xpose.msra.mxu0 0.0
          %3227 = vmatprep.subr.mxu0 0.0
          %3228 = vmatpush2.xpose.msra.mxu0 0.0
          %3229 = vmatprep.subr.mxu0 0.0
          %3230 = vmatpush2.xpose.msra.mxu0 0.0
          %3231 = vmatprep.subr.mxu0 0.0
          %3232 = vmatpush2.xpose.msra.mxu0 0.0
          %3233 = vmatprep.subr.mxu0 0.0
          %3234 = vmatpush2.xpose.msra.mxu0 0.0
          %3235 = vmatprep.subr.mxu0 0.0
          %3236 = vmatpush2.xpose.msra.mxu0 0.0
          %3237 = vmatprep.subr.mxu0 0.0
          %3238 = vmatpush2.xpose.msra.mxu0 0.0
          %3239 = vmatprep.mubr.f32.mxu0 0.0
          %3240 = vmatmul.mubr.f32.gmra.mxu0 %v3159
          %v3241 = vpop.f32.mrf.mxu0
          %v3242 = vadd.f32 0.0, %v3241
          %v3243 = vpop.f32.mrf.mxu0
          %3244 = vmatprep.mubr.f32.mxu0 0.0
          %3245 = vmatmul.mubr.f32.gmra.mxu0 %v3161
          %v3246 = vpop.f32.mrf.mxu0
          %v3247 = vadd.f32 0.0, %v3246
          %v3248 = vpop.f32.mrf.mxu0
          %3249 = vmatprep.mubr.f32.mxu0 0.0
          %3250 = vmatmul.mubr.f32.gmra.mxu0 %v3163
          %v3251 = vpop.f32.mrf.mxu0
          %v3252 = vadd.f32 0.0, %v3251
          %v3253 = vpop.f32.mrf.mxu0
          %3254 = vmatprep.mubr.f32.mxu0 0.0
          %3255 = vmatmul.mubr.f32.gmra.mxu0 %v3165
          %v3256 = vpop.f32.mrf.mxu0
          %v3257 = vadd.f32 0.0, %v3256
          %v3258 = vpop.f32.mrf.mxu0
          %3259 = vdwg.mxu0
          %v3260 = vmul.f32 %v2939, 0.17677669
          %v3261 = vmul.f32 %v2944, 0.17677669
          %v3262 = vmul.f32 %v2949, 0.17677669
          %v3263 = vmul.f32 %v2954, 0.17677669
          %v3264 = vmul.f32 %v3040, 0.17677669
          %v3265 = vmul.f32 %v3045, 0.17677669
          %v3266 = vmul.f32 %v3050, 0.17677669
          %v3267 = vmul.f32 %v3055, 0.17677669
          %v3268 = vmul.f32 %v3141, 0.17677669
          %v3269 = vmul.f32 %v3146, 0.17677669
          %v3270 = vmul.f32 %v3151, 0.17677669
          %v3271 = vmul.f32 %v3156, 0.17677669
          %v3272 = vmul.f32 %v3242, 0.17677669
          %v3273 = vmul.f32 %v3247, 0.17677669
          %v3274 = vmul.f32 %v3252, 0.17677669
          %v3275 = vmul.f32 %v3257, 0.17677669
          %v3276 = vadd.f32 %v3260, %v661
          %v3277 = vadd.f32 %v3261, %v662
          %v3278 = vadd.f32 %v3262, %v663
          %v3279 = vadd.f32 %v3263, %v664
          %v3280 = vadd.f32 %v3264, %v661
          %v3281 = vadd.f32 %v3265, %v662
          %v3282 = vadd.f32 %v3266, %v663
          %v3283 = vadd.f32 %v3267, %v664
          %v3284 = vadd.f32 %v3268, %v661
          %v3285 = vadd.f32 %v3269, %v662
          %v3286 = vadd.f32 %v3270, %v663
          %v3287 = vadd.f32 %v3271, %v664
          %v3288 = vadd.f32 %v3272, %v661
          %v3289 = vadd.f32 %v3273, %v662
          %v3290 = vadd.f32 %v3274, %v663
          %v3291 = vadd.f32 %v3275, %v664
          %v3292 = vsel %vm1148, %v3276, -inf
          %3293 = vmax.xlane.f32.xlu0 %v3292
          %v3294 = vpop.xlane.xlu0 %3293
          %v3295 = vsel %vm1148, %v3277, -inf
          %3296 = vmax.xlane.f32.xlu0 %v3295
          %v3297 = vpop.xlane.xlu0 %3296
          %v3298 = vsel %vm1148, %v3278, -inf
          %3299 = vmax.xlane.f32.xlu0 %v3298
          %v3300 = vpop.xlane.xlu0 %3299
          %v3301 = vsel %vm1148, %v3279, -inf
          %3302 = vmax.xlane.f32.xlu0 %v3301
          %v3303 = vpop.xlane.xlu0 %3302
          %v3304 = vsel %vm1148, %v3280, -inf
          %3305 = vmax.xlane.f32.xlu0 %v3304
          %v3306 = vpop.xlane.xlu0 %3305
          %v3307 = vsel %vm1148, %v3281, -inf
          %3308 = vmax.xlane.f32.xlu0 %v3307
          %v3309 = vpop.xlane.xlu0 %3308
          %v3310 = vsel %vm1148, %v3282, -inf
          %3311 = vmax.xlane.f32.xlu0 %v3310
          %v3312 = vpop.xlane.xlu0 %3311
          %v3313 = vsel %vm1148, %v3283, -inf
          %3314 = vmax.xlane.f32.xlu0 %v3313
          %v3315 = vpop.xlane.xlu0 %3314
          %v3316 = vsel %vm1148, %v3284, -inf
          %3317 = vmax.xlane.f32.xlu0 %v3316
          %v3318 = vpop.xlane.xlu0 %3317
          %v3319 = vsel %vm1148, %v3285, -inf
          %3320 = vmax.xlane.f32.xlu0 %v3319
          %v3321 = vpop.xlane.xlu0 %3320
          %v3322 = vsel %vm1148, %v3286, -inf
          %3323 = vmax.xlane.f32.xlu0 %v3322
          %v3324 = vpop.xlane.xlu0 %3323
          %v3325 = vsel %vm1148, %v3287, -inf
          %3326 = vmax.xlane.f32.xlu0 %v3325
          %v3327 = vpop.xlane.xlu0 %3326
          %v3328 = vsel %vm1148, %v3288, -inf
          %3329 = vmax.xlane.f32.xlu0 %v3328
          %v3330 = vpop.xlane.xlu0 %3329
          %v3331 = vsel %vm1148, %v3289, -inf
          %3332 = vmax.xlane.f32.xlu0 %v3331
          %v3333 = vpop.xlane.xlu0 %3332
          %v3334 = vsel %vm1148, %v3290, -inf
          %3335 = vmax.xlane.f32.xlu0 %v3334
          %v3336 = vpop.xlane.xlu0 %3335
          %v3337 = vsel %vm1148, %v3291, -inf
          %3338 = vmax.xlane.f32.xlu0 %v3337
          %v3339 = vpop.xlane.xlu0 %3338
          %v3340 = vsub.f32 %v3276, %v3294
          %v3341 = vsub.f32 %v3277, %v3297
          %v3342 = vsub.f32 %v3278, %v3300
          %v3343 = vsub.f32 %v3279, %v3303
          %v3344 = vsub.f32 %v3280, %v3306
          %v3345 = vsub.f32 %v3281, %v3309
          %v3346 = vsub.f32 %v3282, %v3312
          %v3347 = vsub.f32 %v3283, %v3315
          %v3348 = vsub.f32 %v3284, %v3318
          %v3349 = vsub.f32 %v3285, %v3321
          %v3350 = vsub.f32 %v3286, %v3324
          %v3351 = vsub.f32 %v3287, %v3327
          %v3352 = vsub.f32 %v3288, %v3330
          %v3353 = vsub.f32 %v3289, %v3333
          %v3354 = vsub.f32 %v3290, %v3336
          %v3355 = vsub.f32 %v3291, %v3339
          %v3356 = vmul.f32 %v3340, 1.442695
          %v3357 = vpow.pop %v3356
          %v3358 = vmul.f32 %v3341, 1.442695
          %v3359 = vpow.pop %v3358
          %v3360 = vmul.f32 %v3342, 1.442695
          %v3361 = vpow.pop %v3360
          %v3362 = vmul.f32 %v3343, 1.442695
          %v3363 = vpow.pop %v3362
          %v3364 = vmul.f32 %v3344, 1.442695
          %v3365 = vpow.pop %v3364
          %v3366 = vmul.f32 %v3345, 1.442695
          %v3367 = vpow.pop %v3366
          %v3368 = vmul.f32 %v3346, 1.442695
          %v3369 = vpow.pop %v3368
          %v3370 = vmul.f32 %v3347, 1.442695
          %v3371 = vpow.pop %v3370
          %v3372 = vmul.f32 %v3348, 1.442695
          %v3373 = vpow.pop %v3372
          %v3374 = vmul.f32 %v3349, 1.442695
          %v3375 = vpow.pop %v3374
          %v3376 = vmul.f32 %v3350, 1.442695
          %v3377 = vpow.pop %v3376
          %v3378 = vmul.f32 %v3351, 1.442695
          %v3379 = vpow.pop %v3378
          %v3380 = vmul.f32 %v3352, 1.442695
          %v3381 = vpow.pop %v3380
          %v3382 = vmul.f32 %v3353, 1.442695
          %v3383 = vpow.pop %v3382
          %v3384 = vmul.f32 %v3354, 1.442695
          %v3385 = vpow.pop %v3384
          %v3386 = vmul.f32 %v3355, 1.442695
          %v3387 = vpow.pop %v3386
          %v3388 = vsel %vm1148, %v3357, 0.0
          %3389 = vadd.xlane.f32.xlu0 %v3388
          %v3390 = vpop.xlane.xlu0 %3389
          %v3391 = vsel %vm1148, %v3359, 0.0
          %3392 = vadd.xlane.f32.xlu0 %v3391
          %v3393 = vpop.xlane.xlu0 %3392
          %v3394 = vsel %vm1148, %v3361, 0.0
          %3395 = vadd.xlane.f32.xlu0 %v3394
          %v3396 = vpop.xlane.xlu0 %3395
          %v3397 = vsel %vm1148, %v3363, 0.0
          %3398 = vadd.xlane.f32.xlu0 %v3397
          %v3399 = vpop.xlane.xlu0 %3398
          %v3400 = vsel %vm1148, %v3365, 0.0
          %3401 = vadd.xlane.f32.xlu0 %v3400
          %v3402 = vpop.xlane.xlu0 %3401
          %v3403 = vsel %vm1148, %v3367, 0.0
          %3404 = vadd.xlane.f32.xlu0 %v3403
          %v3405 = vpop.xlane.xlu0 %3404
          %v3406 = vsel %vm1148, %v3369, 0.0
          %3407 = vadd.xlane.f32.xlu0 %v3406
          %v3408 = vpop.xlane.xlu0 %3407
          %v3409 = vsel %vm1148, %v3371, 0.0
          %3410 = vadd.xlane.f32.xlu0 %v3409
          %v3411 = vpop.xlane.xlu0 %3410
          %v3412 = vsel %vm1148, %v3373, 0.0
          %3413 = vadd.xlane.f32.xlu0 %v3412
          %v3414 = vpop.xlane.xlu0 %3413
          %v3415 = vsel %vm1148, %v3375, 0.0
          %3416 = vadd.xlane.f32.xlu0 %v3415
          %v3417 = vpop.xlane.xlu0 %3416
          %v3418 = vsel %vm1148, %v3377, 0.0
          %3419 = vadd.xlane.f32.xlu0 %v3418
          %v3420 = vpop.xlane.xlu0 %3419
          %v3421 = vsel %vm1148, %v3379, 0.0
          %3422 = vadd.xlane.f32.xlu0 %v3421
          %v3423 = vpop.xlane.xlu0 %3422
          %v3424 = vsel %vm1148, %v3381, 0.0
          %3425 = vadd.xlane.f32.xlu0 %v3424
          %v3426 = vpop.xlane.xlu0 %3425
          %v3427 = vsel %vm1148, %v3383, 0.0
          %3428 = vadd.xlane.f32.xlu0 %v3427
          %v3429 = vpop.xlane.xlu0 %3428
          %v3430 = vsel %vm1148, %v3385, 0.0
          %3431 = vadd.xlane.f32.xlu0 %v3430
          %v3432 = vpop.xlane.xlu0 %3431
          %v3433 = vsel %vm1148, %v3387, 0.0
          %3434 = vadd.xlane.f32.xlu0 %v3433
          %v3435 = vpop.xlane.xlu0 %3434
          %v3436 = vrcp.pop %v3390
          %v3437 = vmul.f32 %v3357, %v3436
          %v3438 = vrcp.pop %v3393
          %v3439 = vmul.f32 %v3359, %v3438
          %v3440 = vrcp.pop %v3396
          %v3441 = vmul.f32 %v3361, %v3440
          %v3442 = vrcp.pop %v3399
          %v3443 = vmul.f32 %v3363, %v3442
          %v3444 = vrcp.pop %v3402
          %v3445 = vmul.f32 %v3365, %v3444
          %v3446 = vrcp.pop %v3405
          %v3447 = vmul.f32 %v3367, %v3446
          %v3448 = vrcp.pop %v3408
          %v3449 = vmul.f32 %v3369, %v3448
          %v3450 = vrcp.pop %v3411
          %v3451 = vmul.f32 %v3371, %v3450
          %v3452 = vrcp.pop %v3414
          %v3453 = vmul.f32 %v3373, %v3452
          %v3454 = vrcp.pop %v3417
          %v3455 = vmul.f32 %v3375, %v3454
          %v3456 = vrcp.pop %v3420
          %v3457 = vmul.f32 %v3377, %v3456
          %v3458 = vrcp.pop %v3423
          %v3459 = vmul.f32 %v3379, %v3458
          %v3460 = vrcp.pop %v3426
          %v3461 = vmul.f32 %v3381, %v3460
          %v3462 = vrcp.pop %v3429
          %v3463 = vmul.f32 %v3383, %v3462
          %v3464 = vrcp.pop %v3432
          %v3465 = vmul.f32 %v3385, %v3464
          %v3466 = vrcp.pop %v3435
          %v3467 = vmul.f32 %v3387, %v3466
          %v3469 = vsel %vm1148, %v3437, 0
          %v3472 = vsel %vm1148, %v3439, 0
          %v3475 = vsel %vm1148, %v3441, 0
          %v3478 = vsel %vm1148, %v3443, 0
          %3480 = vmatprep.subr.mxu0 0.0
          %3481 = vmatpush1.msra.mxu0 0.0
          %3482 = vmatprep.subr.mxu0 0.0
          %3483 = vmatpush1.msra.mxu0 0.0
          %3484 = vmatprep.subr.mxu0 0.0
          %3485 = vmatpush1.msra.mxu0 0.0
          %3486 = vmatprep.subr.mxu0 0.0
          %3487 = vmatpush1.msra.mxu0 0.0
          %3488 = vmatprep.subr.mxu0 0.0
          %3489 = vmatpush1.msra.mxu0 0.0
          %3490 = vmatprep.subr.mxu0 0.0
          %3491 = vmatpush1.msra.mxu0 0.0
          %3492 = vmatprep.subr.mxu0 0.0
          %3493 = vmatpush1.msra.mxu0 0.0
          %3494 = vmatprep.subr.mxu0 0.0
          %3495 = vmatpush1.msra.mxu0 0.0
          %3496 = vmatprep.subr.mxu0 0.0
          %3497 = vmatpush1.msra.mxu0 0.0
          %3498 = vmatprep.subr.mxu0 0.0
          %3499 = vmatpush1.msra.mxu0 0.0
          %3500 = vmatprep.subr.mxu0 0.0
          %3501 = vmatpush1.msra.mxu0 0.0
          %3502 = vmatprep.subr.mxu0 0.0
          %3503 = vmatpush1.msra.mxu0 0.0
          %3504 = vmatprep.subr.mxu0 0.0
          %3505 = vmatpush1.msra.mxu0 %v2758
          %3506 = vmatprep.subr.mxu0 0.0
          %3507 = vmatpush1.msra.mxu0 %v2754
          %3508 = vmatprep.subr.mxu0 0.0
          %3509 = vmatpush1.msra.mxu0 %v2748
          %3510 = vmatprep.subr.mxu0 0.0
          %3511 = vmatpush1.msra.mxu0 %v2744
          %3512 = vmatprep.subr.mxu0 0.0
          %3513 = vmatpush2.msra.mxu0 0.0
          %3514 = vmatprep.subr.mxu0 0.0
          %3515 = vmatpush2.msra.mxu0 0.0
          %3516 = vmatprep.subr.mxu0 0.0
          %3517 = vmatpush2.msra.mxu0 0.0
          %3518 = vmatprep.subr.mxu0 0.0
          %3519 = vmatpush2.msra.mxu0 0.0
          %3520 = vmatprep.subr.mxu0 0.0
          %3521 = vmatpush2.msra.mxu0 0.0
          %3522 = vmatprep.subr.mxu0 0.0
          %3523 = vmatpush2.msra.mxu0 0.0
          %3524 = vmatprep.subr.mxu0 0.0
          %3525 = vmatpush2.msra.mxu0 0.0
          %3526 = vmatprep.subr.mxu0 0.0
          %3527 = vmatpush2.msra.mxu0 0.0
          %3528 = vmatprep.subr.mxu0 0.0
          %3529 = vmatpush2.msra.mxu0 0.0
          %3530 = vmatprep.subr.mxu0 0.0
          %3531 = vmatpush2.msra.mxu0 0.0
          %3532 = vmatprep.subr.mxu0 0.0
          %3533 = vmatpush2.msra.mxu0 0.0
          %3534 = vmatprep.subr.mxu0 0.0
          %3535 = vmatpush2.msra.mxu0 0.0
          %3536 = vmatprep.subr.mxu0 0.0
          %3537 = vmatpush2.msra.mxu0 0.0
          %3538 = vmatprep.subr.mxu0 0.0
          %3539 = vmatpush2.msra.mxu0 0.0
          %3540 = vmatprep.subr.mxu0 0.0
          %3541 = vmatpush2.msra.mxu0 0.0
          %3542 = vmatprep.subr.mxu0 0.0
          %3543 = vmatpush2.msra.mxu0 0.0
          %3544 = vmatprep.mubr.f32.mxu0 0.0
          %3545 = vmatmul.mubr.f32.gmra.mxu0 %v3469
          %v3546 = vpop.f32.mrf.mxu0
          %v3547 = vadd.f32 0.0, %v3546
          %v3548 = vpop.f32.mrf.mxu0
          %3549 = vmatprep.mubr.f32.mxu0 0.0
          %3550 = vmatmul.mubr.f32.gmra.mxu0 %v3472
          %v3551 = vpop.f32.mrf.mxu0
          %v3552 = vadd.f32 0.0, %v3551
          %v3553 = vpop.f32.mrf.mxu0
          %3554 = vmatprep.mubr.f32.mxu0 0.0
          %3555 = vmatmul.mubr.f32.gmra.mxu0 %v3475
          %v3556 = vpop.f32.mrf.mxu0
          %v3557 = vadd.f32 0.0, %v3556
          %v3558 = vpop.f32.mrf.mxu0
          %3559 = vmatprep.mubr.f32.mxu0 0.0
          %3560 = vmatmul.mubr.f32.gmra.mxu0 %v3478
          %v3561 = vpop.f32.mrf.mxu0
          %v3562 = vadd.f32 0.0, %v3561
          %v3563 = vpop.f32.mrf.mxu0
          %3564 = vdwg.mxu0
          %v3566 = vsel %vm1148, %v3445, 0
          %v3569 = vsel %vm1148, %v3447, 0
          %v3572 = vsel %vm1148, %v3449, 0
          %v3575 = vsel %vm1148, %v3451, 0
          %3577 = vmatprep.subr.mxu0 0.0
          %3578 = vmatpush1.msra.mxu0 0.0
          %3579 = vmatprep.subr.mxu0 0.0
          %3580 = vmatpush1.msra.mxu0 0.0
          %3581 = vmatprep.subr.mxu0 0.0
          %3582 = vmatpush1.msra.mxu0 0.0
          %3583 = vmatprep.subr.mxu0 0.0
          %3584 = vmatpush1.msra.mxu0 0.0
          %3585 = vmatprep.subr.mxu0 0.0
          %3586 = vmatpush1.msra.mxu0 0.0
          %3587 = vmatprep.subr.mxu0 0.0
          %3588 = vmatpush1.msra.mxu0 0.0
          %3589 = vmatprep.subr.mxu0 0.0
          %3590 = vmatpush1.msra.mxu0 0.0
          %3591 = vmatprep.subr.mxu0 0.0
          %3592 = vmatpush1.msra.mxu0 0.0
          %3593 = vmatprep.subr.mxu0 0.0
          %3594 = vmatpush1.msra.mxu0 0.0
          %3595 = vmatprep.subr.mxu0 0.0
          %3596 = vmatpush1.msra.mxu0 0.0
          %3597 = vmatprep.subr.mxu0 0.0
          %3598 = vmatpush1.msra.mxu0 0.0
          %3599 = vmatprep.subr.mxu0 0.0
          %3600 = vmatpush1.msra.mxu0 0.0
          %3601 = vmatprep.subr.mxu0 0.0
          %3602 = vmatpush1.msra.mxu0 %v2827
          %3603 = vmatprep.subr.mxu0 0.0
          %3604 = vmatpush1.msra.mxu0 %v2825
          %3605 = vmatprep.subr.mxu0 0.0
          %3606 = vmatpush1.msra.mxu0 %v2823
          %3607 = vmatprep.subr.mxu0 0.0
          %3608 = vmatpush1.msra.mxu0 %v2821
          %3609 = vmatprep.subr.mxu0 0.0
          %3610 = vmatpush2.msra.mxu0 0.0
          %3611 = vmatprep.subr.mxu0 0.0
          %3612 = vmatpush2.msra.mxu0 0.0
          %3613 = vmatprep.subr.mxu0 0.0
          %3614 = vmatpush2.msra.mxu0 0.0
          %3615 = vmatprep.subr.mxu0 0.0
          %3616 = vmatpush2.msra.mxu0 0.0
          %3617 = vmatprep.subr.mxu0 0.0
          %3618 = vmatpush2.msra.mxu0 0.0
          %3619 = vmatprep.subr.mxu0 0.0
          %3620 = vmatpush2.msra.mxu0 0.0
          %3621 = vmatprep.subr.mxu0 0.0
          %3622 = vmatpush2.msra.mxu0 0.0
          %3623 = vmatprep.subr.mxu0 0.0
          %3624 = vmatpush2.msra.mxu0 0.0
          %3625 = vmatprep.subr.mxu0 0.0
          %3626 = vmatpush2.msra.mxu0 0.0
          %3627 = vmatprep.subr.mxu0 0.0
          %3628 = vmatpush2.msra.mxu0 0.0
          %3629 = vmatprep.subr.mxu0 0.0
          %3630 = vmatpush2.msra.mxu0 0.0
          %3631 = vmatprep.subr.mxu0 0.0
          %3632 = vmatpush2.msra.mxu0 0.0
          %3633 = vmatprep.subr.mxu0 0.0
          %3634 = vmatpush2.msra.mxu0 0.0
          %3635 = vmatprep.subr.mxu0 0.0
          %3636 = vmatpush2.msra.mxu0 0.0
          %3637 = vmatprep.subr.mxu0 0.0
          %3638 = vmatpush2.msra.mxu0 0.0
          %3639 = vmatprep.subr.mxu0 0.0
          %3640 = vmatpush2.msra.mxu0 0.0
          %3641 = vmatprep.mubr.f32.mxu0 0.0
          %3642 = vmatmul.mubr.f32.gmra.mxu0 %v3566
          %v3643 = vpop.f32.mrf.mxu0
          %v3644 = vadd.f32 0.0, %v3643
          %v3645 = vpop.f32.mrf.mxu0
          %3646 = vmatprep.mubr.f32.mxu0 0.0
          %3647 = vmatmul.mubr.f32.gmra.mxu0 %v3569
          %v3648 = vpop.f32.mrf.mxu0
          %v3649 = vadd.f32 0.0, %v3648
          %v3650 = vpop.f32.mrf.mxu0
          %3651 = vmatprep.mubr.f32.mxu0 0.0
          %3652 = vmatmul.mubr.f32.gmra.mxu0 %v3572
          %v3653 = vpop.f32.mrf.mxu0
          %v3654 = vadd.f32 0.0, %v3653
          %v3655 = vpop.f32.mrf.mxu0
          %3656 = vmatprep.mubr.f32.mxu0 0.0
          %3657 = vmatmul.mubr.f32.gmra.mxu0 %v3575
          %v3658 = vpop.f32.mrf.mxu0
          %v3659 = vadd.f32 0.0, %v3658
          %v3660 = vpop.f32.mrf.mxu0
          %3661 = vdwg.mxu0
          %v3663 = vsel %vm1148, %v3453, 0
          %v3666 = vsel %vm1148, %v3455, 0
          %v3669 = vsel %vm1148, %v3457, 0
          %v3672 = vsel %vm1148, %v3459, 0
          %3674 = vmatprep.subr.mxu0 0.0
          %3675 = vmatpush1.msra.mxu0 0.0
          %3676 = vmatprep.subr.mxu0 0.0
          %3677 = vmatpush1.msra.mxu0 0.0
          %3678 = vmatprep.subr.mxu0 0.0
          %3679 = vmatpush1.msra.mxu0 0.0
          %3680 = vmatprep.subr.mxu0 0.0
          %3681 = vmatpush1.msra.mxu0 0.0
          %3682 = vmatprep.subr.mxu0 0.0
          %3683 = vmatpush1.msra.mxu0 0.0
          %3684 = vmatprep.subr.mxu0 0.0
          %3685 = vmatpush1.msra.mxu0 0.0
          %3686 = vmatprep.subr.mxu0 0.0
          %3687 = vmatpush1.msra.mxu0 0.0
          %3688 = vmatprep.subr.mxu0 0.0
          %3689 = vmatpush1.msra.mxu0 0.0
          %3690 = vmatprep.subr.mxu0 0.0
          %3691 = vmatpush1.msra.mxu0 0.0
          %3692 = vmatprep.subr.mxu0 0.0
          %3693 = vmatpush1.msra.mxu0 0.0
          %3694 = vmatprep.subr.mxu0 0.0
          %3695 = vmatpush1.msra.mxu0 0.0
          %3696 = vmatprep.subr.mxu0 0.0
          %3697 = vmatpush1.msra.mxu0 0.0
          %3698 = vmatprep.subr.mxu0 0.0
          %3699 = vmatpush1.msra.mxu0 %v2839
          %3700 = vmatprep.subr.mxu0 0.0
          %3701 = vmatpush1.msra.mxu0 %v2837
          %3702 = vmatprep.subr.mxu0 0.0
          %3703 = vmatpush1.msra.mxu0 %v2835
          %3704 = vmatprep.subr.mxu0 0.0
          %3705 = vmatpush1.msra.mxu0 %v2833
          %3706 = vmatprep.subr.mxu0 0.0
          %3707 = vmatpush2.msra.mxu0 0.0
          %3708 = vmatprep.subr.mxu0 0.0
          %3709 = vmatpush2.msra.mxu0 0.0
          %3710 = vmatprep.subr.mxu0 0.0
          %3711 = vmatpush2.msra.mxu0 0.0
          %3712 = vmatprep.subr.mxu0 0.0
          %3713 = vmatpush2.msra.mxu0 0.0
          %3714 = vmatprep.subr.mxu0 0.0
          %3715 = vmatpush2.msra.mxu0 0.0
          %3716 = vmatprep.subr.mxu0 0.0
          %3717 = vmatpush2.msra.mxu0 0.0
          %3718 = vmatprep.subr.mxu0 0.0
          %3719 = vmatpush2.msra.mxu0 0.0
          %3720 = vmatprep.subr.mxu0 0.0
          %3721 = vmatpush2.msra.mxu0 0.0
          %3722 = vmatprep.subr.mxu0 0.0
          %3723 = vmatpush2.msra.mxu0 0.0
          %3724 = vmatprep.subr.mxu0 0.0
          %3725 = vmatpush2.msra.mxu0 0.0
          %3726 = vmatprep.subr.mxu0 0.0
          %3727 = vmatpush2.msra.mxu0 0.0
          %3728 = vmatprep.subr.mxu0 0.0
          %3729 = vmatpush2.msra.mxu0 0.0
          %3730 = vmatprep.subr.mxu0 0.0
          %3731 = vmatpush2.msra.mxu0 0.0
          %3732 = vmatprep.subr.mxu0 0.0
          %3733 = vmatpush2.msra.mxu0 0.0
          %3734 = vmatprep.subr.mxu0 0.0
          %3735 = vmatpush2.msra.mxu0 0.0
          %3736 = vmatprep.subr.mxu0 0.0
          %3737 = vmatpush2.msra.mxu0 0.0
          %3738 = vmatprep.mubr.f32.mxu0 0.0
          %3739 = vmatmul.mubr.f32.gmra.mxu0 %v3663
          %v3740 = vpop.f32.mrf.mxu0
          %v3741 = vadd.f32 0.0, %v3740
          %v3742 = vpop.f32.mrf.mxu0
          %3743 = vmatprep.mubr.f32.mxu0 0.0
          %3744 = vmatmul.mubr.f32.gmra.mxu0 %v3666
          %v3745 = vpop.f32.mrf.mxu0
          %v3746 = vadd.f32 0.0, %v3745
          %v3747 = vpop.f32.mrf.mxu0
          %3748 = vmatprep.mubr.f32.mxu0 0.0
          %3749 = vmatmul.mubr.f32.gmra.mxu0 %v3669
          %v3750 = vpop.f32.mrf.mxu0
          %v3751 = vadd.f32 0.0, %v3750
          %v3752 = vpop.f32.mrf.mxu0
          %3753 = vmatprep.mubr.f32.mxu0 0.0
          %3754 = vmatmul.mubr.f32.gmra.mxu0 %v3672
          %v3755 = vpop.f32.mrf.mxu0
          %v3756 = vadd.f32 0.0, %v3755
          %v3757 = vpop.f32.mrf.mxu0
          %3758 = vdwg.mxu0
          %v3760 = vsel %vm1148, %v3461, 0
          %v3763 = vsel %vm1148, %v3463, 0
          %v3766 = vsel %vm1148, %v3465, 0
          %v3769 = vsel %vm1148, %v3467, 0
          %3771 = vmatprep.subr.mxu0 0.0
          %3772 = vmatpush1.msra.mxu0 0.0
          %3773 = vmatprep.subr.mxu0 0.0
          %3774 = vmatpush1.msra.mxu0 0.0
          %3775 = vmatprep.subr.mxu0 0.0
          %3776 = vmatpush1.msra.mxu0 0.0
          %3777 = vmatprep.subr.mxu0 0.0
          %3778 = vmatpush1.msra.mxu0 0.0
          %3779 = vmatprep.subr.mxu0 0.0
          %3780 = vmatpush1.msra.mxu0 0.0
          %3781 = vmatprep.subr.mxu0 0.0
          %3782 = vmatpush1.msra.mxu0 0.0
          %3783 = vmatprep.subr.mxu0 0.0
          %3784 = vmatpush1.msra.mxu0 0.0
          %3785 = vmatprep.subr.mxu0 0.0
          %3786 = vmatpush1.msra.mxu0 0.0
          %3787 = vmatprep.subr.mxu0 0.0
          %3788 = vmatpush1.msra.mxu0 0.0
          %3789 = vmatprep.subr.mxu0 0.0
          %3790 = vmatpush1.msra.mxu0 0.0
          %3791 = vmatprep.subr.mxu0 0.0
          %3792 = vmatpush1.msra.mxu0 0.0
          %3793 = vmatprep.subr.mxu0 0.0
          %3794 = vmatpush1.msra.mxu0 0.0
          %3795 = vmatprep.subr.mxu0 0.0
          %3796 = vmatpush1.msra.mxu0 %v2851
          %3797 = vmatprep.subr.mxu0 0.0
          %3798 = vmatpush1.msra.mxu0 %v2849
          %3799 = vmatprep.subr.mxu0 0.0
          %3800 = vmatpush1.msra.mxu0 %v2847
          %3801 = vmatprep.subr.mxu0 0.0
          %3802 = vmatpush1.msra.mxu0 %v2845
          %3803 = vmatprep.subr.mxu0 0.0
          %3804 = vmatpush2.msra.mxu0 0.0
          %3805 = vmatprep.subr.mxu0 0.0
          %3806 = vmatpush2.msra.mxu0 0.0
          %3807 = vmatprep.subr.mxu0 0.0
          %3808 = vmatpush2.msra.mxu0 0.0
          %3809 = vmatprep.subr.mxu0 0.0
          %3810 = vmatpush2.msra.mxu0 0.0
          %3811 = vmatprep.subr.mxu0 0.0
          %3812 = vmatpush2.msra.mxu0 0.0
          %3813 = vmatprep.subr.mxu0 0.0
          %3814 = vmatpush2.msra.mxu0 0.0
          %3815 = vmatprep.subr.mxu0 0.0
          %3816 = vmatpush2.msra.mxu0 0.0
          %3817 = vmatprep.subr.mxu0 0.0
          %3818 = vmatpush2.msra.mxu0 0.0
          %3819 = vmatprep.subr.mxu0 0.0
          %3820 = vmatpush2.msra.mxu0 0.0
          %3821 = vmatprep.subr.mxu0 0.0
          %3822 = vmatpush2.msra.mxu0 0.0
          %3823 = vmatprep.subr.mxu0 0.0
          %3824 = vmatpush2.msra.mxu0 0.0
          %3825 = vmatprep.subr.mxu0 0.0
          %3826 = vmatpush2.msra.mxu0 0.0
          %3827 = vmatprep.subr.mxu0 0.0
          %3828 = vmatpush2.msra.mxu0 0.0
          %3829 = vmatprep.subr.mxu0 0.0
          %3830 = vmatpush2.msra.mxu0 0.0
          %3831 = vmatprep.subr.mxu0 0.0
          %3832 = vmatpush2.msra.mxu0 0.0
          %3833 = vmatprep.subr.mxu0 0.0
          %3834 = vmatpush2.msra.mxu0 0.0
          %3835 = vmatprep.mubr.f32.mxu0 0.0
          %3836 = vmatmul.mubr.f32.gmra.mxu0 %v3760
          %v3837 = vpop.f32.mrf.mxu0
          %v3838 = vadd.f32 0.0, %v3837
          %v3839 = vpop.f32.mrf.mxu0
          %3840 = vmatprep.mubr.f32.mxu0 0.0
          %3841 = vmatmul.mubr.f32.gmra.mxu0 %v3763
          %v3842 = vpop.f32.mrf.mxu0
          %v3843 = vadd.f32 0.0, %v3842
          %v3844 = vpop.f32.mrf.mxu0
          %3845 = vmatprep.mubr.f32.mxu0 0.0
          %3846 = vmatmul.mubr.f32.gmra.mxu0 %v3766
          %v3847 = vpop.f32.mrf.mxu0
          %v3848 = vadd.f32 0.0, %v3847
          %v3849 = vpop.f32.mrf.mxu0
          %3850 = vmatprep.mubr.f32.mxu0 0.0
          %3851 = vmatmul.mubr.f32.gmra.mxu0 %v3769
          %v3852 = vpop.f32.mrf.mxu0
          %v3853 = vadd.f32 0.0, %v3852
          %v3854 = vpop.f32.mrf.mxu0
          %3855 = vdwg.mxu0
          %v3856 = vpack.c.bf16 %v3552, %v3547
          %v3857 = vpack.c.bf16 %v3562, %v3557
          %v3858 = vpack.c.bf16 %v3649, %v3644
          %v3859 = vpack.c.bf16 %v3659, %v3654
          %v3864 = vunpack.c.l.b16 %v644
          %v3865 = vunpack.c.l.b16 %v645
          %v3866 = vunpack.c.l.b16 %v646
          %v3867 = vunpack.c.l.b16 %v647
          %v3868 = vpack.c.b16 %v3865, %v3864
          %v3869 = vpack.c.b16 %v3867, %v3866
          %v3873 = vsel %vm1148, %v3858, 0
          %v3876 = vsel %vm1148, %v3859, 0
          %3878 = vmatprep.subr.bf16.mxu0 0
          %3879 = vmatpush1.bf16.msra.mxu0 0
          %3880 = vmatprep.subr.bf16.mxu0 0
          %3881 = vmatpush1.bf16.msra.mxu0 0
          %3882 = vmatprep.subr.bf16.mxu0 0
          %3883 = vmatpush1.bf16.msra.mxu0 0
          %3884 = vmatprep.subr.bf16.mxu0 0
          %3885 = vmatpush1.bf16.msra.mxu0 0
          %3886 = vmatprep.subr.bf16.mxu0 0
          %3887 = vmatpush1.bf16.msra.mxu0 0
          %3888 = vmatprep.subr.bf16.mxu0 0
          %3889 = vmatpush1.bf16.msra.mxu0 0
          %3890 = vmatprep.subr.bf16.mxu0 0
          %3891 = vmatpush1.bf16.msra.mxu0 %v3869
          %3892 = vmatprep.subr.bf16.mxu0 0
          %3893 = vmatpush1.bf16.msra.mxu0 %v3868
          %3894 = vmatprep.subr.bf16.mxu0 0
          %3895 = vmatpush2.bf16.msra.mxu0 0
          %3896 = vmatprep.subr.bf16.mxu0 0
          %3897 = vmatpush2.bf16.msra.mxu0 0
          %3898 = vmatprep.subr.bf16.mxu0 0
          %3899 = vmatpush2.bf16.msra.mxu0 0
          %3900 = vmatprep.subr.bf16.mxu0 0
          %3901 = vmatpush2.bf16.msra.mxu0 0
          %3902 = vmatprep.subr.bf16.mxu0 0
          %3903 = vmatpush2.bf16.msra.mxu0 0
          %3904 = vmatprep.subr.bf16.mxu0 0
          %3905 = vmatpush2.bf16.msra.mxu0 0
          %3906 = vmatprep.subr.bf16.mxu0 0
          %3907 = vmatpush2.bf16.msra.mxu0 0
          %3908 = vmatprep.subr.bf16.mxu0 0
          %3909 = vmatpush2.bf16.msra.mxu0 0
          %3910 = vmatprep.mubr.bf16.mxu0 0
          %3911 = vmatmul.mubr.bf16.gmra.mxu0 %v3873
          %v3912 = vpop.f32.mrf.mxu0
          %v3913 = vadd.f32 0.0, %v3912
          %v3914 = vpop.f32.mrf.mxu0
          %v3915 = vpop.f32.mrf.mxu0
          %v3916 = vadd.f32 0.0, %v3915
          %v3917 = vpop.f32.mrf.mxu0
          %3918 = vmatprep.mubr.bf16.mxu0 0
          %3919 = vmatmul.mubr.bf16.gmra.mxu0 %v3876
          %v3920 = vpop.f32.mrf.mxu0
          %v3921 = vadd.f32 0.0, %v3920
          %v3922 = vpop.f32.mrf.mxu0
          %v3923 = vpop.f32.mrf.mxu0
          %v3924 = vadd.f32 0.0, %v3923
          %v3925 = vpop.f32.mrf.mxu0
          %3926 = vdwg.mxu0
          %v3931 = vunpack.c.l.b16 %v640
          %v3932 = vunpack.c.l.b16 %v641
          %v3933 = vunpack.c.l.b16 %v642
          %v3934 = vunpack.c.l.b16 %v643
          %v3935 = vpack.c.b16 %v3932, %v3931
          %v3936 = vpack.c.b16 %v3934, %v3933
          %v3940 = vsel %vm1148, %v3856, 0
          %v3943 = vsel %vm1148, %v3857, 0
          %3945 = vmatprep.subr.bf16.mxu0 0
          %3946 = vmatpush1.bf16.msra.mxu0 0
          %3947 = vmatprep.subr.bf16.mxu0 0
          %3948 = vmatpush1.bf16.msra.mxu0 0
          %3949 = vmatprep.subr.bf16.mxu0 0
          %3950 = vmatpush1.bf16.msra.mxu0 0
          %3951 = vmatprep.subr.bf16.mxu0 0
          %3952 = vmatpush1.bf16.msra.mxu0 0
          %3953 = vmatprep.subr.bf16.mxu0 0
          %3954 = vmatpush1.bf16.msra.mxu0 0
          %3955 = vmatprep.subr.bf16.mxu0 0
          %3956 = vmatpush1.bf16.msra.mxu0 0
          %3957 = vmatprep.subr.bf16.mxu0 0
          %3958 = vmatpush1.bf16.msra.mxu0 %v3936
          %3959 = vmatprep.subr.bf16.mxu0 0
          %3960 = vmatpush1.bf16.msra.mxu0 %v3935
          %3961 = vmatprep.subr.bf16.mxu0 0
          %3962 = vmatpush2.bf16.msra.mxu0 0
          %3963 = vmatprep.subr.bf16.mxu0 0
          %3964 = vmatpush2.bf16.msra.mxu0 0
          %3965 = vmatprep.subr.bf16.mxu0 0
          %3966 = vmatpush2.bf16.msra.mxu0 0
          %3967 = vmatprep.subr.bf16.mxu0 0
          %3968 = vmatpush2.bf16.msra.mxu0 0
          %3969 = vmatprep.subr.bf16.mxu0 0
          %3970 = vmatpush2.bf16.msra.mxu0 0
          %3971 = vmatprep.subr.bf16.mxu0 0
          %3972 = vmatpush2.bf16.msra.mxu0 0
          %3973 = vmatprep.subr.bf16.mxu0 0
          %3974 = vmatpush2.bf16.msra.mxu0 0
          %3975 = vmatprep.subr.bf16.mxu0 0
          %3976 = vmatpush2.bf16.msra.mxu0 0
          %3977 = vmatprep.mubr.bf16.mxu0 0
          %3978 = vmatmul.mubr.bf16.gmra.mxu0 %v3940
          %v3979 = vpop.f32.mrf.mxu0
          %v3980 = vadd.f32 %v3913, %v3979
          %v3981 = vpop.f32.mrf.mxu0
          %v3982 = vpop.f32.mrf.mxu0
          %v3983 = vadd.f32 %v3916, %v3982
          %v3984 = vpop.f32.mrf.mxu0
          %3985 = vmatprep.mubr.bf16.mxu0 0
          %3986 = vmatmul.mubr.bf16.gmra.mxu0 %v3943
          %v3987 = vpop.f32.mrf.mxu0
          %v3988 = vadd.f32 %v3921, %v3987
          %v3989 = vpop.f32.mrf.mxu0
          %v3990 = vpop.f32.mrf.mxu0
          %v3991 = vadd.f32 %v3924, %v3990
          %v3992 = vpop.f32.mrf.mxu0
          %3993 = vdwg.mxu0
          %v3994 = vpack.c.bf16 %v3746, %v3741
          %v3995 = vpack.c.bf16 %v3756, %v3751
          %v4000 = vunpack.c.l.b16 %v648
          %v4001 = vunpack.c.l.b16 %v649
          %v4002 = vunpack.c.l.b16 %v650
          %v4003 = vunpack.c.l.b16 %v651
          %v4004 = vpack.c.b16 %v4001, %v4000
          %v4005 = vpack.c.b16 %v4003, %v4002
          %v4009 = vsel %vm1148, %v3994, 0
          %v4012 = vsel %vm1148, %v3995, 0
          %4014 = vmatprep.subr.bf16.mxu0 0
          %4015 = vmatpush1.bf16.msra.mxu0 0
          %4016 = vmatprep.subr.bf16.mxu0 0
          %4017 = vmatpush1.bf16.msra.mxu0 0
          %4018 = vmatprep.subr.bf16.mxu0 0
          %4019 = vmatpush1.bf16.msra.mxu0 0
          %4020 = vmatprep.subr.bf16.mxu0 0
          %4021 = vmatpush1.bf16.msra.mxu0 0
          %4022 = vmatprep.subr.bf16.mxu0 0
          %4023 = vmatpush1.bf16.msra.mxu0 0
          %4024 = vmatprep.subr.bf16.mxu0 0
          %4025 = vmatpush1.bf16.msra.mxu0 0
          %4026 = vmatprep.subr.bf16.mxu0 0
          %4027 = vmatpush1.bf16.msra.mxu0 %v4005
          %4028 = vmatprep.subr.bf16.mxu0 0
          %4029 = vmatpush1.bf16.msra.mxu0 %v4004
          %4030 = vmatprep.subr.bf16.mxu0 0
          %4031 = vmatpush2.bf16.msra.mxu0 0
          %4032 = vmatprep.subr.bf16.mxu0 0
          %4033 = vmatpush2.bf16.msra.mxu0 0
          %4034 = vmatprep.subr.bf16.mxu0 0
          %4035 = vmatpush2.bf16.msra.mxu0 0
          %4036 = vmatprep.subr.bf16.mxu0 0
          %4037 = vmatpush2.bf16.msra.mxu0 0
          %4038 = vmatprep.subr.bf16.mxu0 0
          %4039 = vmatpush2.bf16.msra.mxu0 0
          %4040 = vmatprep.subr.bf16.mxu0 0
          %4041 = vmatpush2.bf16.msra.mxu0 0
          %4042 = vmatprep.subr.bf16.mxu0 0
          %4043 = vmatpush2.bf16.msra.mxu0 0
          %4044 = vmatprep.subr.bf16.mxu0 0
          %4045 = vmatpush2.bf16.msra.mxu0 0
          %4046 = vmatprep.mubr.bf16.mxu0 0
          %4047 = vmatmul.mubr.bf16.gmra.mxu0 %v4009
          %v4048 = vpop.f32.mrf.mxu0
          %v4049 = vadd.f32 0.0, %v4048
          %v4050 = vpop.f32.mrf.mxu0
          %v4051 = vpop.f32.mrf.mxu0
          %v4052 = vadd.f32 0.0, %v4051
          %v4053 = vpop.f32.mrf.mxu0
          %4054 = vmatprep.mubr.bf16.mxu0 0
          %4055 = vmatmul.mubr.bf16.gmra.mxu0 %v4012
          %v4056 = vpop.f32.mrf.mxu0
          %v4057 = vadd.f32 0.0, %v4056
          %v4058 = vpop.f32.mrf.mxu0
          %v4059 = vpop.f32.mrf.mxu0
          %v4060 = vadd.f32 0.0, %v4059
          %v4061 = vpop.f32.mrf.mxu0
          %4062 = vdwg.mxu0
          %v4063 = vadd.f32 %v3980, %v4049
          %v4064 = vadd.f32 %v3983, %v4052
          %v4065 = vadd.f32 %v3988, %v4057
          %v4066 = vadd.f32 %v3991, %v4060
          %v4067 = vpack.c.bf16 %v3843, %v3838
          %v4068 = vpack.c.bf16 %v3853, %v3848
          %v4073 = vunpack.c.l.b16 %v652
          %v4074 = vunpack.c.l.b16 %v653
          %v4075 = vunpack.c.l.b16 %v654
          %v4076 = vunpack.c.l.b16 %v655
          %v4077 = vpack.c.b16 %v4074, %v4073
          %v4078 = vpack.c.b16 %v4076, %v4075
          %v4082 = vsel %vm1148, %v4067, 0
          %v4085 = vsel %vm1148, %v4068, 0
          %4087 = vmatprep.subr.bf16.mxu0 0
          %4088 = vmatpush1.bf16.msra.mxu0 0
          %4089 = vmatprep.subr.bf16.mxu0 0
          %4090 = vmatpush1.bf16.msra.mxu0 0
          %4091 = vmatprep.subr.bf16.mxu0 0
          %4092 = vmatpush1.bf16.msra.mxu0 0
          %4093 = vmatprep.subr.bf16.mxu0 0
          %4094 = vmatpush1.bf16.msra.mxu0 0
          %4095 = vmatprep.subr.bf16.mxu0 0
          %4096 = vmatpush1.bf16.msra.mxu0 0
          %4097 = vmatprep.subr.bf16.mxu0 0
          %4098 = vmatpush1.bf16.msra.mxu0 0
          %4099 = vmatprep.subr.bf16.mxu0 0
          %4100 = vmatpush1.bf16.msra.mxu0 %v4078
          %4101 = vmatprep.subr.bf16.mxu0 0
          %4102 = vmatpush1.bf16.msra.mxu0 %v4077
          %4103 = vmatprep.subr.bf16.mxu0 0
          %4104 = vmatpush2.bf16.msra.mxu0 0
          %4105 = vmatprep.subr.bf16.mxu0 0
          %4106 = vmatpush2.bf16.msra.mxu0 0
          %4107 = vmatprep.subr.bf16.mxu0 0
          %4108 = vmatpush2.bf16.msra.mxu0 0
          %4109 = vmatprep.subr.bf16.mxu0 0
          %4110 = vmatpush2.bf16.msra.mxu0 0
          %4111 = vmatprep.subr.bf16.mxu0 0
          %4112 = vmatpush2.bf16.msra.mxu0 0
          %4113 = vmatprep.subr.bf16.mxu0 0
          %4114 = vmatpush2.bf16.msra.mxu0 0
          %4115 = vmatprep.subr.bf16.mxu0 0
          %4116 = vmatpush2.bf16.msra.mxu0 0
          %4117 = vmatprep.subr.bf16.mxu0 0
          %4118 = vmatpush2.bf16.msra.mxu0 0
          %4119 = vmatprep.mubr.bf16.mxu0 0
          %4120 = vmatmul.mubr.bf16.gmra.mxu0 %v4082
          %v4121 = vpop.f32.mrf.mxu0
          %v4122 = vadd.f32 0.0, %v4121
          %v4123 = vpop.f32.mrf.mxu0
          %v4124 = vpop.f32.mrf.mxu0
          %v4125 = vadd.f32 0.0, %v4124
          %v4126 = vpop.f32.mrf.mxu0
          %4127 = vmatprep.mubr.bf16.mxu0 0
          %4128 = vmatmul.mubr.bf16.gmra.mxu0 %v4085
          %v4129 = vpop.f32.mrf.mxu0
          %v4130 = vadd.f32 0.0, %v4129
          %v4131 = vpop.f32.mrf.mxu0
          %v4132 = vpop.f32.mrf.mxu0
          %v4133 = vadd.f32 0.0, %v4132
          %v4134 = vpop.f32.mrf.mxu0
          %4135 = vdwg.mxu0
          %v4136 = vadd.f32 %v4063, %v4122
          %v4137 = vadd.f32 %v4064, %v4125
          %v4138 = vadd.f32 %v4065, %v4130
          %v4139 = vadd.f32 %v4066, %v4133
          %v4140 = vlaneseq
          %v4141 = vshrl.u32 %v4140, 7
          %v4142 = vsub.s32 2, %v4141
          %v4143 = vrot.slane %v536, %v4142
          %v4144 = vadd.f32 %v4136, %v4143
          %v4145 = vadd.f32 %v4137, %v4143
          %v4146 = vadd.f32 %v4138, %v4143
          %v4147 = vadd.f32 %v4139, %v4143
          %v4148 = vadd.f32 %v2510, %v4144
          %v4149 = vadd.f32 %v2511, %v4145
          %v4150 = vadd.f32 %v2512, %v4146
          %v4151 = vadd.f32 %v2513, %v4147
          %4152 = vadd.xlane.f32.xlu0 %v4148
          %v4153 = vpop.xlane.xlu0 %4152
          %4154 = vadd.xlane.f32.xlu0 %v4149
          %v4155 = vpop.xlane.xlu0 %4154
          %4156 = vadd.xlane.f32.xlu0 %v4150
          %v4157 = vpop.xlane.xlu0 %4156
          %4158 = vadd.xlane.f32.xlu0 %v4151
          %v4159 = vpop.xlane.xlu0 %4158
          %v4160 = vmul.f32 %v4153, %v2453
          %v4161 = vmul.f32 %v4155, %v2453
          %v4162 = vmul.f32 %v4157, %v2453
          %v4163 = vmul.f32 %v4159, %v2453
          %v4164 = vmul.f32 %v4148, %v4148
          %v4165 = vmul.f32 %v4149, %v4149
          %v4166 = vmul.f32 %v4150, %v4150
          %v4167 = vmul.f32 %v4151, %v4151
          %4168 = vadd.xlane.f32.xlu0 %v4164
          %v4169 = vpop.xlane.xlu0 %4168
          %4170 = vadd.xlane.f32.xlu0 %v4165
          %v4171 = vpop.xlane.xlu0 %4170
          %4172 = vadd.xlane.f32.xlu0 %v4166
          %v4173 = vpop.xlane.xlu0 %4172
          %4174 = vadd.xlane.f32.xlu0 %v4167
          %v4175 = vpop.xlane.xlu0 %4174
          %v4176 = vmul.f32 %v4169, %v2453
          %v4177 = vmul.f32 %v4171, %v2453
          %v4178 = vmul.f32 %v4173, %v2453
          %v4179 = vmul.f32 %v4175, %v2453
          %v4180 = vmul.f32 %v4160, %v4160
          %v4181 = vmul.f32 %v4161, %v4161
          %v4182 = vmul.f32 %v4162, %v4162
          %v4183 = vmul.f32 %v4163, %v4163
          %v4184 = vsub.f32 %v4176, %v4180
          %v4185 = vsub.f32 %v4177, %v4181
          %v4186 = vsub.f32 %v4178, %v4182
          %v4187 = vsub.f32 %v4179, %v4183
          %v4188 = vsub.f32 %v4148, %v4160
          %v4189 = vsub.f32 %v4149, %v4161
          %v4190 = vsub.f32 %v4150, %v4162
          %v4191 = vsub.f32 %v4151, %v4163
          %v4192 = vadd.f32 %v4184, 1e-05
          %v4193 = vadd.f32 %v4185, 1e-05
          %v4194 = vadd.f32 %v4186, 1e-05
          %v4195 = vadd.f32 %v4187, 1e-05
          %v4196 = vrsqrt.pop %v4192
          %v4197 = vrsqrt.pop %v4193
          %v4198 = vrsqrt.pop %v4194
          %v4199 = vrsqrt.pop %v4195
          %v4200 = vmul.f32 %v4188, %v4196
          %v4201 = vmul.f32 %v4189, %v4197
          %v4202 = vmul.f32 %v4190, %v4198
          %v4203 = vmul.f32 %v4191, %v4199
          %v4204 = vlaneseq
          %v4205 = vshrl.u32 %v4204, 7
          %v4206 = vsub.s32 6, %v4205
          %v4207 = vrot.slane %v536, %v4206
          %v4208 = vmul.f32 %v4200, %v4207
          %v4209 = vmul.f32 %v4201, %v4207
          %v4210 = vmul.f32 %v4202, %v4207
          %v4211 = vmul.f32 %v4203, %v4207
          %v4212 = vlaneseq
          %v4213 = vshrl.u32 %v4212, 7
          %v4214 = vsub.s32 7, %v4213
          %v4215 = vrot.slane %v536, %v4214
          %v4216 = vadd.f32 %v4208, %v4215
          %v4217 = vadd.f32 %v4209, %v4215
          %v4218 = vadd.f32 %v4210, %v4215
          %v4219 = vadd.f32 %v4211, %v4215
          %4220 = vst [vmem:[#allocation2] sm:$0xff] %v4216
          %4221 = vst [vmem:[#allocation2 + $0x8] sm:$0xff] %v4217
          %4222 = vst [vmem:[#allocation2 + $0x10] sm:$0xff] %v4218
          %4223 = vst [vmem:[#allocation2 + $0x18] sm:$0xff] %v4219
          %4224 = vst [vmem:[#allocation3] sm:$0xff] 0.0
          %4225 = vst [vmem:[#allocation3 + $0x8] sm:$0xff] 0.0
          %4226 = vst [vmem:[#allocation3 + $0x10] sm:$0xff] 0.0
          %4227 = vst [vmem:[#allocation3 + $0x18] sm:$0xff] 0.0
        $region83: #{transformer_decoder_forward.1} parent=74 // pred_fallthru
          _
        %v4228 = vld [vmem:[#allocation2] sm:$0xff]
        %v4229 = vld [vmem:[#allocation2 + $0x8] sm:$0xff]
        %v4230 = vld [vmem:[#allocation2 + $0x10] sm:$0xff]
        %v4231 = vld [vmem:[#allocation2 + $0x18] sm:$0xff]
        %v4232 = vpack.c.bf16 %v4229, %v4228
        %v4233 = vpack.c.bf16 %v4231, %v4230
        %v4234 = vld [vmem:[%s442] sm:$0xff]
        %v4235 = vld [vmem:[%s442 + $0x8] sm:$0xff]
        %v4236 = vld [vmem:[%s442 + $0x10] sm:$0xff]
        %v4237 = vld [vmem:[%s442 + $0x18] sm:$0xff]
        %v4238 = vld [vmem:[%s442 + $0x20] sm:$0xff]
        %v4239 = vld [vmem:[%s442 + $0x28] sm:$0xff]
        %v4240 = vld [vmem:[%s442 + $0x30] sm:$0xff]
        %v4241 = vld [vmem:[%s442 + $0x38] sm:$0xff]
        %v4242 = vld [vmem:[%s442 + $0x40] sm:$0xff]
        %v4243 = vld [vmem:[%s442 + $0x48] sm:$0xff]
        %v4244 = vld [vmem:[%s442 + $0x50] sm:$0xff]
        %v4245 = vld [vmem:[%s442 + $0x58] sm:$0xff]
        %v4246 = vld [vmem:[%s442 + $0x60] sm:$0xff]
        %v4247 = vld [vmem:[%s442 + $0x68] sm:$0xff]
        %v4248 = vld [vmem:[%s442 + $0x70] sm:$0xff]
        %v4249 = vld [vmem:[%s442 + $0x78] sm:$0xff]
        %v4250 = vld [vmem:[%s442 + $0x80] sm:$0xff]
        %v4251 = vld [vmem:[%s442 + $0x88] sm:$0xff]
        %v4252 = vld [vmem:[%s442 + $0x90] sm:$0xff]
        %v4253 = vld [vmem:[%s442 + $0x98] sm:$0xff]
        %v4254 = vld [vmem:[%s442 + $0xa0] sm:$0xff]
        %v4255 = vld [vmem:[%s442 + $0xa8] sm:$0xff]
        %v4256 = vld [vmem:[%s442 + $0xb0] sm:$0xff]
        %v4257 = vld [vmem:[%s442 + $0xb8] sm:$0xff]
        %v4258 = vld [vmem:[%s442 + $0xc0] sm:$0xff]
        %v4259 = vld [vmem:[%s442 + $0xc8] sm:$0xff]
        %v4260 = vld [vmem:[%s442 + $0xd0] sm:$0xff]
        %v4261 = vld [vmem:[%s442 + $0xd8] sm:$0xff]
        %v4262 = vld [vmem:[%s442 + $0xe0] sm:$0xff]
        %v4263 = vld [vmem:[%s442 + $0xe8] sm:$0xff]
        %v4264 = vld [vmem:[%s442 + $0xf0] sm:$0xff]
        %v4265 = vld [vmem:[%s442 + $0xf8] sm:$0xff]
        %v4266 = vld [vmem:[%s526] sm:$0xf]
        %v4268 = vlaneseq
        %v4269 = vshrl.u32 %v4268, 7
        %v4270 = vsub.s32 0, %v4269
        %v4271 = vrot.slane %v4266, %v4270
        %v4272 = vlaneseq
        %v4273 = vshrl.u32 %v4272, 7
        %v4274 = vsub.s32 1, %v4273
        %v4275 = vrot.slane %v4266, %v4274
        %v4276 = vlaneseq
        %v4277 = vshrl.u32 %v4276, 7
        %v4278 = vsub.s32 2, %v4277
        %v4279 = vrot.slane %v4266, %v4278
        %v4280 = vlaneseq
        %v4281 = vshrl.u32 %v4280, 7
        %v4282 = vsub.s32 3, %v4281
        %v4283 = vrot.slane %v4266, %v4282
        %v4320 = vunpack.c.l.b16 %v4234
        %v4321 = vunpack.c.h.b16 %v4234
        %v4322 = vunpack.c.l.b16 %v4235
        %v4323 = vunpack.c.h.b16 %v4235
        %v4324 = vunpack.c.l.b16 %v4236
        %v4325 = vunpack.c.h.b16 %v4236
        %v4326 = vunpack.c.l.b16 %v4237
        %v4327 = vunpack.c.h.b16 %v4237
        %v4328 = vunpack.c.l.b16 %v4238
        %v4329 = vunpack.c.h.b16 %v4238
        %v4330 = vunpack.c.l.b16 %v4239
        %v4331 = vunpack.c.h.b16 %v4239
        %v4332 = vunpack.c.l.b16 %v4240
        %v4333 = vunpack.c.h.b16 %v4240
        %v4334 = vunpack.c.l.b16 %v4241
        %v4335 = vunpack.c.h.b16 %v4241
        %v4336 = vunpack.c.l.b16 %v4242
        %v4337 = vunpack.c.h.b16 %v4242
        %v4338 = vunpack.c.l.b16 %v4243
        %v4339 = vunpack.c.h.b16 %v4243
        %v4340 = vunpack.c.l.b16 %v4244
        %v4341 = vunpack.c.h.b16 %v4244
        %v4342 = vunpack.c.l.b16 %v4245
        %v4343 = vunpack.c.h.b16 %v4245
        %v4344 = vunpack.c.l.b16 %v4246
        %v4345 = vunpack.c.h.b16 %v4246
        %v4346 = vunpack.c.l.b16 %v4247
        %v4347 = vunpack.c.h.b16 %v4247
        %v4348 = vunpack.c.l.b16 %v4248
        %v4349 = vunpack.c.h.b16 %v4248
        %v4350 = vunpack.c.l.b16 %v4249
        %v4351 = vunpack.c.h.b16 %v4249
        %v4352 = vunpack.c.l.b16 %v4250
        %v4353 = vunpack.c.h.b16 %v4250
        %v4354 = vunpack.c.l.b16 %v4251
        %v4355 = vunpack.c.h.b16 %v4251
        %v4356 = vunpack.c.l.b16 %v4252
        %v4357 = vunpack.c.h.b16 %v4252
        %v4358 = vunpack.c.l.b16 %v4253
        %v4359 = vunpack.c.h.b16 %v4253
        %v4360 = vunpack.c.l.b16 %v4254
        %v4361 = vunpack.c.h.b16 %v4254
        %v4362 = vunpack.c.l.b16 %v4255
        %v4363 = vunpack.c.h.b16 %v4255
        %v4364 = vunpack.c.l.b16 %v4256
        %v4365 = vunpack.c.h.b16 %v4256
        %v4366 = vunpack.c.l.b16 %v4257
        %v4367 = vunpack.c.h.b16 %v4257
        %v4368 = vunpack.c.l.b16 %v4258
        %v4369 = vunpack.c.h.b16 %v4258
        %v4370 = vunpack.c.l.b16 %v4259
        %v4371 = vunpack.c.h.b16 %v4259
        %v4372 = vunpack.c.l.b16 %v4260
        %v4373 = vunpack.c.h.b16 %v4260
        %v4374 = vunpack.c.l.b16 %v4261
        %v4375 = vunpack.c.h.b16 %v4261
        %v4376 = vunpack.c.l.b16 %v4262
        %v4377 = vunpack.c.h.b16 %v4262
        %v4378 = vunpack.c.l.b16 %v4263
        %v4379 = vunpack.c.h.b16 %v4263
        %v4380 = vunpack.c.l.b16 %v4264
        %v4381 = vunpack.c.h.b16 %v4264
        %v4382 = vunpack.c.l.b16 %v4265
        %v4383 = vunpack.c.h.b16 %v4265
        %v4384 = vpack.c.b16 %v4324, %v4320
        %v4385 = vpack.c.b16 %v4325, %v4321
        %v4386 = vpack.c.b16 %v4326, %v4322
        %v4387 = vpack.c.b16 %v4327, %v4323
        %v4388 = vpack.c.b16 %v4332, %v4328
        %v4389 = vpack.c.b16 %v4333, %v4329
        %v4390 = vpack.c.b16 %v4334, %v4330
        %v4391 = vpack.c.b16 %v4335, %v4331
        %v4392 = vpack.c.b16 %v4340, %v4336
        %v4393 = vpack.c.b16 %v4341, %v4337
        %v4394 = vpack.c.b16 %v4342, %v4338
        %v4395 = vpack.c.b16 %v4343, %v4339
        %v4396 = vpack.c.b16 %v4348, %v4344
        %v4397 = vpack.c.b16 %v4349, %v4345
        %v4398 = vpack.c.b16 %v4350, %v4346
        %v4399 = vpack.c.b16 %v4351, %v4347
        %v4400 = vpack.c.b16 %v4356, %v4352
        %v4401 = vpack.c.b16 %v4357, %v4353
        %v4402 = vpack.c.b16 %v4358, %v4354
        %v4403 = vpack.c.b16 %v4359, %v4355
        %v4404 = vpack.c.b16 %v4364, %v4360
        %v4405 = vpack.c.b16 %v4365, %v4361
        %v4406 = vpack.c.b16 %v4366, %v4362
        %v4407 = vpack.c.b16 %v4367, %v4363
        %v4408 = vpack.c.b16 %v4372, %v4368
        %v4409 = vpack.c.b16 %v4373, %v4369
        %v4410 = vpack.c.b16 %v4374, %v4370
        %v4411 = vpack.c.b16 %v4375, %v4371
        %v4412 = vpack.c.b16 %v4380, %v4376
        %v4413 = vpack.c.b16 %v4381, %v4377
        %v4414 = vpack.c.b16 %v4382, %v4378
        %v4415 = vpack.c.b16 %v4383, %v4379
        %4448 = vmatprep.subr.bf16.mxu0 %v4413
        %4449 = vmatpush1.bf16.msra.mxu0 %v4412
        %4450 = vmatprep.subr.bf16.mxu0 %v4409
        %4451 = vmatpush1.bf16.msra.mxu0 %v4408
        %4452 = vmatprep.subr.bf16.mxu0 %v4405
        %4453 = vmatpush1.bf16.msra.mxu0 %v4404
        %4454 = vmatprep.subr.bf16.mxu0 %v4401
        %4455 = vmatpush1.bf16.msra.mxu0 %v4400
        %4456 = vmatprep.subr.bf16.mxu0 %v4397
        %4457 = vmatpush1.bf16.msra.mxu0 %v4396
        %4458 = vmatprep.subr.bf16.mxu0 %v4393
        %4459 = vmatpush1.bf16.msra.mxu0 %v4392
        %4460 = vmatprep.subr.bf16.mxu0 %v4389
        %4461 = vmatpush1.bf16.msra.mxu0 %v4388
        %4462 = vmatprep.subr.bf16.mxu0 %v4385
        %4463 = vmatpush1.bf16.msra.mxu0 %v4384
        %4464 = vmatprep.subr.bf16.mxu0 0
        %4465 = vmatpush2.bf16.msra.mxu0 0
        %4466 = vmatprep.subr.bf16.mxu0 0
        %4467 = vmatpush2.bf16.msra.mxu0 0
        %4468 = vmatprep.subr.bf16.mxu0 0
        %4469 = vmatpush2.bf16.msra.mxu0 0
        %4470 = vmatprep.subr.bf16.mxu0 0
        %4471 = vmatpush2.bf16.msra.mxu0 0
        %4472 = vmatprep.subr.bf16.mxu0 0
        %4473 = vmatpush2.bf16.msra.mxu0 0
        %4474 = vmatprep.subr.bf16.mxu0 0
        %4475 = vmatpush2.bf16.msra.mxu0 0
        %4476 = vmatprep.subr.bf16.mxu0 0
        %4477 = vmatpush2.bf16.msra.mxu0 0
        %4478 = vmatprep.subr.bf16.mxu0 0
        %4479 = vmatpush2.bf16.msra.mxu0 0
        %4480 = vmatprep.mubr.bf16.mxu0 0
        %4481 = vmatmul.mubr.bf16.gmra.mxu0 %v4232
        %v4482 = vpop.f32.mrf.mxu0
        %v4483 = vadd.f32 %v4271, %v4482
        %v4484 = vpop.f32.mrf.mxu0
        %v4485 = vadd.f32 %v4275, %v4484
        %v4486 = vpop.f32.mrf.mxu0
        %v4487 = vadd.f32 %v4271, %v4486
        %v4488 = vpop.f32.mrf.mxu0
        %v4489 = vadd.f32 %v4275, %v4488
        %4490 = vmatprep.mubr.bf16.mxu0 0
        %4491 = vmatmul.mubr.bf16.gmra.mxu0 %v4233
        %v4492 = vpop.f32.mrf.mxu0
        %v4493 = vadd.f32 %v4271, %v4492
        %v4494 = vpop.f32.mrf.mxu0
        %v4495 = vadd.f32 %v4275, %v4494
        %v4496 = vpop.f32.mrf.mxu0
        %v4497 = vadd.f32 %v4271, %v4496
        %v4498 = vpop.f32.mrf.mxu0
        %v4499 = vadd.f32 %v4275, %v4498
        %4500 = vdwg.mxu0
        %4501 = vmatprep.subr.bf16.mxu0 %v4415
        %4502 = vmatpush1.bf16.msra.mxu0 %v4414
        %4503 = vmatprep.subr.bf16.mxu0 %v4411
        %4504 = vmatpush1.bf16.msra.mxu0 %v4410
        %4505 = vmatprep.subr.bf16.mxu0 %v4407
        %4506 = vmatpush1.bf16.msra.mxu0 %v4406
        %4507 = vmatprep.subr.bf16.mxu0 %v4403
        %4508 = vmatpush1.bf16.msra.mxu0 %v4402
        %4509 = vmatprep.subr.bf16.mxu0 %v4399
        %4510 = vmatpush1.bf16.msra.mxu0 %v4398
        %4511 = vmatprep.subr.bf16.mxu0 %v4395
        %4512 = vmatpush1.bf16.msra.mxu0 %v4394
        %4513 = vmatprep.subr.bf16.mxu0 %v4391
        %4514 = vmatpush1.bf16.msra.mxu0 %v4390
        %4515 = vmatprep.subr.bf16.mxu0 %v4387
        %4516 = vmatpush1.bf16.msra.mxu0 %v4386
        %4517 = vmatprep.subr.bf16.mxu0 0
        %4518 = vmatpush2.bf16.msra.mxu0 0
        %4519 = vmatprep.subr.bf16.mxu0 0
        %4520 = vmatpush2.bf16.msra.mxu0 0
        %4521 = vmatprep.subr.bf16.mxu0 0
        %4522 = vmatpush2.bf16.msra.mxu0 0
        %4523 = vmatprep.subr.bf16.mxu0 0
        %4524 = vmatpush2.bf16.msra.mxu0 0
        %4525 = vmatprep.subr.bf16.mxu0 0
        %4526 = vmatpush2.bf16.msra.mxu0 0
        %4527 = vmatprep.subr.bf16.mxu0 0
        %4528 = vmatpush2.bf16.msra.mxu0 0
        %4529 = vmatprep.subr.bf16.mxu0 0
        %4530 = vmatpush2.bf16.msra.mxu0 0
        %4531 = vmatprep.subr.bf16.mxu0 0
        %4532 = vmatpush2.bf16.msra.mxu0 0
        %4533 = vmatprep.mubr.bf16.mxu0 0
        %4534 = vmatmul.mubr.bf16.gmra.mxu0 %v4232
        %v4535 = vpop.f32.mrf.mxu0
        %v4536 = vadd.f32 %v4279, %v4535
        %v4537 = vpop.f32.mrf.mxu0
        %v4538 = vadd.f32 %v4283, %v4537
        %v4539 = vpop.f32.mrf.mxu0
        %v4540 = vadd.f32 %v4279, %v4539
        %v4541 = vpop.f32.mrf.mxu0
        %v4542 = vadd.f32 %v4283, %v4541
        %4543 = vmatprep.mubr.bf16.mxu0 0
        %4544 = vmatmul.mubr.bf16.gmra.mxu0 %v4233
        %v4545 = vpop.f32.mrf.mxu0
        %v4546 = vadd.f32 %v4279, %v4545
        %v4547 = vpop.f32.mrf.mxu0
        %v4548 = vadd.f32 %v4283, %v4547
        %v4549 = vpop.f32.mrf.mxu0
        %v4550 = vadd.f32 %v4279, %v4549
        %v4551 = vpop.f32.mrf.mxu0
        %v4552 = vadd.f32 %v4283, %v4551
        %4553 = vdwg.mxu0
        %v4554 = vmax.f32 %v4483, 0.0
        %v4555 = vmax.f32 %v4485, 0.0
        %v4556 = vmax.f32 %v4536, 0.0
        %v4557 = vmax.f32 %v4538, 0.0
        %v4558 = vmax.f32 %v4487, 0.0
        %v4559 = vmax.f32 %v4489, 0.0
        %v4560 = vmax.f32 %v4540, 0.0
        %v4561 = vmax.f32 %v4542, 0.0
        %v4562 = vmax.f32 %v4493, 0.0
        %v4563 = vmax.f32 %v4495, 0.0
        %v4564 = vmax.f32 %v4546, 0.0
        %v4565 = vmax.f32 %v4548, 0.0
        %v4566 = vmax.f32 %v4497, 0.0
        %v4567 = vmax.f32 %v4499, 0.0
        %v4568 = vmax.f32 %v4550, 0.0
        %v4569 = vmax.f32 %v4552, 0.0
        %v4570 = vld [vmem:[#allocation3] sm:$0xff]
        %v4571 = vld [vmem:[#allocation3 + $0x8] sm:$0xff]
        %v4572 = vld [vmem:[#allocation3 + $0x10] sm:$0xff]
        %v4573 = vld [vmem:[#allocation3 + $0x18] sm:$0xff]
        %v4574 = vpack.c.bf16 %v4558, %v4554
        %v4575 = vpack.c.bf16 %v4559, %v4555
        %v4576 = vpack.c.bf16 %v4560, %v4556
        %v4577 = vpack.c.bf16 %v4561, %v4557
        %v4578 = vpack.c.bf16 %v4566, %v4562
        %v4579 = vpack.c.bf16 %v4567, %v4563
        %v4580 = vpack.c.bf16 %v4568, %v4564
        %v4581 = vpack.c.bf16 %v4569, %v4565
        %v4582 = vld [vmem:[%s521] sm:$0xf]
        %v4583 = vld [vmem:[%s521 + $0x4] sm:$0xf]
        %v4584 = vld [vmem:[%s521 + $0x8] sm:$0xf]
        %v4585 = vld [vmem:[%s521 + $0xc] sm:$0xf]
        %v4586 = vld [vmem:[%s521 + $0x10] sm:$0xf]
        %v4587 = vld [vmem:[%s521 + $0x14] sm:$0xf]
        %v4588 = vld [vmem:[%s521 + $0x18] sm:$0xf]
        %v4589 = vld [vmem:[%s521 + $0x1c] sm:$0xf]
        %v4590 = vld [vmem:[%s521 + $0x20] sm:$0xf]
        %v4591 = vld [vmem:[%s521 + $0x24] sm:$0xf]
        %v4592 = vld [vmem:[%s521 + $0x28] sm:$0xf]
        %v4593 = vld [vmem:[%s521 + $0x2c] sm:$0xf]
        %v4594 = vld [vmem:[%s521 + $0x30] sm:$0xf]
        %v4595 = vld [vmem:[%s521 + $0x34] sm:$0xf]
        %v4596 = vld [vmem:[%s521 + $0x38] sm:$0xf]
        %v4597 = vld [vmem:[%s521 + $0x3c] sm:$0xf]
        %v4598 = vld [vmem:[%s521 + $0x40] sm:$0xf]
        %v4599 = vld [vmem:[%s521 + $0x44] sm:$0xf]
        %v4600 = vld [vmem:[%s521 + $0x48] sm:$0xf]
        %v4601 = vld [vmem:[%s521 + $0x4c] sm:$0xf]
        %v4602 = vld [vmem:[%s521 + $0x50] sm:$0xf]
        %v4603 = vld [vmem:[%s521 + $0x54] sm:$0xf]
        %v4604 = vld [vmem:[%s521 + $0x58] sm:$0xf]
        %v4605 = vld [vmem:[%s521 + $0x5c] sm:$0xf]
        %v4606 = vld [vmem:[%s521 + $0x60] sm:$0xf]
        %v4607 = vld [vmem:[%s521 + $0x64] sm:$0xf]
        %v4608 = vld [vmem:[%s521 + $0x68] sm:$0xf]
        %v4609 = vld [vmem:[%s521 + $0x6c] sm:$0xf]
        %v4610 = vld [vmem:[%s521 + $0x70] sm:$0xf]
        %v4611 = vld [vmem:[%s521 + $0x74] sm:$0xf]
        %v4612 = vld [vmem:[%s521 + $0x78] sm:$0xf]
        %v4613 = vld [vmem:[%s521 + $0x7c] sm:$0xf]
        %v4614 = vld [vmem:[%s521 + $0x80] sm:$0xf]
        %v4615 = vld [vmem:[%s521 + $0x84] sm:$0xf]
        %v4616 = vld [vmem:[%s521 + $0x88] sm:$0xf]
        %v4617 = vld [vmem:[%s521 + $0x8c] sm:$0xf]
        %v4618 = vld [vmem:[%s521 + $0x90] sm:$0xf]
        %v4619 = vld [vmem:[%s521 + $0x94] sm:$0xf]
        %v4620 = vld [vmem:[%s521 + $0x98] sm:$0xf]
        %v4621 = vld [vmem:[%s521 + $0x9c] sm:$0xf]
        %v4622 = vld [vmem:[%s521 + $0xa0] sm:$0xf]
        %v4623 = vld [vmem:[%s521 + $0xa4] sm:$0xf]
        %v4624 = vld [vmem:[%s521 + $0xa8] sm:$0xf]
        %v4625 = vld [vmem:[%s521 + $0xac] sm:$0xf]
        %v4626 = vld [vmem:[%s521 + $0xb0] sm:$0xf]
        %v4627 = vld [vmem:[%s521 + $0xb4] sm:$0xf]
        %v4628 = vld [vmem:[%s521 + $0xb8] sm:$0xf]
        %v4629 = vld [vmem:[%s521 + $0xbc] sm:$0xf]
        %v4630 = vld [vmem:[%s521 + $0xc0] sm:$0xf]
        %v4631 = vld [vmem:[%s521 + $0xc4] sm:$0xf]
        %v4632 = vld [vmem:[%s521 + $0xc8] sm:$0xf]
        %v4633 = vld [vmem:[%s521 + $0xcc] sm:$0xf]
        %v4634 = vld [vmem:[%s521 + $0xd0] sm:$0xf]
        %v4635 = vld [vmem:[%s521 + $0xd4] sm:$0xf]
        %v4636 = vld [vmem:[%s521 + $0xd8] sm:$0xf]
        %v4637 = vld [vmem:[%s521 + $0xdc] sm:$0xf]
        %v4638 = vld [vmem:[%s521 + $0xe0] sm:$0xf]
        %v4639 = vld [vmem:[%s521 + $0xe4] sm:$0xf]
        %v4640 = vld [vmem:[%s521 + $0xe8] sm:$0xf]
        %v4641 = vld [vmem:[%s521 + $0xec] sm:$0xf]
        %v4642 = vld [vmem:[%s521 + $0xf0] sm:$0xf]
        %v4643 = vld [vmem:[%s521 + $0xf4] sm:$0xf]
        %v4644 = vld [vmem:[%s521 + $0xf8] sm:$0xf]
        %v4645 = vld [vmem:[%s521 + $0xfc] sm:$0xf]
        %v4710 = vunpack.c.l.b16 %v4582
        %v4711 = vunpack.c.l.b16 %v4583
        %v4712 = vunpack.c.l.b16 %v4584
        %v4713 = vunpack.c.l.b16 %v4585
        %v4714 = vunpack.c.l.b16 %v4586
        %v4715 = vunpack.c.l.b16 %v4587
        %v4716 = vunpack.c.l.b16 %v4588
        %v4717 = vunpack.c.l.b16 %v4589
        %v4718 = vunpack.c.l.b16 %v4590
        %v4719 = vunpack.c.l.b16 %v4591
        %v4720 = vunpack.c.l.b16 %v4592
        %v4721 = vunpack.c.l.b16 %v4593
        %v4722 = vunpack.c.l.b16 %v4594
        %v4723 = vunpack.c.l.b16 %v4595
        %v4724 = vunpack.c.l.b16 %v4596
        %v4725 = vunpack.c.l.b16 %v4597
        %v4726 = vunpack.c.l.b16 %v4598
        %v4727 = vunpack.c.l.b16 %v4599
        %v4728 = vunpack.c.l.b16 %v4600
        %v4729 = vunpack.c.l.b16 %v4601
        %v4730 = vunpack.c.l.b16 %v4602
        %v4731 = vunpack.c.l.b16 %v4603
        %v4732 = vunpack.c.l.b16 %v4604
        %v4733 = vunpack.c.l.b16 %v4605
        %v4734 = vunpack.c.l.b16 %v4606
        %v4735 = vunpack.c.l.b16 %v4607
        %v4736 = vunpack.c.l.b16 %v4608
        %v4737 = vunpack.c.l.b16 %v4609
        %v4738 = vunpack.c.l.b16 %v4610
        %v4739 = vunpack.c.l.b16 %v4611
        %v4740 = vunpack.c.l.b16 %v4612
        %v4741 = vunpack.c.l.b16 %v4613
        %v4742 = vunpack.c.l.b16 %v4614
        %v4743 = vunpack.c.l.b16 %v4615
        %v4744 = vunpack.c.l.b16 %v4616
        %v4745 = vunpack.c.l.b16 %v4617
        %v4746 = vunpack.c.l.b16 %v4618
        %v4747 = vunpack.c.l.b16 %v4619
        %v4748 = vunpack.c.l.b16 %v4620
        %v4749 = vunpack.c.l.b16 %v4621
        %v4750 = vunpack.c.l.b16 %v4622
        %v4751 = vunpack.c.l.b16 %v4623
        %v4752 = vunpack.c.l.b16 %v4624
        %v4753 = vunpack.c.l.b16 %v4625
        %v4754 = vunpack.c.l.b16 %v4626
        %v4755 = vunpack.c.l.b16 %v4627
        %v4756 = vunpack.c.l.b16 %v4628
        %v4757 = vunpack.c.l.b16 %v4629
        %v4758 = vunpack.c.l.b16 %v4630
        %v4759 = vunpack.c.l.b16 %v4631
        %v4760 = vunpack.c.l.b16 %v4632
        %v4761 = vunpack.c.l.b16 %v4633
        %v4762 = vunpack.c.l.b16 %v4634
        %v4763 = vunpack.c.l.b16 %v4635
        %v4764 = vunpack.c.l.b16 %v4636
        %v4765 = vunpack.c.l.b16 %v4637
        %v4766 = vunpack.c.l.b16 %v4638
        %v4767 = vunpack.c.l.b16 %v4639
        %v4768 = vunpack.c.l.b16 %v4640
        %v4769 = vunpack.c.l.b16 %v4641
        %v4770 = vunpack.c.l.b16 %v4642
        %v4771 = vunpack.c.l.b16 %v4643
        %v4772 = vunpack.c.l.b16 %v4644
        %v4773 = vunpack.c.l.b16 %v4645
        %v4774 = vpack.c.b16 %v4711, %v4710
        %v4775 = vpack.c.b16 %v4713, %v4712
        %v4776 = vpack.c.b16 %v4715, %v4714
        %v4777 = vpack.c.b16 %v4717, %v4716
        %v4778 = vpack.c.b16 %v4719, %v4718
        %v4779 = vpack.c.b16 %v4721, %v4720
        %v4780 = vpack.c.b16 %v4723, %v4722
        %v4781 = vpack.c.b16 %v4725, %v4724
        %v4782 = vpack.c.b16 %v4727, %v4726
        %v4783 = vpack.c.b16 %v4729, %v4728
        %v4784 = vpack.c.b16 %v4731, %v4730
        %v4785 = vpack.c.b16 %v4733, %v4732
        %v4786 = vpack.c.b16 %v4735, %v4734
        %v4787 = vpack.c.b16 %v4737, %v4736
        %v4788 = vpack.c.b16 %v4739, %v4738
        %v4789 = vpack.c.b16 %v4741, %v4740
        %v4790 = vpack.c.b16 %v4743, %v4742
        %v4791 = vpack.c.b16 %v4745, %v4744
        %v4792 = vpack.c.b16 %v4747, %v4746
        %v4793 = vpack.c.b16 %v4749, %v4748
        %v4794 = vpack.c.b16 %v4751, %v4750
        %v4795 = vpack.c.b16 %v4753, %v4752
        %v4796 = vpack.c.b16 %v4755, %v4754
        %v4797 = vpack.c.b16 %v4757, %v4756
        %v4798 = vpack.c.b16 %v4759, %v4758
        %v4799 = vpack.c.b16 %v4761, %v4760
        %v4800 = vpack.c.b16 %v4763, %v4762
        %v4801 = vpack.c.b16 %v4765, %v4764
        %v4802 = vpack.c.b16 %v4767, %v4766
        %v4803 = vpack.c.b16 %v4769, %v4768
        %v4804 = vpack.c.b16 %v4771, %v4770
        %v4805 = vpack.c.b16 %v4773, %v4772
        %4838 = vmatprep.subr.bf16.mxu0 0
        %4839 = vmatpush1.bf16.msra.mxu0 %v4781
        %4840 = vmatprep.subr.bf16.mxu0 0
        %4841 = vmatpush1.bf16.msra.mxu0 %v4780
        %4842 = vmatprep.subr.bf16.mxu0 0
        %4843 = vmatpush1.bf16.msra.mxu0 %v4779
        %4844 = vmatprep.subr.bf16.mxu0 0
        %4845 = vmatpush1.bf16.msra.mxu0 %v4778
        %4846 = vmatprep.subr.bf16.mxu0 0
        %4847 = vmatpush1.bf16.msra.mxu0 %v4777
        %4848 = vmatprep.subr.bf16.mxu0 0
        %4849 = vmatpush1.bf16.msra.mxu0 %v4776
        %4850 = vmatprep.subr.bf16.mxu0 0
        %4851 = vmatpush1.bf16.msra.mxu0 %v4775
        %4852 = vmatprep.subr.bf16.mxu0 0
        %4853 = vmatpush1.bf16.msra.mxu0 %v4774
        %4854 = vmatprep.subr.bf16.mxu0 0
        %4855 = vmatpush2.bf16.msra.mxu0 %v4789
        %4856 = vmatprep.subr.bf16.mxu0 0
        %4857 = vmatpush2.bf16.msra.mxu0 %v4788
        %4858 = vmatprep.subr.bf16.mxu0 0
        %4859 = vmatpush2.bf16.msra.mxu0 %v4787
        %4860 = vmatprep.subr.bf16.mxu0 0
        %4861 = vmatpush2.bf16.msra.mxu0 %v4786
        %4862 = vmatprep.subr.bf16.mxu0 0
        %4863 = vmatpush2.bf16.msra.mxu0 %v4785
        %4864 = vmatprep.subr.bf16.mxu0 0
        %4865 = vmatpush2.bf16.msra.mxu0 %v4784
        %4866 = vmatprep.subr.bf16.mxu0 0
        %4867 = vmatpush2.bf16.msra.mxu0 %v4783
        %4868 = vmatprep.subr.bf16.mxu0 0
        %4869 = vmatpush2.bf16.msra.mxu0 %v4782
        %4870 = vmatprep.mubr.bf16.mxu0 %v4575
        %4871 = vmatmul.mubr.bf16.gmra.mxu0 %v4574
        %v4872 = vpop.f32.mrf.mxu0
        %v4873 = vadd.f32 0.0, %v4872
        %v4874 = vpop.f32.mrf.mxu0
        %v4875 = vpop.f32.mrf.mxu0
        %v4876 = vadd.f32 0.0, %v4875
        %v4877 = vpop.f32.mrf.mxu0
        %4878 = vmatprep.mubr.bf16.mxu0 %v4579
        %4879 = vmatmul.mubr.bf16.gmra.mxu0 %v4578
        %v4880 = vpop.f32.mrf.mxu0
        %v4881 = vadd.f32 0.0, %v4880
        %v4882 = vpop.f32.mrf.mxu0
        %v4883 = vpop.f32.mrf.mxu0
        %v4884 = vadd.f32 0.0, %v4883
        %v4885 = vpop.f32.mrf.mxu0
        %4886 = vdwg.mxu0
        %4887 = vmatprep.subr.bf16.mxu0 0
        %4888 = vmatpush1.bf16.msra.mxu0 %v4797
        %4889 = vmatprep.subr.bf16.mxu0 0
        %4890 = vmatpush1.bf16.msra.mxu0 %v4796
        %4891 = vmatprep.subr.bf16.mxu0 0
        %4892 = vmatpush1.bf16.msra.mxu0 %v4795
        %4893 = vmatprep.subr.bf16.mxu0 0
        %4894 = vmatpush1.bf16.msra.mxu0 %v4794
        %4895 = vmatprep.subr.bf16.mxu0 0
        %4896 = vmatpush1.bf16.msra.mxu0 %v4793
        %4897 = vmatprep.subr.bf16.mxu0 0
        %4898 = vmatpush1.bf16.msra.mxu0 %v4792
        %4899 = vmatprep.subr.bf16.mxu0 0
        %4900 = vmatpush1.bf16.msra.mxu0 %v4791
        %4901 = vmatprep.subr.bf16.mxu0 0
        %4902 = vmatpush1.bf16.msra.mxu0 %v4790
        %4903 = vmatprep.subr.bf16.mxu0 0
        %4904 = vmatpush2.bf16.msra.mxu0 %v4805
        %4905 = vmatprep.subr.bf16.mxu0 0
        %4906 = vmatpush2.bf16.msra.mxu0 %v4804
        %4907 = vmatprep.subr.bf16.mxu0 0
        %4908 = vmatpush2.bf16.msra.mxu0 %v4803
        %4909 = vmatprep.subr.bf16.mxu0 0
        %4910 = vmatpush2.bf16.msra.mxu0 %v4802
        %4911 = vmatprep.subr.bf16.mxu0 0
        %4912 = vmatpush2.bf16.msra.mxu0 %v4801
        %4913 = vmatprep.subr.bf16.mxu0 0
        %4914 = vmatpush2.bf16.msra.mxu0 %v4800
        %4915 = vmatprep.subr.bf16.mxu0 0
        %4916 = vmatpush2.bf16.msra.mxu0 %v4799
        %4917 = vmatprep.subr.bf16.mxu0 0
        %4918 = vmatpush2.bf16.msra.mxu0 %v4798
        %4919 = vmatprep.mubr.bf16.mxu0 %v4577
        %4920 = vmatmul.mubr.bf16.gmra.mxu0 %v4576
        %v4921 = vpop.f32.mrf.mxu0
        %v4922 = vadd.f32 %v4873, %v4921
        %v4923 = vpop.f32.mrf.mxu0
        %v4924 = vpop.f32.mrf.mxu0
        %v4925 = vadd.f32 %v4876, %v4924
        %v4926 = vpop.f32.mrf.mxu0
        %4927 = vmatprep.mubr.bf16.mxu0 %v4581
        %4928 = vmatmul.mubr.bf16.gmra.mxu0 %v4580
        %v4929 = vpop.f32.mrf.mxu0
        %v4930 = vadd.f32 %v4881, %v4929
        %v4931 = vpop.f32.mrf.mxu0
        %v4932 = vpop.f32.mrf.mxu0
        %v4933 = vadd.f32 %v4884, %v4932
        %v4934 = vpop.f32.mrf.mxu0
        %4935 = vdwg.mxu0
        %v4936 = vadd.f32 %v4570, %v4922
        %v4937 = vadd.f32 %v4571, %v4925
        %v4938 = vadd.f32 %v4572, %v4930
        %v4939 = vadd.f32 %v4573, %v4933
        %4940 = vst [vmem:[#allocation3] sm:$0xff] %v4936
        %4941 = vst [vmem:[#allocation3 + $0x8] sm:$0xff] %v4937
        %4942 = vst [vmem:[#allocation3 + $0x10] sm:$0xff] %v4938
        %4943 = vst [vmem:[#allocation3 + $0x18] sm:$0xff] %v4939
        %p4944 = scmp.eq.s32.totalorder %s25, 3
        // Predicated region
        $region84: #{transformer_decoder_forward.1} parent=74 // pred_check
          %p4945 = pneg %p4944
        $region85: #{transformer_decoder_forward.1} parent=74 // pred_check_branch
          %4947 = sbr.rel (%p4945) target = $region87
        $region86: #{transformer_decoder_forward.1} parent=74 // pred_region
          %v4948 = vld [vmem:[%s4 + $0x24] sm:$0xff]
          %v4949 = vld [vmem:[%s4 + $0x50] sm:$0xff]
          %v4950 = vld [vmem:[%s4 + $0x7c] sm:$0xff]
          %v4951 = vld [vmem:[%s4 + $0xa8] sm:$0xff]
          %v4952 = vld [vmem:[%s4 + $0xd4] sm:$0xff]
          %v4953 = vld [vmem:[%s4 + $0x100] sm:$0xff]
          %v4954 = vld [vmem:[%s4 + $0x12c] sm:$0xff]
          %v4955 = vld [vmem:[%s4 + $0x158] sm:$0xff]
          %v4956 = vld [vmem:[%s4 + $0x184] sm:$0xff]
          %v4957 = vld [vmem:[%s4 + $0x1b0] sm:$0xff]
          %v4958 = vld [vmem:[%s4 + $0x1dc] sm:$0xff]
          %v4959 = vld [vmem:[%s4 + $0x208] sm:$0xff]
          %v4960 = vld [vmem:[%s4 + $0x234] sm:$0xff]
          %v4961 = vld [vmem:[%s4 + $0x260] sm:$0xff]
          %v4962 = vld [vmem:[%s4 + $0x28c] sm:$0xff]
          %v4963 = vld [vmem:[%s4 + $0x2b8] sm:$0xff]
          %v4964 = vld [vmem:[#allocation2] sm:$0xff]
          %v4965 = vld [vmem:[#allocation2 + $0x8] sm:$0xff]
          %v4966 = vld [vmem:[#allocation2 + $0x10] sm:$0xff]
          %v4967 = vld [vmem:[#allocation2 + $0x18] sm:$0xff]
          %v4968 = vld [vmem:[#allocation3] sm:$0xff]
          %v4969 = vld [vmem:[#allocation3 + $0x8] sm:$0xff]
          %v4970 = vld [vmem:[#allocation3 + $0x10] sm:$0xff]
          %v4971 = vld [vmem:[#allocation3 + $0x18] sm:$0xff]
          %v4972 = vadd.f32 %v4964, %v4968
          %v4973 = vadd.f32 %v4965, %v4969
          %v4974 = vadd.f32 %v4966, %v4970
          %v4975 = vadd.f32 %v4967, %v4971
          %v4976 = vlaneseq
          %v4977 = vshrl.u32 %v4976, 7
          %v4978 = vsub.s32 3, %v4977
          %v4979 = vrot.slane %v536, %v4978
          %v4980 = vadd.f32 %v4972, %v4979
          %v4981 = vadd.f32 %v4973, %v4979
          %v4982 = vadd.f32 %v4974, %v4979
          %v4983 = vadd.f32 %v4975, %v4979
          %4984 = vadd.xlane.f32.xlu0 %v4980
          %v4985 = vpop.xlane.xlu0 %4984
          %4986 = vadd.xlane.f32.xlu0 %v4981
          %v4987 = vpop.xlane.xlu0 %4986
          %4988 = vadd.xlane.f32.xlu0 %v4982
          %v4989 = vpop.xlane.xlu0 %4988
          %4990 = vadd.xlane.f32.xlu0 %v4983
          %v4991 = vpop.xlane.xlu0 %4990
          %v4992 = vrcp.pop 128.0
          %v4993 = vmul.f32 %v4985, %v4992
          %v4994 = vmul.f32 %v4987, %v4992
          %v4995 = vmul.f32 %v4989, %v4992
          %v4996 = vmul.f32 %v4991, %v4992
          %v4997 = vmul.f32 %v4980, %v4980
          %v4998 = vmul.f32 %v4981, %v4981
          %v4999 = vmul.f32 %v4982, %v4982
          %v5000 = vmul.f32 %v4983, %v4983
          %5001 = vadd.xlane.f32.xlu0 %v4997
          %v5002 = vpop.xlane.xlu0 %5001
          %5003 = vadd.xlane.f32.xlu0 %v4998
          %v5004 = vpop.xlane.xlu0 %5003
          %5005 = vadd.xlane.f32.xlu0 %v4999
          %v5006 = vpop.xlane.xlu0 %5005
          %5007 = vadd.xlane.f32.xlu0 %v5000
          %v5008 = vpop.xlane.xlu0 %5007
          %v5009 = vmul.f32 %v5002, %v4992
          %v5010 = vmul.f32 %v5004, %v4992
          %v5011 = vmul.f32 %v5006, %v4992
          %v5012 = vmul.f32 %v5008, %v4992
          %v5013 = vmul.f32 %v4993, %v4993
          %v5014 = vmul.f32 %v4994, %v4994
          %v5015 = vmul.f32 %v4995, %v4995
          %v5016 = vmul.f32 %v4996, %v4996
          %v5017 = vsub.f32 %v5009, %v5013
          %v5018 = vsub.f32 %v5010, %v5014
          %v5019 = vsub.f32 %v5011, %v5015
          %v5020 = vsub.f32 %v5012, %v5016
          %v5021 = vsub.f32 %v4980, %v4993
          %v5022 = vsub.f32 %v4981, %v4994
          %v5023 = vsub.f32 %v4982, %v4995
          %v5024 = vsub.f32 %v4983, %v4996
          %v5025 = vadd.f32 %v5017, 1e-05
          %v5026 = vadd.f32 %v5018, 1e-05
          %v5027 = vadd.f32 %v5019, 1e-05
          %v5028 = vadd.f32 %v5020, 1e-05
          %v5029 = vrsqrt.pop %v5025
          %v5030 = vrsqrt.pop %v5026
          %v5031 = vrsqrt.pop %v5027
          %v5032 = vrsqrt.pop %v5028
          %v5033 = vmul.f32 %v5021, %v5029
          %v5034 = vmul.f32 %v5022, %v5030
          %v5035 = vmul.f32 %v5023, %v5031
          %v5036 = vmul.f32 %v5024, %v5032
          %v5037 = vlaneseq
          %v5038 = vshrl.u32 %v5037, 7
          %v5039 = vsub.s32 0, %v5038
          %v5040 = vrot.slane %v537, %v5039
          %v5041 = vmul.f32 %v5033, %v5040
          %v5042 = vmul.f32 %v5034, %v5040
          %v5043 = vmul.f32 %v5035, %v5040
          %v5044 = vmul.f32 %v5036, %v5040
          %v5045 = vlaneseq
          %v5046 = vshrl.u32 %v5045, 7
          %v5047 = vsub.s32 1, %v5046
          %v5048 = vrot.slane %v537, %v5047
          %v5049 = vadd.f32 %v5041, %v5048
          %v5050 = vadd.f32 %v5042, %v5048
          %v5051 = vadd.f32 %v5043, %v5048
          %v5052 = vadd.f32 %v5044, %v5048
          %v5053 = vpack.c.bf16 %v5050, %v5049
          %v5054 = vpack.c.bf16 %v5052, %v5051
          %v5055 = vlaneseq
          %v5056 = vshrl.u32 %v5055, 7
          %v5057 = vsub.s32 4, %v5056
          %v5058 = vrot.slane %v537, %v5057
          %v5059 = vlaneseq
          %v5060 = vshrl.u32 %v5059, 7
          %v5061 = vsub.s32 4, %v5060
          %v5062 = vrot.slane %v538, %v5061
          %v5079 = vunpack.c.l.b16 %v4948
          %v5080 = vunpack.c.h.b16 %v4948
          %v5081 = vunpack.c.l.b16 %v4949
          %v5082 = vunpack.c.h.b16 %v4949
          %v5083 = vunpack.c.l.b16 %v4950
          %v5084 = vunpack.c.h.b16 %v4950
          %v5085 = vunpack.c.l.b16 %v4951
          %v5086 = vunpack.c.h.b16 %v4951
          %v5087 = vunpack.c.l.b16 %v4952
          %v5088 = vunpack.c.h.b16 %v4952
          %v5089 = vunpack.c.l.b16 %v4953
          %v5090 = vunpack.c.h.b16 %v4953
          %v5091 = vunpack.c.l.b16 %v4954
          %v5092 = vunpack.c.h.b16 %v4954
          %v5093 = vunpack.c.l.b16 %v4955
          %v5094 = vunpack.c.h.b16 %v4955
          %v5095 = vunpack.c.l.b16 %v4956
          %v5096 = vunpack.c.h.b16 %v4956
          %v5097 = vunpack.c.l.b16 %v4957
          %v5098 = vunpack.c.h.b16 %v4957
          %v5099 = vunpack.c.l.b16 %v4958
          %v5100 = vunpack.c.h.b16 %v4958
          %v5101 = vunpack.c.l.b16 %v4959
          %v5102 = vunpack.c.h.b16 %v4959
          %v5103 = vunpack.c.l.b16 %v4960
          %v5104 = vunpack.c.h.b16 %v4960
          %v5105 = vunpack.c.l.b16 %v4961
          %v5106 = vunpack.c.h.b16 %v4961
          %v5107 = vunpack.c.l.b16 %v4962
          %v5108 = vunpack.c.h.b16 %v4962
          %v5109 = vunpack.c.l.b16 %v4963
          %v5110 = vunpack.c.h.b16 %v4963
          %v5111 = vpack.c.b16 %v5081, %v5079
          %v5112 = vpack.c.b16 %v5082, %v5080
          %v5113 = vpack.c.b16 %v5085, %v5083
          %v5114 = vpack.c.b16 %v5086, %v5084
          %v5115 = vpack.c.b16 %v5089, %v5087
          %v5116 = vpack.c.b16 %v5090, %v5088
          %v5117 = vpack.c.b16 %v5093, %v5091
          %v5118 = vpack.c.b16 %v5094, %v5092
          %v5119 = vpack.c.b16 %v5097, %v5095
          %v5120 = vpack.c.b16 %v5098, %v5096
          %v5121 = vpack.c.b16 %v5101, %v5099
          %v5122 = vpack.c.b16 %v5102, %v5100
          %v5123 = vpack.c.b16 %v5105, %v5103
          %v5124 = vpack.c.b16 %v5106, %v5104
          %v5125 = vpack.c.b16 %v5109, %v5107
          %v5126 = vpack.c.b16 %v5110, %v5108
          %5143 = vmatprep.subr.bf16.mxu0 %v5126
          %5144 = vmatpush1.bf16.msra.mxu0 %v5125
          %5145 = vmatprep.subr.bf16.mxu0 %v5124
          %5146 = vmatpush1.bf16.msra.mxu0 %v5123
          %5147 = vmatprep.subr.bf16.mxu0 %v5122
          %5148 = vmatpush1.bf16.msra.mxu0 %v5121
          %5149 = vmatprep.subr.bf16.mxu0 %v5120
          %5150 = vmatpush1.bf16.msra.mxu0 %v5119
          %5151 = vmatprep.subr.bf16.mxu0 %v5118
          %5152 = vmatpush1.bf16.msra.mxu0 %v5117
          %5153 = vmatprep.subr.bf16.mxu0 %v5116
          %5154 = vmatpush1.bf16.msra.mxu0 %v5115
          %5155 = vmatprep.subr.bf16.mxu0 %v5114
          %5156 = vmatpush1.bf16.msra.mxu0 %v5113
          %5157 = vmatprep.subr.bf16.mxu0 %v5112
          %5158 = vmatpush1.bf16.msra.mxu0 %v5111
          %5159 = vmatprep.subr.bf16.mxu0 0
          %5160 = vmatpush2.bf16.msra.mxu0 0
          %5161 = vmatprep.subr.bf16.mxu0 0
          %5162 = vmatpush2.bf16.msra.mxu0 0
          %5163 = vmatprep.subr.bf16.mxu0 0
          %5164 = vmatpush2.bf16.msra.mxu0 0
          %5165 = vmatprep.subr.bf16.mxu0 0
          %5166 = vmatpush2.bf16.msra.mxu0 0
          %5167 = vmatprep.subr.bf16.mxu0 0
          %5168 = vmatpush2.bf16.msra.mxu0 0
          %5169 = vmatprep.subr.bf16.mxu0 0
          %5170 = vmatpush2.bf16.msra.mxu0 0
          %5171 = vmatprep.subr.bf16.mxu0 0
          %5172 = vmatpush2.bf16.msra.mxu0 0
          %5173 = vmatprep.subr.bf16.mxu0 0
          %5174 = vmatpush2.bf16.msra.mxu0 0
          %5175 = vmatprep.mubr.bf16.mxu0 0
          %5176 = vmatmul.mubr.bf16.gmra.mxu0 %v5053
          %v5177 = vpop.f32.mrf.mxu0
          %v5178 = vadd.f32 %v5058, %v5177
          %v5179 = vpop.f32.mrf.mxu0
          %v5180 = vadd.f32 %v5062, %v5179
          %v5181 = vpop.f32.mrf.mxu0
          %v5182 = vadd.f32 %v5058, %v5181
          %v5183 = vpop.f32.mrf.mxu0
          %v5184 = vadd.f32 %v5062, %v5183
          %5185 = vmatprep.mubr.bf16.mxu0 0
          %5186 = vmatmul.mubr.bf16.gmra.mxu0 %v5054
          %v5187 = vpop.f32.mrf.mxu0
          %v5188 = vadd.f32 %v5058, %v5187
          %v5189 = vpop.f32.mrf.mxu0
          %v5190 = vadd.f32 %v5062, %v5189
          %v5191 = vpop.f32.mrf.mxu0
          %v5192 = vadd.f32 %v5058, %v5191
          %v5193 = vpop.f32.mrf.mxu0
          %v5194 = vadd.f32 %v5062, %v5193
          %5195 = vdwg.mxu0
          %5196 = vst [vmem:[%s533] sm:$0xff] %v5178
          %5197 = vst [vmem:[%s533 + $0x8] sm:$0xff] %v5180
          %5198 = vst [vmem:[%s533 + $0x10] sm:$0xff] %v5182
          %5199 = vst [vmem:[%s533 + $0x18] sm:$0xff] %v5184
          %5200 = vst [vmem:[%s533 + $0x20] sm:$0xff] %v5188
          %5201 = vst [vmem:[%s533 + $0x28] sm:$0xff] %v5190
          %5202 = vst [vmem:[%s533 + $0x30] sm:$0xff] %v5192
          %5203 = vst [vmem:[%s533 + $0x38] sm:$0xff] %v5194
        $region87: #{transformer_decoder_forward.1} parent=74 // pred_fallthru
          _
        %s5204 = smul.u32 4, %s24
        %p5205 = scmp.lt.s32.totalorder %s5204, 7
        %s5206 = scalar_select %p5205, %s5204, 7
        %s5207 = smul.addr %s5206, 2
        %s5208 = smul.addr %s5207, 8
        %s5209 = scalar_lea.vmem %s9, %s5208
        // Predicated region
        $region88: #{transformer_decoder_forward.1} parent=74 // pred_check
          %p5210 = pneg %p269
        $region89: #{transformer_decoder_forward.1} parent=74 // pred_check_branch
          %5212 = sbr.rel (%p5210) target = $region91
        $region90: #{transformer_decoder_forward.1} parent=74 // pred_region
          %s5213 = smul.u32 4, %s24
        $region91: #{transformer_decoder_forward.1} parent=74 // pred_fallthru
          _
      $region75: #{transformer_decoder_forward.1} parent=5 // pred_fallthru
        _
      %p5214 = scmp.le.s32.totalorder 2, %s15
      // Predicated region
      $region92: #{transformer_decoder_forward.1} parent=5 // pred_check
        %p5215 = pneg %p5214
      $region93: #{transformer_decoder_forward.1} parent=5 // pred_check_branch
        %5217 = sbr.rel (%p5215) target = $region95
      $region94: #{transformer_decoder_forward.1} parent=5 // pred_region
        %s5218 = ssub.s32 %s15, 2
        // Predicated region
        $region96: #{transformer_decoder_forward.1} parent=94 // pred_check
          %p5219 = pneg %p275
        $region97: #{transformer_decoder_forward.1} parent=94 // pred_check_branch
          %5221 = sbr.rel (%p5219) target = $region99
        $region98: #{transformer_decoder_forward.1} parent=94 // pred_region
          %s5222 = smul.u32 4, %s26
          %p5223 = scmp.lt.s32.totalorder %s5222, 7
          %s5224 = scalar_select %p5223, %s5222, 7
          %s5225 = smul.addr %s5224, 2
          %s5226 = smul.addr %s5225, 8
          %s5227 = scalar_lea.vmem %s9, %s5226
        $region99: #{transformer_decoder_forward.1} parent=94 // pred_fallthru
          _
      $region95: #{transformer_decoder_forward.1} parent=5 // pred_fallthru
        _
    $region6: #{transformer_decoder_forward.1} parent=1 // loop_footer
      %s19 = sadd.s32 1, %s15
    $region7: #{transformer_decoder_forward.1} parent=1 // loop_footer_branch
      %14 = sbr.rel target = $region3
    $region8: #{transformer_decoder_forward.1} parent=1 // loop_exit
      _

</llo_original>
